<compile_context>
chip_gen: v6e
topology: v6e:2x2x1
jax: 0.10.0
libtpu: 0.0.40
codegen_flags: <defaults>
</compile_context>

<pallas_src>
import functools

import jax
import jax.numpy as jnp
from jax.experimental import pallas as pl
from jax.experimental.pallas import tpu as pltpu


def _linear_reduce_kernel(x_ref, w_ref, b_ref, o_ref, acc_ref, *, apply_relu):
    """One (j, k) grid step of out[:, j] += x[:, k] @ w[k, j]; f32 accumulator."""
    k = pl.program_id(1)

    @pl.when(k == 0)
    def _():
        acc_ref[...] = jnp.zeros_like(acc_ref)

    # bf16 x bf16 MXU matmul, f32 accumulation.
    acc_ref[...] += jnp.dot(
        x_ref[...], w_ref[...], preferred_element_type=jnp.float32
    )

    @pl.when(k == pl.num_programs(1) - 1)
    def _():
        out = acc_ref[...] + b_ref[...]
        if apply_relu:
            out = jnp.maximum(out, 0.0)
        o_ref[...] = out.astype(o_ref.dtype)


def _linear_fullk_kernel(x_ref, w_ref, b_ref, o_ref, *, apply_relu):
    """out[:, j] = relu?(x @ w[:, j] + b[j]); whole K in a single MXU pass."""
    out = jnp.dot(x_ref[...], w_ref[...], preferred_element_type=jnp.float32)
    out = out + b_ref[...]
    if apply_relu:
        out = jnp.maximum(out, 0.0)
    o_ref[...] = out.astype(o_ref.dtype)


def pallas_linear(x, w, b, *, tn, tk, apply_relu, vmem_limit_bytes):
    """y = relu?(x @ w + b), tiled over (out-features j [, K-reduction k])."""
    M, K = x.shape
    K2, N = w.shape
    assert K == K2 and K % tk == 0 and N % tn == 0
    b2 = b.astype(jnp.float32).reshape(1, N)

    if tk == K:
        # Single-shot layer: no reduction axis, no accumulator, no pl.when
        # gating.  The (M, K) activation block's index_map is constant, so it
        # is fetched once and stays resident; only weights stream from HBM.
        kernel = functools.partial(_linear_fullk_kernel, apply_relu=apply_relu)
        grid_spec = pltpu.PrefetchScalarGridSpec(
            num_scalar_prefetch=0,
            grid=(N // tn,),
            in_specs=[
                pl.BlockSpec((M, K), lambda j: (0, 0)),    # activations (bf16)
                pl.BlockSpec((K, tn), lambda j: (0, j)),   # weights (bf16)
                pl.BlockSpec((1, tn), lambda j: (0, j)),   # bias (f32)
            ],
            out_specs=pl.BlockSpec((M, tn), lambda j: (0, j)),
            scratch_shapes=[],
        )
        dim_sem = ("parallel",)
    else:
        # Reduction layer.  Activations are streamed per (j, k); with the j
        # extent <= 2 in every config the redundant re-fetch is <= ~100 KB
        # total vs a ~200 MB weight stream, so a fully-resident x block would
        # buy < 0.1% (review: "minor, note it").
        kernel = functools.partial(_linear_reduce_kernel, apply_relu=apply_relu)
        grid_spec = pltpu.PrefetchScalarGridSpec(
            num_scalar_prefetch=0,
            grid=(N // tn, K // tk),
            in_specs=[
                pl.BlockSpec((M, tk), lambda j, k: (0, k)),   # activations (bf16)
                pl.BlockSpec((tk, tn), lambda j, k: (k, j)),  # weights (bf16)
                pl.BlockSpec((1, tn), lambda j, k: (0, j)),   # bias (f32)
            ],
            out_specs=pl.BlockSpec((M, tn), lambda j, k: (0, j)),
            scratch_shapes=[pltpu.VMEM((M, tn), jnp.float32)],
        )
        dim_sem = ("parallel", "arbitrary")

    return pl.pallas_call(
        kernel,
        out_shape=jax.ShapeDtypeStruct((M, N), x.dtype),
        grid_spec=grid_spec,
        compiler_params=pltpu.CompilerParams(
            dimension_semantics=dim_sem,
            vmem_limit_bytes=vmem_limit_bytes,
        ),
    )(x, w, b2)


def _head_config():
    """Generation-aware tile sizes and scoped-VMEM limit."""
    try:
        kind = jax.devices()[0].device_kind.lower()
    except Exception:  # pragma: no cover - be robust if device query fails
        kind = ""
    if "v7" in kind:
        # 64 MiB VMEM, 2 TensorCores: keep the out-feature axis extent >= 2 so
        # it can split across cores; 14 MiB weight tiles (28 MiB dbuf).
        return dict(l1_tn=2048, l1_tk=3584, l2_tn=1024,
                    vmem_limit=48 * 1024 * 1024)
    if ("v4" in kind) or ("v5" in kind) or ("v6" in kind):
        # 128 MiB physical VMEM: full-width, fully HBM-contiguous layer-1
        # weight tiles (28 MiB each, 56 MiB double-buffered).
        return dict(l1_tn=4096, l1_tk=3584, l2_tn=2048,
                    vmem_limit=96 * 1024 * 1024)
    # Unknown / older chip: conservative tiles that fit a 16 MiB VMEM budget.
    return dict(l1_tn=512, l1_tk=3584, l2_tn=512,
                vmem_limit=32 * 1024 * 1024)


def init_linear(key, fan_in, fan_out):
    """Deterministic init matching torch.nn.Linear default: U(-1/sqrt(fan_in), +)."""
    kw, kb = jax.random.split(key)
    bound = 1.0 / jnp.sqrt(jnp.float32(fan_in))
    w = jax.random.uniform(kw, (fan_in, fan_out), jnp.float32, -bound, bound)
    b = jax.random.uniform(kb, (fan_out,), jnp.float32, -bound, bound)
    return w, b


def net_head_forward(feat_nchw, params):
    """Forward of the custom head of `Net` (dropout = identity at eval).

    params: ((w1,b1),(w2,b2),(w3,b3)) with weights already in bf16, biases f32.
    """
    (w1, b1), (w2, b2), (w3, b3) = params
    cfg = _head_config()
    n = feat_nchw.shape[0]
    # .view(N, -1) on a contiguous NCHW tensor == row-major reshape.
    x = feat_nchw.reshape(n, -1).astype(jnp.bfloat16)
    # Layer 1: 25088 -> 4096, tiled over (out-features, K).
    h1 = pallas_linear(x, w1, b1, tn=cfg["l1_tn"], tk=cfg["l1_tk"],
                       apply_relu=True, vmem_limit_bytes=cfg["vmem_limit"])
    # Layer 2: 4096 -> 4096, full-K single-pass kernel (no reduction axis).
    h2 = pallas_linear(h1, w2, b2, tn=cfg["l2_tn"], tk=w2.shape[0],
                       apply_relu=True, vmem_limit_bytes=cfg["vmem_limit"])
    # Final 4096->2 layer: 2-wide lane dim is pathological for a Pallas tile;
    # the 16 KB weight matmul is done directly (bf16 MXU, f32 accumulation).
    out = jnp.dot(h2, w3, preferred_element_type=jnp.float32) + b3
    return out


if __name__ == "__main__":
    key = jax.random.PRNGKey(0)
    k_x, k1, k2, k3 = jax.random.split(key, 4)

    # Synthetic frozen-backbone output: NCHW (N=2, C=512, H=7, W=7) -> 25088 feats.
    x = jax.random.normal(k_x, (2, 512, 7, 7), jnp.float32)

    (w1f, b1), (w2f, b2), (w3f, b3) = (
        init_linear(k1, 25088, 4096),
        init_linear(k2, 4096, 4096),
        init_linear(k3, 4096, 2),
    )
    # Stream weights in bf16; biases stay f32 (added in the f32 epilogue).
    params = (
        (w1f.astype(jnp.bfloat16), b1),
        (w2f.astype(jnp.bfloat16), b2),
        (w3f.astype(jnp.bfloat16), b3),
    )

    out = net_head_forward(x, params)
    out = jax.block_until_ready(out)
    assert out.shape == (2, 2) and out.dtype == jnp.float32

    # Apples-to-apples reference: same bf16-quantized weights/activations,
    # f32 math at HIGHEST precision (differs only in accumulation order).
    hp = jax.lax.Precision.HIGHEST
    xq = x.reshape(2, -1).astype(jnp.bfloat16).astype(jnp.float32)
    w1q = params[0][0].astype(jnp.float32)
    w2q = params[1][0].astype(jnp.float32)
    w3q = params[2][0].astype(jnp.float32)
    r = jnp.maximum(jnp.dot(xq, w1q, precision=hp) + b1, 0.0)
    r = r.astype(jnp.bfloat16).astype(jnp.float32)           # kernel emits bf16 h1
    r = jnp.maximum(jnp.dot(r, w2q, precision=hp) + b2, 0.0)
    r = r.astype(jnp.bfloat16).astype(jnp.float32)           # kernel emits bf16 h2
    r = jnp.dot(r, w3q, precision=hp) + b3
    assert jnp.allclose(out, r, rtol=1e-2, atol=1e-2), (out, r)

    print("KERNEL_OK")
</pallas_src>

<mosaic_0001>
module attributes {stable_mosaic.version = 11 : i64} {
  func.func @_linear_reduce_kernel(%arg0: i32, %arg1: i32, %arg2: memref<2x3584xbf16, #tpu.memory_space<vmem>>, %arg3: memref<3584x512xbf16, #tpu.memory_space<vmem>>, %arg4: memref<1x512xf32, #tpu.memory_space<vmem>>, %arg5: memref<2x512xbf16, #tpu.memory_space<vmem>>, %arg6: memref<2x512xf32, #tpu.memory_space<vmem>>) attributes {dimension_semantics = [#tpu.dimension_semantics<parallel>, #tpu.dimension_semantics<arbitrary>], iteration_bounds = array<i64: 8, 7>, scalar_prefetch = 0 : i64, scratch_operands = 1 : i64, tpu.core_type = #tpu.core_type<tc>, window_params = [{transform_indices = @transform_0, window_bounds = array<i64: 2, 3584>}, {transform_indices = @transform_1, window_bounds = array<i64: 3584, 512>}, {transform_indices = @transform_2, window_bounds = array<i64: 1, 512>}, {transform_indices = @transform_3, window_bounds = array<i64: 2, 512>}]} {
    %c0_i32 = arith.constant 0 : i32
    %0 = arith.cmpi eq, %arg1, %c0_i32 : i32
    %1 = arith.extui %0 : i1 to i32
    %c0_i32_0 = arith.constant 0 : i32
    %2 = arith.cmpi ne, %1, %c0_i32_0 : i32
    scf.if %2 {
      %cst_9 = arith.constant 0.000000e+00 : f32
      %12 = vector.broadcast %cst_9 : f32 to vector<2x512xf32>
      %c0_10 = arith.constant 0 : index
      %c0_11 = arith.constant 0 : index
      %13 = vector.load %arg6[%c0_10, %c0_11] : memref<2x512xf32, #tpu.memory_space<vmem>>, vector<2x512xf32>
      tpu.vector_store %arg6[%c0_10, %c0_11], %12 {strides = array<i32>} : memref<2x512xf32, #tpu.memory_space<vmem>>, vector<2x512xf32>,
    } else {
    }
    %c0 = arith.constant 0 : index
    %c0_1 = arith.constant 0 : index
    %3 = vector.load %arg6[%c0, %c0_1] : memref<2x512xf32, #tpu.memory_space<vmem>>, vector<2x512xf32>
    %c0_2 = arith.constant 0 : index
    %c0_3 = arith.constant 0 : index
    %4 = vector.load %arg2[%c0_2, %c0_3] : memref<2x3584xbf16, #tpu.memory_space<vmem>>, vector<2x3584xbf16>
    %c0_4 = arith.constant 0 : index
    %c0_5 = arith.constant 0 : index
    %5 = vector.load %arg3[%c0_4, %c0_5] : memref<3584x512xbf16, #tpu.memory_space<vmem>>, vector<3584x512xbf16>
    %cst = arith.constant dense<0.000000e+00> : vector<2x512xf32>
    %6 = tpu.matmul %4, %5, %cst {dimension_numbers = #tpu.dot_dimension_numbers<[1], [0], [0], [1], [0, 0, 1, 1], [], []>} : vector<2x3584xbf16>, vector<3584x512xbf16>, vector<2x512xf32> -> vector<2x512xf32>
    %7 = arith.addf %3, %6 : vector<2x512xf32>
    %c0_6 = arith.constant 0 : index
    %c0_7 = arith.constant 0 : index
    %8 = vector.load %arg6[%c0_6, %c0_7] : memref<2x512xf32, #tpu.memory_space<vmem>>, vector<2x512xf32>
    tpu.vector_store %arg6[%c0_6, %c0_7], %7 {strides = array<i32>} : memref<2x512xf32, #tpu.memory_space<vmem>>, vector<2x512xf32>,
    %c6_i32 = arith.constant 6 : i32
    %9 = arith.cmpi eq, %arg1, %c6_i32 : i32
    %10 = arith.extui %9 : i1 to i32
    %c0_i32_8 = arith.constant 0 : i32
    %11 = arith.cmpi ne, %10, %c0_i32_8 : i32
    scf.if %11 {
      %c0_9 = arith.constant 0 : index
      %c0_10 = arith.constant 0 : index
      %12 = vector.load %arg6[%c0_9, %c0_10] : memref<2x512xf32, #tpu.memory_space<vmem>>, vector<2x512xf32>
      %c0_11 = arith.constant 0 : index
      %c0_12 = arith.constant 0 : index
      %13 = vector.load %arg4[%c0_11, %c0_12] : memref<1x512xf32, #tpu.memory_space<vmem>>, vector<1x512xf32>
      %14 = vector.broadcast %13 : vector<1x512xf32> to vector<2x512xf32>
      %15 = arith.addf %12, %14 : vector<2x512xf32>
      %cst_13 = arith.constant 0.000000e+00 : f32
      %16 = vector.broadcast %cst_13 : f32 to vector<2x512xf32>
      %17 = arith.maximumf %15, %16 : vector<2x512xf32>
      %18 = arith.truncf %17 : vector<2x512xf32> to vector<2x512xbf16>
      %c0_14 = arith.constant 0 : index
      %c0_15 = arith.constant 0 : index
      %19 = vector.load %arg5[%c0_14, %c0_15] : memref<2x512xbf16, #tpu.memory_space<vmem>>, vector<2x512xbf16>
      tpu.vector_store %arg5[%c0_14, %c0_15], %18 {strides = array<i32>} : memref<2x512xbf16, #tpu.memory_space<vmem>>, vector<2x512xbf16>,
    } else {
    }
    return
  }
  func.func @transform_0(%arg0: i32, %arg1: i32) -> (i32, i32) {
    %c0_i32 = arith.constant 0 : i32
    %c0_i32_0 = arith.constant 0 : i32
    return %c0_i32, %arg1 : i32, i32
  }
  func.func @transform_1(%arg0: i32, %arg1: i32) -> (i32, i32) {
    %c0_i32 = arith.constant 0 : i32
    return %arg1, %arg0 : i32, i32
  }
  func.func @transform_2(%arg0: i32, %arg1: i32) -> (i32, i32) {
    %c0_i32 = arith.constant 0 : i32
    %c0_i32_0 = arith.constant 0 : i32
    return %c0_i32, %arg0 : i32, i32
  }
  func.func @transform_3(%arg0: i32, %arg1: i32) -> (i32, i32) {
    %c0_i32 = arith.constant 0 : i32
    %c0_i32_0 = arith.constant 0 : i32
    return %c0_i32, %arg0 : i32, i32
  }
}

</mosaic_0001>

<llo_original>
// kernel: tpu_custom_call.1
$region0: #{tpu_custom_call.1}
  #allocation0 [shape = 'u32[]', space=smem, size = 0x4, offset = 0x4, fixed_abs, tag = 'smem constant byte address 0x4 - core index']
  #allocation1 [shape = 'u32[144,128]{1,0:T(1,128)}', space=vmem, size = 0x12000, scoped, tag = 'internal scratch']
  #allocation2 [shape = 'f32[2,512]{1,0:T(2,128)}', space=vmem, size = 0x1000, scoped, tag = 'scratch operand']
  %s0 = inlined_call_operand.hbm [shape: bf16[2,25088], index: 0, kind: input, shape index: {}]
  %s1 = inlined_call_operand.hbm [shape: bf16[25088,4096], index: 1, kind: input, shape index: {}]
  %s2 = inlined_call_operand.hbm [shape: f32[1,4096], index: 2, kind: input, shape index: {}]
  %s3 = inlined_call_operand.hbm [shape: bf16[2,4096], index: 3, kind: output, shape index: {}]
  %s4 = sld [smem:[#allocation0]]
  $region65: #{tpu_custom_call.1} parent=0
    _
  %s6 = ssub.s32 1, %s4
  %s7 = scalar_select 0, %s6, %s4
  $region1: #{tpu_custom_call.1} parent=0
    #allocation3 [shape = 'u8[28672]{0}', space=vmem, size = 0x7000, scoped, tag = 'input window, operand 0']
    #allocation4 [shape = 's32[2]{0}', space=sflag, size = 0x8, scoped, tag = 'scoped memory for tpu_custom_call.1']
    #allocation5 [shape = 's32[2]{0}', space=sflag, size = 0x8, scoped, tag = 'scoped memory for tpu_custom_call.1']
    #allocation6 [shape = 'u8[7340032]{0}', space=vmem, size = 0x700000, scoped, tag = 'input window, operand 1']
    #allocation7 [shape = 's32[2]{0}', space=sflag, size = 0x8, scoped, tag = 'scoped memory for tpu_custom_call.1']
    #allocation8 [shape = 'u8[4096]{0}', space=vmem, size = 0x1000, scoped, tag = 'input window, operand 2']
    #allocation9 [shape = 'u8[4096]{0}', space=vmem, size = 0x1000, scoped, tag = 'output window, operand 0']
    %8 = vsyncpa [#allocation4], 0
    %s9 = scalar_lea.sflag [#allocation4], 1
    %10 = vsyncpa %s9, 0
    %11 = vsyncpa [#allocation7], 0
    %s12 = scalar_lea.sflag [#allocation7], 1
    %13 = vsyncpa %s12, 0
    %14 = vsyncpa [#allocation5], 0
    %s15 = scalar_lea.sflag [#allocation5], 1
    %16 = vsyncpa %s15, 0
    loop: start=0, step=1, limit=58
    $region2: #{tpu_custom_call.1} parent=1 // loop_pre_header
      _
    $region3: #{tpu_custom_call.1} parent=1 // loop_header
      %s18 = sphi 0, %s22
      %p19 = scmp.ge.s32.totalorder %s18, 58
      %s25 = sphi 0, %s37
      %s26 = sphi 0, %s33
      %s27 = sphi 0, %s25
      %s28 = sphi 0, %s26
      %s29 = sphi 0, %s27
      %s30 = sphi 0, %s28
      %s40 = sphi 0, %s42
      %s43 = sphi 0, %s40
      %s44 = sphi 0, %s43
      %s60 = sphi 0, %s44
      %s68 = sphi 0, %s70
      %s71 = sphi 0, %s68
      %s72 = sphi 0, %s71
      %s88 = sphi 0, %s72
      %s94 = sphi 0, %s96
      %s97 = sphi 0, %s94
      %s98 = sphi 0, %s97
      %s114 = sphi 0, %s98
      %s120 = sphi 0, %s122
      %s123 = sphi 0, %s120
      %s124 = sphi 0, %s123
      %s140 = sphi 0, %s124
    $region4: #{tpu_custom_call.1} parent=1 // loop_header_branch
      %21 = sbr.rel (%p19) target = $region8
    $region5: #{tpu_custom_call.1} parent=1 // loop_body
      %s23 = ssub.s32 %s18, 1
      %s24 = ssub.s32 %s18, 2
      %s31 = sadd.s32 1, %s26
      %p32 = scmp.ge.s32.totalorder %s31, 7
      %s33 = scalar_select %p32, 0, %s31
      %s34 = sadd.s32 1, %s25
      %s35 = scalar_select %p32, %s34, %s25
      %p36 = scmp.ge.s32.totalorder %s35, 8
      %s37 = scalar_select %p36, 0, %s35
      %s38 = ssub.s32 %s26, %s33
      %p39 = scmp.eq.s32.totalorder %s38, 0
      %s41 = sadd.s32 %s40, 1
      %s42 = scalar_select %p39, %s40, %s41
      %p45 = pneg %p39
      %p46 = scmp.eq.s32.totalorder %s18, 55
      %p47 = por %p45, %p46
      %p48 = scmp.ne.s32.totalorder %s40, %s43
      %p49 = scmp.eq.s32.totalorder %s18, 0
      %p50 = por %p48, %p49
      %p51 = scmp.ne.s32.totalorder %s40, %s43
      %p52 = scmp.eq.s32.totalorder %s23, 55
      %p53 = por %p51, %p52
      %p54 = scmp.ne.s32.totalorder %s43, %s44
      %p55 = scmp.eq.s32.totalorder %s23, 0
      %p56 = por %p54, %p55
      %p57 = scmp.ne.s32.totalorder %s43, %s44
      %p58 = scmp.eq.s32.totalorder %s24, 55
      %p59 = por %p57, %p58
      %p61 = scmp.ne.s32.totalorder %s44, %s60
      %p62 = scmp.eq.s32.totalorder %s24, 0
      %p63 = por %p61, %p62
      %s64 = ssub.s32 %s26, %s33
      %s65 = ssub.s32 %s25, %s37
      %s66 = sor.u32 %s64, %s65
      %p67 = scmp.eq.s32.totalorder %s66, 0
      %s69 = sadd.s32 %s68, 1
      %s70 = scalar_select %p67, %s68, %s69
      %p73 = pneg %p67
      %p74 = scmp.eq.s32.totalorder %s18, 55
      %p75 = por %p73, %p74
      %p76 = scmp.ne.s32.totalorder %s68, %s71
      %p77 = scmp.eq.s32.totalorder %s18, 0
      %p78 = por %p76, %p77
      %p79 = scmp.ne.s32.totalorder %s68, %s71
      %p80 = scmp.eq.s32.totalorder %s23, 55
      %p81 = por %p79, %p80
      %p82 = scmp.ne.s32.totalorder %s71, %s72
      %p83 = scmp.eq.s32.totalorder %s23, 0
      %p84 = por %p82, %p83
      %p85 = scmp.ne.s32.totalorder %s71, %s72
      %p86 = scmp.eq.s32.totalorder %s24, 55
      %p87 = por %p85, %p86
      %p89 = scmp.ne.s32.totalorder %s72, %s88
      %p90 = scmp.eq.s32.totalorder %s24, 0
      %p91 = por %p89, %p90
      %s92 = ssub.s32 %s25, %s37
      %p93 = scmp.eq.s32.totalorder %s92, 0
      %s95 = sadd.s32 %s94, 1
      %s96 = scalar_select %p93, %s94, %s95
      %p99 = pneg %p93
      %p100 = scmp.eq.s32.totalorder %s18, 55
      %p101 = por %p99, %p100
      %p102 = scmp.ne.s32.totalorder %s94, %s97
      %p103 = scmp.eq.s32.totalorder %s18, 0
      %p104 = por %p102, %p103
      %p105 = scmp.ne.s32.totalorder %s94, %s97
      %p106 = scmp.eq.s32.totalorder %s23, 55
      %p107 = por %p105, %p106
      %p108 = scmp.ne.s32.totalorder %s97, %s98
      %p109 = scmp.eq.s32.totalorder %s23, 0
      %p110 = por %p108, %p109
      %p111 = scmp.ne.s32.totalorder %s97, %s98
      %p112 = scmp.eq.s32.totalorder %s24, 55
      %p113 = por %p111, %p112
      %p115 = scmp.ne.s32.totalorder %s98, %s114
      %p116 = scmp.eq.s32.totalorder %s24, 0
      %p117 = por %p115, %p116
      %s118 = ssub.s32 %s25, %s37
      %p119 = scmp.eq.s32.totalorder %s118, 0
      %s121 = sadd.s32 %s120, 1
      %s122 = scalar_select %p119, %s120, %s121
      %p125 = pneg %p119
      %p126 = scmp.eq.s32.totalorder %s18, 55
      %p127 = por %p125, %p126
      %p128 = scmp.ne.s32.totalorder %s120, %s123
      %p129 = scmp.eq.s32.totalorder %s18, 0
      %p130 = por %p128, %p129
      %p131 = scmp.ne.s32.totalorder %s120, %s123
      %p132 = scmp.eq.s32.totalorder %s23, 55
      %p133 = por %p131, %p132
      %p134 = scmp.ne.s32.totalorder %s123, %s124
      %p135 = scmp.eq.s32.totalorder %s23, 0
      %p136 = por %p134, %p135
      %p137 = scmp.ne.s32.totalorder %s123, %s124
      %p138 = scmp.eq.s32.totalorder %s24, 55
      %p139 = por %p137, %p138
      %p141 = scmp.ne.s32.totalorder %s124, %s140
      %p142 = scmp.eq.s32.totalorder %s24, 0
      %p143 = por %p141, %p142
      %p144 = scmp.le.s32.totalorder 1, %s18
      %p145 = scmp.lt.s32.totalorder %s18, 57
      %p146 = pnand %p144, %p145
      %p147 = pneg %p146
      // Predicated region
      $region9: #{tpu_custom_call.1} parent=5 // pred_check
        _
      $region10: #{tpu_custom_call.1} parent=5 // pred_check_branch
        %149 = sbr.rel (%p146) target = $region12
      $region11: #{tpu_custom_call.1} parent=5 // pred_region
        %s150 = ssub.s32 %s18, 1
      $region12: #{tpu_custom_call.1} parent=5 // pred_fallthru
        _
      %p151 = scmp.lt.s32.totalorder %s18, 56
      // Predicated region
      $region13: #{tpu_custom_call.1} parent=5 // pred_check
        %p152 = pneg %p151
      $region14: #{tpu_custom_call.1} parent=5 // pred_check_branch
        %154 = sbr.rel (%p152) target = $region16
      $region15: #{tpu_custom_call.1} parent=5 // pred_region
        // Predicated region
        $region17: #{tpu_custom_call.1} parent=15 // pred_check
          %p155 = pneg %p50
        $region18: #{tpu_custom_call.1} parent=15 // pred_check_branch
          %157 = sbr.rel (%p155) target = $region20
        $region19: #{tpu_custom_call.1} parent=15 // pred_region
          %s158 = sand.u32 %s40, 1
          %s159 = scalar_lea.sflag [#allocation4], %s158
          %s160 = sand.u32 %s40, 1
          %s161 = smul.addr %s160, 28
          %s162 = scalar_lea.vmem [#allocation3], %s161
          %s163 = smul.u32 28, %s26
          %s165 = ssub.s32 448, 448
          %166 = vsyncadd %s159, %s165
          %s167 = smul.addr %s163, 16
          %s168 = scalar_lea.hbm %s0, %s167
          %s170 = sshll.u32 %s162, 4
          %s171 = int_to_ptr.vmem [resolvable:$true] %s170
          %173 = dma.hbm_to_vmem [thread:$0]  %s168, 448, %s171, %s159
        $region20: #{tpu_custom_call.1} parent=15 // pred_fallthru
          _
        // Predicated region
        $region21: #{tpu_custom_call.1} parent=15 // pred_check
          %p174 = pneg %p78
        $region22: #{tpu_custom_call.1} parent=15 // pred_check_branch
          %176 = sbr.rel (%p174) target = $region24
        $region23: #{tpu_custom_call.1} parent=15 // pred_region
          %s177 = sand.u32 %s18, 1
          %s178 = scalar_lea.sflag [#allocation7], %s177
          %s179 = sand.u32 %s68, 1
          %s180 = smul.addr %s179, 7168
          %s181 = scalar_lea.vmem [#allocation6], %s180
          %s182 = smul.u32 448, %s26
          %s183 = smul.u32 4, %s25
          %s185 = ssub.s32 114688, 114688
          %186 = vsyncadd %s178, %s185
          %s187 = smul.addr %s182, 32
          %s188 = sadd.s32 %s183, %s187
          %s189 = smul.addr %s188, 64
          %s190 = scalar_lea.hbm %s1, %s189
          %s191 = sshll.u32 %s181, 4
          %s192 = int_to_ptr.vmem [resolvable:$true] %s191
          %197 = dma.hbm_to_vmem [thread:$0]  %s190, 114688, %s192, %s178, 2048, 256, 16
        $region24: #{tpu_custom_call.1} parent=15 // pred_fallthru
          _
        // Predicated region
        $region25: #{tpu_custom_call.1} parent=15 // pred_check
          %p198 = pneg %p104
        $region26: #{tpu_custom_call.1} parent=15 // pred_check_branch
          %200 = sbr.rel (%p198) target = $region28
        $region27: #{tpu_custom_call.1} parent=15 // pred_region
          %s201 = sand.u32 %s18, 1
          %s202 = scalar_lea.sflag [#allocation7], %s201
          %s203 = sand.u32 %s94, 1
          %s204 = smul.addr %s203, 4
          %s205 = scalar_lea.vmem [#allocation8], %s204
          %s206 = smul.u32 4, %s25
          %s208 = ssub.s32 64, 64
          %209 = vsyncadd %s202, %s208
          %s210 = smul.addr %s206, 16
          %s211 = scalar_lea.hbm %s2, %s210
          %s213 = sshll.u32 %s205, 4
          %s214 = int_to_ptr.vmem [resolvable:$true] %s213
          %216 = dma.hbm_to_vmem [thread:$0]  %s211, 64, %s214, %s202
        $region28: #{tpu_custom_call.1} parent=15 // pred_fallthru
          _
      $region16: #{tpu_custom_call.1} parent=5 // pred_fallthru
        _
      %p217 = scmp.le.s32.totalorder 1, %s18
      %p218 = scmp.lt.s32.totalorder %s18, 57
      %p219 = pnand %p217, %p218
      %p220 = pneg %p219
      // Predicated region
      $region29: #{tpu_custom_call.1} parent=5 // pred_check
        _
      $region30: #{tpu_custom_call.1} parent=5 // pred_check_branch
        %222 = sbr.rel (%p219) target = $region32
      $region31: #{tpu_custom_call.1} parent=5 // pred_region
        %s223 = ssub.s32 %s18, 1
        %s224 = sand.u32 %s43, 1
        %s225 = scalar_lea.sflag [#allocation4], %s224
        %s226 = sand.u32 %s43, 1
        %s227 = smul.addr %s226, 28
        %s228 = scalar_lea.vmem [#allocation3], %s227
        // Predicated region
        $region33: #{tpu_custom_call.1} parent=31 // pred_check
          %p229 = pneg %p56
        $region34: #{tpu_custom_call.1} parent=31 // pred_check_branch
          %231 = sbr.rel (%p229) target = $region36
        $region35: #{tpu_custom_call.1} parent=31 // pred_region
          %232 = dma.done %s225, 448
        $region36: #{tpu_custom_call.1} parent=31 // pred_fallthru
          _
        %s233 = sand.u32 %s23, 1
        %s234 = scalar_lea.sflag [#allocation7], %s233
        %s235 = sand.u32 %s71, 1
        %s236 = smul.addr %s235, 7168
        %s237 = scalar_lea.vmem [#allocation6], %s236
        // Predicated region
        $region37: #{tpu_custom_call.1} parent=31 // pred_check
          %p238 = pneg %p84
        $region38: #{tpu_custom_call.1} parent=31 // pred_check_branch
          %240 = sbr.rel (%p238) target = $region40
        $region39: #{tpu_custom_call.1} parent=31 // pred_region
          %241 = dma.done %s234, 114688
        $region40: #{tpu_custom_call.1} parent=31 // pred_fallthru
          _
        %s242 = sand.u32 %s23, 1
        %s243 = scalar_lea.sflag [#allocation7], %s242
        %s244 = sand.u32 %s97, 1
        %s245 = smul.addr %s244, 4
        %s246 = scalar_lea.vmem [#allocation8], %s245
        // Predicated region
        $region41: #{tpu_custom_call.1} parent=31 // pred_check
          %p247 = pneg %p110
        $region42: #{tpu_custom_call.1} parent=31 // pred_check_branch
          %249 = sbr.rel (%p247) target = $region44
        $region43: #{tpu_custom_call.1} parent=31 // pred_region
          %250 = dma.done %s243, 64
        $region44: #{tpu_custom_call.1} parent=31 // pred_fallthru
          _
        %s251 = sand.u32 %s43, 1
        %s252 = scalar_lea.sflag [#allocation4], %s251
        %s253 = sand.u32 %s43, 1
        %s254 = smul.addr %s253, 28
        %s255 = scalar_lea.vmem [#allocation3], %s254
        %p256 = pneg %p56
        %p257 = pneg %p53
        %s258 = sand.u32 %s23, 1
        %s259 = scalar_lea.sflag [#allocation7], %s258
        %s260 = sand.u32 %s71, 1
        %s261 = smul.addr %s260, 7168
        %s262 = scalar_lea.vmem [#allocation6], %s261
        %p263 = pneg %p84
        %p264 = pneg %p81
        %s265 = sand.u32 %s23, 1
        %s266 = scalar_lea.sflag [#allocation7], %s265
        %s267 = sand.u32 %s97, 1
        %s268 = smul.addr %s267, 4
        %s269 = scalar_lea.vmem [#allocation8], %s268
        %p270 = pneg %p110
        %p271 = pneg %p107
        %p272 = pneg %p136
        %p273 = pneg %p133
        %s274 = sand.u32 %s123, 1
        %s275 = scalar_lea.sflag [#allocation5], %s274
        %s276 = sand.u32 %s123, 1
        %s277 = smul.addr %s276, 4
        %s278 = scalar_lea.vmem [#allocation9], %s277
        %s279 = smul.u32 28, %s28
        %s280 = smul.u32 448, %s28
        %s281 = smul.u32 4, %s27
        %s282 = smul.u32 4, %s27
        %s283 = smul.u32 4, %s27
        %p284 = scmp.eq.s32.totalorder %s28, 0
        // Predicated region
        $region45: #{tpu_custom_call.1} parent=31 // pred_check
          %p285 = pneg %p284
        $region46: #{tpu_custom_call.1} parent=31 // pred_check_branch
          %287 = sbr.rel (%p285) target = $region48
        $region47: #{tpu_custom_call.1} parent=31 // pred_region
          %288 = vst [vmem:[#allocation2] sm:$0xff] 0.0
        $region48: #{tpu_custom_call.1} parent=31 // pred_fallthru
          _
        %v289 = vld [vmem:[#allocation2] sm:$0xff]
        %v290 = vld [vmem:[%s228] sm:$0xff]
        %v291 = vld [vmem:[%s228 + $0x8] sm:$0xff]
        %v292 = vld [vmem:[%s228 + $0x10] sm:$0xff]
        %v293 = vld [vmem:[%s228 + $0x18] sm:$0xf]
        %v294 = vld [vmem:[%s237] sm:$0xff]
        %v295 = vld [vmem:[%s237 + $0x8] sm:$0xff]
        %v296 = vld [vmem:[%s237 + $0x10] sm:$0xff]
        %v297 = vld [vmem:[%s237 + $0x18] sm:$0xff]
        %v298 = vld [vmem:[%s237 + $0x20] sm:$0xff]
        %v299 = vld [vmem:[%s237 + $0x28] sm:$0xff]
        %v300 = vld [vmem:[%s237 + $0x30] sm:$0xff]
        %v301 = vld [vmem:[%s237 + $0x38] sm:$0xff]
        %v302 = vld [vmem:[%s237 + $0x40] sm:$0xff]
        %v303 = vld [vmem:[%s237 + $0x48] sm:$0xff]
        %v304 = vld [vmem:[%s237 + $0x50] sm:$0xff]
        %v305 = vld [vmem:[%s237 + $0x58] sm:$0xff]
        %v306 = vld [vmem:[%s237 + $0x60] sm:$0xff]
        %v307 = vld [vmem:[%s237 + $0x68] sm:$0xff]
        %v308 = vld [vmem:[%s237 + $0x70] sm:$0xff]
        %v309 = vld [vmem:[%s237 + $0x78] sm:$0xff]
        %v310 = vld [vmem:[%s237 + $0x80] sm:$0xff]
        %v311 = vld [vmem:[%s237 + $0x88] sm:$0xff]
        %v312 = vld [vmem:[%s237 + $0x90] sm:$0xff]
        %v313 = vld [vmem:[%s237 + $0x98] sm:$0xff]
        %v314 = vld [vmem:[%s237 + $0xa0] sm:$0xff]
        %v315 = vld [vmem:[%s237 + $0xa8] sm:$0xff]
        %v316 = vld [vmem:[%s237 + $0xb0] sm:$0xff]
        %v317 = vld [vmem:[%s237 + $0xb8] sm:$0xff]
        %v318 = vld [vmem:[%s237 + $0xc0] sm:$0xff]
        %v319 = vld [vmem:[%s237 + $0xc8] sm:$0xff]
        %v320 = vld [vmem:[%s237 + $0xd0] sm:$0xff]
        %v321 = vld [vmem:[%s237 + $0xd8] sm:$0xff]
        %v322 = vld [vmem:[%s237 + $0xe0] sm:$0xff]
        %v323 = vld [vmem:[%s237 + $0xe8] sm:$0xff]
        %v324 = vld [vmem:[%s237 + $0xf0] sm:$0xff]
        %v325 = vld [vmem:[%s237 + $0xf8] sm:$0xff]
        %v326 = vld [vmem:[%s237 + $0x100] sm:$0xff]
        %v327 = vld [vmem:[%s237 + $0x108] sm:$0xff]
        %v328 = vld [vmem:[%s237 + $0x110] sm:$0xff]
        %v329 = vld [vmem:[%s237 + $0x118] sm:$0xff]
        %v330 = vld [vmem:[%s237 + $0x120] sm:$0xff]
        %v331 = vld [vmem:[%s237 + $0x128] sm:$0xff]
        %v332 = vld [vmem:[%s237 + $0x130] sm:$0xff]
        %v333 = vld [vmem:[%s237 + $0x138] sm:$0xff]
        %v334 = vld [vmem:[%s237 + $0x140] sm:$0xff]
        %v335 = vld [vmem:[%s237 + $0x148] sm:$0xff]
        %v336 = vld [vmem:[%s237 + $0x150] sm:$0xff]
        %v337 = vld [vmem:[%s237 + $0x158] sm:$0xff]
        %v338 = vld [vmem:[%s237 + $0x160] sm:$0xff]
        %v339 = vld [vmem:[%s237 + $0x168] sm:$0xff]
        %v340 = vld [vmem:[%s237 + $0x170] sm:$0xff]
        %v341 = vld [vmem:[%s237 + $0x178] sm:$0xff]
        %v342 = vld [vmem:[%s237 + $0x180] sm:$0xff]
        %v343 = vld [vmem:[%s237 + $0x188] sm:$0xff]
        %v344 = vld [vmem:[%s237 + $0x190] sm:$0xff]
        %v345 = vld [vmem:[%s237 + $0x198] sm:$0xff]
        %v346 = vld [vmem:[%s237 + $0x1a0] sm:$0xff]
        %v347 = vld [vmem:[%s237 + $0x1a8] sm:$0xff]
        %v348 = vld [vmem:[%s237 + $0x1b0] sm:$0xff]
        %v349 = vld [vmem:[%s237 + $0x1b8] sm:$0xff]
        %v350 = vld [vmem:[%s237 + $0x1c0] sm:$0xff]
        %v351 = vld [vmem:[%s237 + $0x1c8] sm:$0xff]
        %v352 = vld [vmem:[%s237 + $0x1d0] sm:$0xff]
        %v353 = vld [vmem:[%s237 + $0x1d8] sm:$0xff]
        %v354 = vld [vmem:[%s237 + $0x1e0] sm:$0xff]
        %v355 = vld [vmem:[%s237 + $0x1e8] sm:$0xff]
        %v356 = vld [vmem:[%s237 + $0x1f0] sm:$0xff]
        %v357 = vld [vmem:[%s237 + $0x1f8] sm:$0xff]
        %v358 = vld [vmem:[%s237 + $0x200] sm:$0xff]
        %v359 = vld [vmem:[%s237 + $0x208] sm:$0xff]
        %v360 = vld [vmem:[%s237 + $0x210] sm:$0xff]
        %v361 = vld [vmem:[%s237 + $0x218] sm:$0xff]
        %v362 = vld [vmem:[%s237 + $0x220] sm:$0xff]
        %v363 = vld [vmem:[%s237 + $0x228] sm:$0xff]
        %v364 = vld [vmem:[%s237 + $0x230] sm:$0xff]
        %v365 = vld [vmem:[%s237 + $0x238] sm:$0xff]
        %v366 = vld [vmem:[%s237 + $0x240] sm:$0xff]
        %v367 = vld [vmem:[%s237 + $0x248] sm:$0xff]
        %v368 = vld [vmem:[%s237 + $0x250] sm:$0xff]
        %v369 = vld [vmem:[%s237 + $0x258] sm:$0xff]
        %v370 = vld [vmem:[%s237 + $0x260] sm:$0xff]
        %v371 = vld [vmem:[%s237 + $0x268] sm:$0xff]
        %v372 = vld [vmem:[%s237 + $0x270] sm:$0xff]
        %v373 = vld [vmem:[%s237 + $0x278] sm:$0xff]
        %v374 = vld [vmem:[%s237 + $0x280] sm:$0xff]
        %v375 = vld [vmem:[%s237 + $0x288] sm:$0xff]
        %v376 = vld [vmem:[%s237 + $0x290] sm:$0xff]
        %v377 = vld [vmem:[%s237 + $0x298] sm:$0xff]
        %v378 = vld [vmem:[%s237 + $0x2a0] sm:$0xff]
        %v379 = vld [vmem:[%s237 + $0x2a8] sm:$0xff]
        %v380 = vld [vmem:[%s237 + $0x2b0] sm:$0xff]
        %v381 = vld [vmem:[%s237 + $0x2b8] sm:$0xff]
        %v382 = vld [vmem:[%s237 + $0x2c0] sm:$0xff]
        %v383 = vld [vmem:[%s237 + $0x2c8] sm:$0xff]
        %v384 = vld [vmem:[%s237 + $0x2d0] sm:$0xff]
        %v385 = vld [vmem:[%s237 + $0x2d8] sm:$0xff]
        %v386 = vld [vmem:[%s237 + $0x2e0] sm:$0xff]
        %v387 = vld [vmem:[%s237 + $0x2e8] sm:$0xff]
        %v388 = vld [vmem:[%s237 + $0x2f0] sm:$0xff]
        %v389 = vld [vmem:[%s237 + $0x2f8] sm:$0xff]
        %v390 = vld [vmem:[%s237 + $0x300] sm:$0xff]
        %v391 = vld [vmem:[%s237 + $0x308] sm:$0xff]
        %v392 = vld [vmem:[%s237 + $0x310] sm:$0xff]
        %v393 = vld [vmem:[%s237 + $0x318] sm:$0xff]
        %v394 = vld [vmem:[%s237 + $0x320] sm:$0xff]
        %v395 = vld [vmem:[%s237 + $0x328] sm:$0xff]
        %v396 = vld [vmem:[%s237 + $0x330] sm:$0xff]
        %v397 = vld [vmem:[%s237 + $0x338] sm:$0xff]
        %v398 = vld [vmem:[%s237 + $0x340] sm:$0xff]
        %v399 = vld [vmem:[%s237 + $0x348] sm:$0xff]
        %v400 = vld [vmem:[%s237 + $0x350] sm:$0xff]
        %v401 = vld [vmem:[%s237 + $0x358] sm:$0xff]
        %v402 = vld [vmem:[%s237 + $0x360] sm:$0xff]
        %v403 = vld [vmem:[%s237 + $0x368] sm:$0xff]
        %v404 = vld [vmem:[%s237 + $0x370] sm:$0xff]
        %v405 = vld [vmem:[%s237 + $0x378] sm:$0xff]
        %v406 = vld [vmem:[%s237 + $0x380] sm:$0xff]
        %v407 = vld [vmem:[%s237 + $0x388] sm:$0xff]
        %v408 = vld [vmem:[%s237 + $0x390] sm:$0xff]
        %v409 = vld [vmem:[%s237 + $0x398] sm:$0xff]
        %v410 = vld [vmem:[%s237 + $0x3a0] sm:$0xff]
        %v411 = vld [vmem:[%s237 + $0x3a8] sm:$0xff]
        %v412 = vld [vmem:[%s237 + $0x3b0] sm:$0xff]
        %v413 = vld [vmem:[%s237 + $0x3b8] sm:$0xff]
        %v414 = vld [vmem:[%s237 + $0x3c0] sm:$0xff]
        %v415 = vld [vmem:[%s237 + $0x3c8] sm:$0xff]
        %v416 = vld [vmem:[%s237 + $0x3d0] sm:$0xff]
        %v417 = vld [vmem:[%s237 + $0x3d8] sm:$0xff]
        %v418 = vld [vmem:[%s237 + $0x3e0] sm:$0xff]
        %v419 = vld [vmem:[%s237 + $0x3e8] sm:$0xff]
        %v420 = vld [vmem:[%s237 + $0x3f0] sm:$0xff]
        %v421 = vld [vmem:[%s237 + $0x3f8] sm:$0xff]
        %v422 = vld [vmem:[%s237 + $0x400] sm:$0xff]
        %v423 = vld [vmem:[%s237 + $0x408] sm:$0xff]
        %v424 = vld [vmem:[%s237 + $0x410] sm:$0xff]
        %v425 = vld [vmem:[%s237 + $0x418] sm:$0xff]
        %v426 = vld [vmem:[%s237 + $0x420] sm:$0xff]
        %v427 = vld [vmem:[%s237 + $0x428] sm:$0xff]
        %v428 = vld [vmem:[%s237 + $0x430] sm:$0xff]
        %v429 = vld [vmem:[%s237 + $0x438] sm:$0xff]
        %v430 = vld [vmem:[%s237 + $0x440] sm:$0xff]
        %v431 = vld [vmem:[%s237 + $0x448] sm:$0xff]
        %v432 = vld [vmem:[%s237 + $0x450] sm:$0xff]
        %v433 = vld [vmem:[%s237 + $0x458] sm:$0xff]
        %v434 = vld [vmem:[%s237 + $0x460] sm:$0xff]
        %v435 = vld [vmem:[%s237 + $0x468] sm:$0xff]
        %v436 = vld [vmem:[%s237 + $0x470] sm:$0xff]
        %v437 = vld [vmem:[%s237 + $0x478] sm:$0xff]
        %v438 = vld [vmem:[%s237 + $0x480] sm:$0xff]
        %v439 = vld [vmem:[%s237 + $0x488] sm:$0xff]
        %v440 = vld [vmem:[%s237 + $0x490] sm:$0xff]
        %v441 = vld [vmem:[%s237 + $0x498] sm:$0xff]
        %v442 = vld [vmem:[%s237 + $0x4a0] sm:$0xff]
        %v443 = vld [vmem:[%s237 + $0x4a8] sm:$0xff]
        %v444 = vld [vmem:[%s237 + $0x4b0] sm:$0xff]
        %v445 = vld [vmem:[%s237 + $0x4b8] sm:$0xff]
        %v446 = vld [vmem:[%s237 + $0x4c0] sm:$0xff]
        %v447 = vld [vmem:[%s237 + $0x4c8] sm:$0xff]
        %v448 = vld [vmem:[%s237 + $0x4d0] sm:$0xff]
        %v449 = vld [vmem:[%s237 + $0x4d8] sm:$0xff]
        %v450 = vld [vmem:[%s237 + $0x4e0] sm:$0xff]
        %v451 = vld [vmem:[%s237 + $0x4e8] sm:$0xff]
        %v452 = vld [vmem:[%s237 + $0x4f0] sm:$0xff]
        %v453 = vld [vmem:[%s237 + $0x4f8] sm:$0xff]
        %v454 = vld [vmem:[%s237 + $0x500] sm:$0xff]
        %v455 = vld [vmem:[%s237 + $0x508] sm:$0xff]
        %v456 = vld [vmem:[%s237 + $0x510] sm:$0xff]
        %v457 = vld [vmem:[%s237 + $0x518] sm:$0xff]
        %v458 = vld [vmem:[%s237 + $0x520] sm:$0xff]
        %v459 = vld [vmem:[%s237 + $0x528] sm:$0xff]
        %v460 = vld [vmem:[%s237 + $0x530] sm:$0xff]
        %v461 = vld [vmem:[%s237 + $0x538] sm:$0xff]
        %v462 = vld [vmem:[%s237 + $0x540] sm:$0xff]
        %v463 = vld [vmem:[%s237 + $0x548] sm:$0xff]
        %v464 = vld [vmem:[%s237 + $0x550] sm:$0xff]
        %v465 = vld [vmem:[%s237 + $0x558] sm:$0xff]
        %v466 = vld [vmem:[%s237 + $0x560] sm:$0xff]
        %v467 = vld [vmem:[%s237 + $0x568] sm:$0xff]
        %v468 = vld [vmem:[%s237 + $0x570] sm:$0xff]
        %v469 = vld [vmem:[%s237 + $0x578] sm:$0xff]
        %v470 = vld [vmem:[%s237 + $0x580] sm:$0xff]
        %v471 = vld [vmem:[%s237 + $0x588] sm:$0xff]
        %v472 = vld [vmem:[%s237 + $0x590] sm:$0xff]
        %v473 = vld [vmem:[%s237 + $0x598] sm:$0xff]
        %v474 = vld [vmem:[%s237 + $0x5a0] sm:$0xff]
        %v475 = vld [vmem:[%s237 + $0x5a8] sm:$0xff]
        %v476 = vld [vmem:[%s237 + $0x5b0] sm:$0xff]
        %v477 = vld [vmem:[%s237 + $0x5b8] sm:$0xff]
        %v478 = vld [vmem:[%s237 + $0x5c0] sm:$0xff]
        %v479 = vld [vmem:[%s237 + $0x5c8] sm:$0xff]
        %v480 = vld [vmem:[%s237 + $0x5d0] sm:$0xff]
        %v481 = vld [vmem:[%s237 + $0x5d8] sm:$0xff]
        %v482 = vld [vmem:[%s237 + $0x5e0] sm:$0xff]
        %v483 = vld [vmem:[%s237 + $0x5e8] sm:$0xff]
        %v484 = vld [vmem:[%s237 + $0x5f0] sm:$0xff]
        %v485 = vld [vmem:[%s237 + $0x5f8] sm:$0xff]
        %v486 = vld [vmem:[%s237 + $0x600] sm:$0xff]
        %v487 = vld [vmem:[%s237 + $0x608] sm:$0xff]
        %v488 = vld [vmem:[%s237 + $0x610] sm:$0xff]
        %v489 = vld [vmem:[%s237 + $0x618] sm:$0xff]
        %v490 = vld [vmem:[%s237 + $0x620] sm:$0xff]
        %v491 = vld [vmem:[%s237 + $0x628] sm:$0xff]
        %v492 = vld [vmem:[%s237 + $0x630] sm:$0xff]
        %v493 = vld [vmem:[%s237 + $0x638] sm:$0xff]
        %v494 = vld [vmem:[%s237 + $0x640] sm:$0xff]
        %v495 = vld [vmem:[%s237 + $0x648] sm:$0xff]
        %v496 = vld [vmem:[%s237 + $0x650] sm:$0xff]
        %v497 = vld [vmem:[%s237 + $0x658] sm:$0xff]
        %v498 = vld [vmem:[%s237 + $0x660] sm:$0xff]
        %v499 = vld [vmem:[%s237 + $0x668] sm:$0xff]
        %v500 = vld [vmem:[%s237 + $0x670] sm:$0xff]
        %v501 = vld [vmem:[%s237 + $0x678] sm:$0xff]
        %v502 = vld [vmem:[%s237 + $0x680] sm:$0xff]
        %v503 = vld [vmem:[%s237 + $0x688] sm:$0xff]
        %v504 = vld [vmem:[%s237 + $0x690] sm:$0xff]
        %v505 = vld [vmem:[%s237 + $0x698] sm:$0xff]
        %v506 = vld [vmem:[%s237 + $0x6a0] sm:$0xff]
        %v507 = vld [vmem:[%s237 + $0x6a8] sm:$0xff]
        %v508 = vld [vmem:[%s237 + $0x6b0] sm:$0xff]
        %v509 = vld [vmem:[%s237 + $0x6b8] sm:$0xff]
        %v510 = vld [vmem:[%s237 + $0x6c0] sm:$0xff]
        %v511 = vld [vmem:[%s237 + $0x6c8] sm:$0xff]
        %v512 = vld [vmem:[%s237 + $0x6d0] sm:$0xff]
        %v513 = vld [vmem:[%s237 + $0x6d8] sm:$0xff]
        %v514 = vld [vmem:[%s237 + $0x6e0] sm:$0xff]
        %v515 = vld [vmem:[%s237 + $0x6e8] sm:$0xff]
        %v516 = vld [vmem:[%s237 + $0x6f0] sm:$0xff]
        %v517 = vld [vmem:[%s237 + $0x6f8] sm:$0xff]
        %v518 = vld [vmem:[%s237 + $0x700] sm:$0xff]
        %v519 = vld [vmem:[%s237 + $0x708] sm:$0xff]
        %v520 = vld [vmem:[%s237 + $0x710] sm:$0xff]
        %v521 = vld [vmem:[%s237 + $0x718] sm:$0xff]
        %v522 = vld [vmem:[%s237 + $0x720] sm:$0xff]
        %v523 = vld [vmem:[%s237 + $0x728] sm:$0xff]
        %v524 = vld [vmem:[%s237 + $0x730] sm:$0xff]
        %v525 = vld [vmem:[%s237 + $0x738] sm:$0xff]
        %v526 = vld [vmem:[%s237 + $0x740] sm:$0xff]
        %v527 = vld [vmem:[%s237 + $0x748] sm:$0xff]
        %v528 = vld [vmem:[%s237 + $0x750] sm:$0xff]
        %v529 = vld [vmem:[%s237 + $0x758] sm:$0xff]
        %v530 = vld [vmem:[%s237 + $0x760] sm:$0xff]
        %v531 = vld [vmem:[%s237 + $0x768] sm:$0xff]
        %v532 = vld [vmem:[%s237 + $0x770] sm:$0xff]
        %v533 = vld [vmem:[%s237 + $0x778] sm:$0xff]
        %v534 = vld [vmem:[%s237 + $0x780] sm:$0xff]
        %v535 = vld [vmem:[%s237 + $0x788] sm:$0xff]
        %v536 = vld [vmem:[%s237 + $0x790] sm:$0xff]
        %v537 = vld [vmem:[%s237 + $0x798] sm:$0xff]
        %v538 = vld [vmem:[%s237 + $0x7a0] sm:$0xff]
        %v539 = vld [vmem:[%s237 + $0x7a8] sm:$0xff]
        %v540 = vld [vmem:[%s237 + $0x7b0] sm:$0xff]
        %v541 = vld [vmem:[%s237 + $0x7b8] sm:$0xff]
        %v542 = vld [vmem:[%s237 + $0x7c0] sm:$0xff]
        %v543 = vld [vmem:[%s237 + $0x7c8] sm:$0xff]
        %v544 = vld [vmem:[%s237 + $0x7d0] sm:$0xff]
        %v545 = vld [vmem:[%s237 + $0x7d8] sm:$0xff]
        %v546 = vld [vmem:[%s237 + $0x7e0] sm:$0xff]
        %v547 = vld [vmem:[%s237 + $0x7e8] sm:$0xff]
        %v548 = vld [vmem:[%s237 + $0x7f0] sm:$0xff]
        %v549 = vld [vmem:[%s237 + $0x7f8] sm:$0xff]
        %v550 = vld [vmem:[%s237 + $0x800] sm:$0xff]
        %v551 = vld [vmem:[%s237 + $0x808] sm:$0xff]
        %v552 = vld [vmem:[%s237 + $0x810] sm:$0xff]
        %v553 = vld [vmem:[%s237 + $0x818] sm:$0xff]
        %v554 = vld [vmem:[%s237 + $0x820] sm:$0xff]
        %v555 = vld [vmem:[%s237 + $0x828] sm:$0xff]
        %v556 = vld [vmem:[%s237 + $0x830] sm:$0xff]
        %v557 = vld [vmem:[%s237 + $0x838] sm:$0xff]
        %v558 = vld [vmem:[%s237 + $0x840] sm:$0xff]
        %v559 = vld [vmem:[%s237 + $0x848] sm:$0xff]
        %v560 = vld [vmem:[%s237 + $0x850] sm:$0xff]
        %v561 = vld [vmem:[%s237 + $0x858] sm:$0xff]
        %v562 = vld [vmem:[%s237 + $0x860] sm:$0xff]
        %v563 = vld [vmem:[%s237 + $0x868] sm:$0xff]
        %v564 = vld [vmem:[%s237 + $0x870] sm:$0xff]
        %v565 = vld [vmem:[%s237 + $0x878] sm:$0xff]
        %v566 = vld [vmem:[%s237 + $0x880] sm:$0xff]
        %v567 = vld [vmem:[%s237 + $0x888] sm:$0xff]
        %v568 = vld [vmem:[%s237 + $0x890] sm:$0xff]
        %v569 = vld [vmem:[%s237 + $0x898] sm:$0xff]
        %v570 = vld [vmem:[%s237 + $0x8a0] sm:$0xff]
        %v571 = vld [vmem:[%s237 + $0x8a8] sm:$0xff]
        %v572 = vld [vmem:[%s237 + $0x8b0] sm:$0xff]
        %v573 = vld [vmem:[%s237 + $0x8b8] sm:$0xff]
        %v574 = vld [vmem:[%s237 + $0x8c0] sm:$0xff]
        %v575 = vld [vmem:[%s237 + $0x8c8] sm:$0xff]
        %v576 = vld [vmem:[%s237 + $0x8d0] sm:$0xff]
        %v577 = vld [vmem:[%s237 + $0x8d8] sm:$0xff]
        %v578 = vld [vmem:[%s237 + $0x8e0] sm:$0xff]
        %v579 = vld [vmem:[%s237 + $0x8e8] sm:$0xff]
        %v580 = vld [vmem:[%s237 + $0x8f0] sm:$0xff]
        %v581 = vld [vmem:[%s237 + $0x8f8] sm:$0xff]
        %v582 = vld [vmem:[%s237 + $0x900] sm:$0xff]
        %v583 = vld [vmem:[%s237 + $0x908] sm:$0xff]
        %v584 = vld [vmem:[%s237 + $0x910] sm:$0xff]
        %v585 = vld [vmem:[%s237 + $0x918] sm:$0xff]
        %v586 = vld [vmem:[%s237 + $0x920] sm:$0xff]
        %v587 = vld [vmem:[%s237 + $0x928] sm:$0xff]
        %v588 = vld [vmem:[%s237 + $0x930] sm:$0xff]
        %v589 = vld [vmem:[%s237 + $0x938] sm:$0xff]
        %v590 = vld [vmem:[%s237 + $0x940] sm:$0xff]
        %v591 = vld [vmem:[%s237 + $0x948] sm:$0xff]
        %v592 = vld [vmem:[%s237 + $0x950] sm:$0xff]
        %v593 = vld [vmem:[%s237 + $0x958] sm:$0xff]
        %v594 = vld [vmem:[%s237 + $0x960] sm:$0xff]
        %v595 = vld [vmem:[%s237 + $0x968] sm:$0xff]
        %v596 = vld [vmem:[%s237 + $0x970] sm:$0xff]
        %v597 = vld [vmem:[%s237 + $0x978] sm:$0xff]
        %v598 = vld [vmem:[%s237 + $0x980] sm:$0xff]
        %v599 = vld [vmem:[%s237 + $0x988] sm:$0xff]
        %v600 = vld [vmem:[%s237 + $0x990] sm:$0xff]
        %v601 = vld [vmem:[%s237 + $0x998] sm:$0xff]
        %v602 = vld [vmem:[%s237 + $0x9a0] sm:$0xff]
        %v603 = vld [vmem:[%s237 + $0x9a8] sm:$0xff]
        %v604 = vld [vmem:[%s237 + $0x9b0] sm:$0xff]
        %v605 = vld [vmem:[%s237 + $0x9b8] sm:$0xff]
        %v606 = vld [vmem:[%s237 + $0x9c0] sm:$0xff]
        %v607 = vld [vmem:[%s237 + $0x9c8] sm:$0xff]
        %v608 = vld [vmem:[%s237 + $0x9d0] sm:$0xff]
        %v609 = vld [vmem:[%s237 + $0x9d8] sm:$0xff]
        %v610 = vld [vmem:[%s237 + $0x9e0] sm:$0xff]
        %v611 = vld [vmem:[%s237 + $0x9e8] sm:$0xff]
        %v612 = vld [vmem:[%s237 + $0x9f0] sm:$0xff]
        %v613 = vld [vmem:[%s237 + $0x9f8] sm:$0xff]
        %v614 = vld [vmem:[%s237 + $0xa00] sm:$0xff]
        %v615 = vld [vmem:[%s237 + $0xa08] sm:$0xff]
        %v616 = vld [vmem:[%s237 + $0xa10] sm:$0xff]
        %v617 = vld [vmem:[%s237 + $0xa18] sm:$0xff]
        %v618 = vld [vmem:[%s237 + $0xa20] sm:$0xff]
        %v619 = vld [vmem:[%s237 + $0xa28] sm:$0xff]
        %v620 = vld [vmem:[%s237 + $0xa30] sm:$0xff]
        %v621 = vld [vmem:[%s237 + $0xa38] sm:$0xff]
        %v622 = vld [vmem:[%s237 + $0xa40] sm:$0xff]
        %v623 = vld [vmem:[%s237 + $0xa48] sm:$0xff]
        %v624 = vld [vmem:[%s237 + $0xa50] sm:$0xff]
        %v625 = vld [vmem:[%s237 + $0xa58] sm:$0xff]
        %v626 = vld [vmem:[%s237 + $0xa60] sm:$0xff]
        %v627 = vld [vmem:[%s237 + $0xa68] sm:$0xff]
        %v628 = vld [vmem:[%s237 + $0xa70] sm:$0xff]
        %v629 = vld [vmem:[%s237 + $0xa78] sm:$0xff]
        %v630 = vld [vmem:[%s237 + $0xa80] sm:$0xff]
        %v631 = vld [vmem:[%s237 + $0xa88] sm:$0xff]
        %v632 = vld [vmem:[%s237 + $0xa90] sm:$0xff]
        %v633 = vld [vmem:[%s237 + $0xa98] sm:$0xff]
        %v634 = vld [vmem:[%s237 + $0xaa0] sm:$0xff]
        %v635 = vld [vmem:[%s237 + $0xaa8] sm:$0xff]
        %v636 = vld [vmem:[%s237 + $0xab0] sm:$0xff]
        %v637 = vld [vmem:[%s237 + $0xab8] sm:$0xff]
        %v638 = vld [vmem:[%s237 + $0xac0] sm:$0xff]
        %v639 = vld [vmem:[%s237 + $0xac8] sm:$0xff]
        %v640 = vld [vmem:[%s237 + $0xad0] sm:$0xff]
        %v641 = vld [vmem:[%s237 + $0xad8] sm:$0xff]
        %v642 = vld [vmem:[%s237 + $0xae0] sm:$0xff]
        %v643 = vld [vmem:[%s237 + $0xae8] sm:$0xff]
        %v644 = vld [vmem:[%s237 + $0xaf0] sm:$0xff]
        %v645 = vld [vmem:[%s237 + $0xaf8] sm:$0xff]
        %v646 = vld [vmem:[%s237 + $0xb00] sm:$0xff]
        %v647 = vld [vmem:[%s237 + $0xb08] sm:$0xff]
        %v648 = vld [vmem:[%s237 + $0xb10] sm:$0xff]
        %v649 = vld [vmem:[%s237 + $0xb18] sm:$0xff]
        %v650 = vld [vmem:[%s237 + $0xb20] sm:$0xff]
        %v651 = vld [vmem:[%s237 + $0xb28] sm:$0xff]
        %v652 = vld [vmem:[%s237 + $0xb30] sm:$0xff]
        %v653 = vld [vmem:[%s237 + $0xb38] sm:$0xff]
        %v654 = vld [vmem:[%s237 + $0xb40] sm:$0xff]
        %v655 = vld [vmem:[%s237 + $0xb48] sm:$0xff]
        %v656 = vld [vmem:[%s237 + $0xb50] sm:$0xff]
        %v657 = vld [vmem:[%s237 + $0xb58] sm:$0xff]
        %v658 = vld [vmem:[%s237 + $0xb60] sm:$0xff]
        %v659 = vld [vmem:[%s237 + $0xb68] sm:$0xff]
        %v660 = vld [vmem:[%s237 + $0xb70] sm:$0xff]
        %v661 = vld [vmem:[%s237 + $0xb78] sm:$0xff]
        %v662 = vld [vmem:[%s237 + $0xb80] sm:$0xff]
        %v663 = vld [vmem:[%s237 + $0xb88] sm:$0xff]
        %v664 = vld [vmem:[%s237 + $0xb90] sm:$0xff]
        %v665 = vld [vmem:[%s237 + $0xb98] sm:$0xff]
        %v666 = vld [vmem:[%s237 + $0xba0] sm:$0xff]
        %v667 = vld [vmem:[%s237 + $0xba8] sm:$0xff]
        %v668 = vld [vmem:[%s237 + $0xbb0] sm:$0xff]
        %v669 = vld [vmem:[%s237 + $0xbb8] sm:$0xff]
        %v670 = vld [vmem:[%s237 + $0xbc0] sm:$0xff]
        %v671 = vld [vmem:[%s237 + $0xbc8] sm:$0xff]
        %v672 = vld [vmem:[%s237 + $0xbd0] sm:$0xff]
        %v673 = vld [vmem:[%s237 + $0xbd8] sm:$0xff]
        %v674 = vld [vmem:[%s237 + $0xbe0] sm:$0xff]
        %v675 = vld [vmem:[%s237 + $0xbe8] sm:$0xff]
        %v676 = vld [vmem:[%s237 + $0xbf0] sm:$0xff]
        %v677 = vld [vmem:[%s237 + $0xbf8] sm:$0xff]
        %v678 = vld [vmem:[%s237 + $0xc00] sm:$0xff]
        %v679 = vld [vmem:[%s237 + $0xc08] sm:$0xff]
        %v680 = vld [vmem:[%s237 + $0xc10] sm:$0xff]
        %v681 = vld [vmem:[%s237 + $0xc18] sm:$0xff]
        %v682 = vld [vmem:[%s237 + $0xc20] sm:$0xff]
        %v683 = vld [vmem:[%s237 + $0xc28] sm:$0xff]
        %v684 = vld [vmem:[%s237 + $0xc30] sm:$0xff]
        %v685 = vld [vmem:[%s237 + $0xc38] sm:$0xff]
        %v686 = vld [vmem:[%s237 + $0xc40] sm:$0xff]
        %v687 = vld [vmem:[%s237 + $0xc48] sm:$0xff]
        %v688 = vld [vmem:[%s237 + $0xc50] sm:$0xff]
        %v689 = vld [vmem:[%s237 + $0xc58] sm:$0xff]
        %v690 = vld [vmem:[%s237 + $0xc60] sm:$0xff]
        %v691 = vld [vmem:[%s237 + $0xc68] sm:$0xff]
        %v692 = vld [vmem:[%s237 + $0xc70] sm:$0xff]
        %v693 = vld [vmem:[%s237 + $0xc78] sm:$0xff]
        %v694 = vld [vmem:[%s237 + $0xc80] sm:$0xff]
        %v695 = vld [vmem:[%s237 + $0xc88] sm:$0xff]
        %v696 = vld [vmem:[%s237 + $0xc90] sm:$0xff]
        %v697 = vld [vmem:[%s237 + $0xc98] sm:$0xff]
        %v698 = vld [vmem:[%s237 + $0xca0] sm:$0xff]
        %v699 = vld [vmem:[%s237 + $0xca8] sm:$0xff]
        %v700 = vld [vmem:[%s237 + $0xcb0] sm:$0xff]
        %v701 = vld [vmem:[%s237 + $0xcb8] sm:$0xff]
        %v702 = vld [vmem:[%s237 + $0xcc0] sm:$0xff]
        %v703 = vld [vmem:[%s237 + $0xcc8] sm:$0xff]
        %v704 = vld [vmem:[%s237 + $0xcd0] sm:$0xff]
        %v705 = vld [vmem:[%s237 + $0xcd8] sm:$0xff]
        %v706 = vld [vmem:[%s237 + $0xce0] sm:$0xff]
        %v707 = vld [vmem:[%s237 + $0xce8] sm:$0xff]
        %v708 = vld [vmem:[%s237 + $0xcf0] sm:$0xff]
        %v709 = vld [vmem:[%s237 + $0xcf8] sm:$0xff]
        %v710 = vld [vmem:[%s237 + $0xd00] sm:$0xff]
        %v711 = vld [vmem:[%s237 + $0xd08] sm:$0xff]
        %v712 = vld [vmem:[%s237 + $0xd10] sm:$0xff]
        %v713 = vld [vmem:[%s237 + $0xd18] sm:$0xff]
        %v714 = vld [vmem:[%s237 + $0xd20] sm:$0xff]
        %v715 = vld [vmem:[%s237 + $0xd28] sm:$0xff]
        %v716 = vld [vmem:[%s237 + $0xd30] sm:$0xff]
        %v717 = vld [vmem:[%s237 + $0xd38] sm:$0xff]
        %v718 = vld [vmem:[%s237 + $0xd40] sm:$0xff]
        %v719 = vld [vmem:[%s237 + $0xd48] sm:$0xff]
        %v720 = vld [vmem:[%s237 + $0xd50] sm:$0xff]
        %v721 = vld [vmem:[%s237 + $0xd58] sm:$0xff]
        %v722 = vld [vmem:[%s237 + $0xd60] sm:$0xff]
        %v723 = vld [vmem:[%s237 + $0xd68] sm:$0xff]
        %v724 = vld [vmem:[%s237 + $0xd70] sm:$0xff]
        %v725 = vld [vmem:[%s237 + $0xd78] sm:$0xff]
        %v726 = vld [vmem:[%s237 + $0xd80] sm:$0xff]
        %v727 = vld [vmem:[%s237 + $0xd88] sm:$0xff]
        %v728 = vld [vmem:[%s237 + $0xd90] sm:$0xff]
        %v729 = vld [vmem:[%s237 + $0xd98] sm:$0xff]
        %v730 = vld [vmem:[%s237 + $0xda0] sm:$0xff]
        %v731 = vld [vmem:[%s237 + $0xda8] sm:$0xff]
        %v732 = vld [vmem:[%s237 + $0xdb0] sm:$0xff]
        %v733 = vld [vmem:[%s237 + $0xdb8] sm:$0xff]
        %v734 = vld [vmem:[%s237 + $0xdc0] sm:$0xff]
        %v735 = vld [vmem:[%s237 + $0xdc8] sm:$0xff]
        %v736 = vld [vmem:[%s237 + $0xdd0] sm:$0xff]
        %v737 = vld [vmem:[%s237 + $0xdd8] sm:$0xff]
        %v738 = vld [vmem:[%s237 + $0xde0] sm:$0xff]
        %v739 = vld [vmem:[%s237 + $0xde8] sm:$0xff]
        %v740 = vld [vmem:[%s237 + $0xdf0] sm:$0xff]
        %v741 = vld [vmem:[%s237 + $0xdf8] sm:$0xff]
        %v742 = vld [vmem:[%s237 + $0xe00] sm:$0xff]
        %v743 = vld [vmem:[%s237 + $0xe08] sm:$0xff]
        %v744 = vld [vmem:[%s237 + $0xe10] sm:$0xff]
        %v745 = vld [vmem:[%s237 + $0xe18] sm:$0xff]
        %v746 = vld [vmem:[%s237 + $0xe20] sm:$0xff]
        %v747 = vld [vmem:[%s237 + $0xe28] sm:$0xff]
        %v748 = vld [vmem:[%s237 + $0xe30] sm:$0xff]
        %v749 = vld [vmem:[%s237 + $0xe38] sm:$0xff]
        %v750 = vld [vmem:[%s237 + $0xe40] sm:$0xff]
        %v751 = vld [vmem:[%s237 + $0xe48] sm:$0xff]
        %v752 = vld [vmem:[%s237 + $0xe50] sm:$0xff]
        %v753 = vld [vmem:[%s237 + $0xe58] sm:$0xff]
        %v754 = vld [vmem:[%s237 + $0xe60] sm:$0xff]
        %v755 = vld [vmem:[%s237 + $0xe68] sm:$0xff]
        %v756 = vld [vmem:[%s237 + $0xe70] sm:$0xff]
        %v757 = vld [vmem:[%s237 + $0xe78] sm:$0xff]
        %v758 = vld [vmem:[%s237 + $0xe80] sm:$0xff]
        %v759 = vld [vmem:[%s237 + $0xe88] sm:$0xff]
        %v760 = vld [vmem:[%s237 + $0xe90] sm:$0xff]
        %v761 = vld [vmem:[%s237 + $0xe98] sm:$0xff]
        %v762 = vld [vmem:[%s237 + $0xea0] sm:$0xff]
        %v763 = vld [vmem:[%s237 + $0xea8] sm:$0xff]
        %v764 = vld [vmem:[%s237 + $0xeb0] sm:$0xff]
        %v765 = vld [vmem:[%s237 + $0xeb8] sm:$0xff]
        %v766 = vld [vmem:[%s237 + $0xec0] sm:$0xff]
        %v767 = vld [vmem:[%s237 + $0xec8] sm:$0xff]
        %v768 = vld [vmem:[%s237 + $0xed0] sm:$0xff]
        %v769 = vld [vmem:[%s237 + $0xed8] sm:$0xff]
        %v770 = vld [vmem:[%s237 + $0xee0] sm:$0xff]
        %v771 = vld [vmem:[%s237 + $0xee8] sm:$0xff]
        %v772 = vld [vmem:[%s237 + $0xef0] sm:$0xff]
        %v773 = vld [vmem:[%s237 + $0xef8] sm:$0xff]
        %v774 = vld [vmem:[%s237 + $0xf00] sm:$0xff]
        %v775 = vld [vmem:[%s237 + $0xf08] sm:$0xff]
        %v776 = vld [vmem:[%s237 + $0xf10] sm:$0xff]
        %v777 = vld [vmem:[%s237 + $0xf18] sm:$0xff]
        %v778 = vld [vmem:[%s237 + $0xf20] sm:$0xff]
        %v779 = vld [vmem:[%s237 + $0xf28] sm:$0xff]
        %v780 = vld [vmem:[%s237 + $0xf30] sm:$0xff]
        %v781 = vld [vmem:[%s237 + $0xf38] sm:$0xff]
        %v782 = vld [vmem:[%s237 + $0xf40] sm:$0xff]
        %v783 = vld [vmem:[%s237 + $0xf48] sm:$0xff]
        %v784 = vld [vmem:[%s237 + $0xf50] sm:$0xff]
        %v785 = vld [vmem:[%s237 + $0xf58] sm:$0xff]
        %v786 = vld [vmem:[%s237 + $0xf60] sm:$0xff]
        %v787 = vld [vmem:[%s237 + $0xf68] sm:$0xff]
        %v788 = vld [vmem:[%s237 + $0xf70] sm:$0xff]
        %v789 = vld [vmem:[%s237 + $0xf78] sm:$0xff]
        %v790 = vld [vmem:[%s237 + $0xf80] sm:$0xff]
        %v791 = vld [vmem:[%s237 + $0xf88] sm:$0xff]
        %v792 = vld [vmem:[%s237 + $0xf90] sm:$0xff]
        %v793 = vld [vmem:[%s237 + $0xf98] sm:$0xff]
        %v794 = vld [vmem:[%s237 + $0xfa0] sm:$0xff]
        %v795 = vld [vmem:[%s237 + $0xfa8] sm:$0xff]
        %v796 = vld [vmem:[%s237 + $0xfb0] sm:$0xff]
        %v797 = vld [vmem:[%s237 + $0xfb8] sm:$0xff]
        %v798 = vld [vmem:[%s237 + $0xfc0] sm:$0xff]
        %v799 = vld [vmem:[%s237 + $0xfc8] sm:$0xff]
        %v800 = vld [vmem:[%s237 + $0xfd0] sm:$0xff]
        %v801 = vld [vmem:[%s237 + $0xfd8] sm:$0xff]
        %v802 = vld [vmem:[%s237 + $0xfe0] sm:$0xff]
        %v803 = vld [vmem:[%s237 + $0xfe8] sm:$0xff]
        %v804 = vld [vmem:[%s237 + $0xff0] sm:$0xff]
        %v805 = vld [vmem:[%s237 + $0xff8] sm:$0xff]
        %v806 = vld [vmem:[%s237 + $0x1000] sm:$0xff]
        %v807 = vld [vmem:[%s237 + $0x1008] sm:$0xff]
        %v808 = vld [vmem:[%s237 + $0x1010] sm:$0xff]
        %v809 = vld [vmem:[%s237 + $0x1018] sm:$0xff]
        %v810 = vld [vmem:[%s237 + $0x1020] sm:$0xff]
        %v811 = vld [vmem:[%s237 + $0x1028] sm:$0xff]
        %v812 = vld [vmem:[%s237 + $0x1030] sm:$0xff]
        %v813 = vld [vmem:[%s237 + $0x1038] sm:$0xff]
        %v814 = vld [vmem:[%s237 + $0x1040] sm:$0xff]
        %v815 = vld [vmem:[%s237 + $0x1048] sm:$0xff]
        %v816 = vld [vmem:[%s237 + $0x1050] sm:$0xff]
        %v817 = vld [vmem:[%s237 + $0x1058] sm:$0xff]
        %v818 = vld [vmem:[%s237 + $0x1060] sm:$0xff]
        %v819 = vld [vmem:[%s237 + $0x1068] sm:$0xff]
        %v820 = vld [vmem:[%s237 + $0x1070] sm:$0xff]
        %v821 = vld [vmem:[%s237 + $0x1078] sm:$0xff]
        %v822 = vld [vmem:[%s237 + $0x1080] sm:$0xff]
        %v823 = vld [vmem:[%s237 + $0x1088] sm:$0xff]
        %v824 = vld [vmem:[%s237 + $0x1090] sm:$0xff]
        %v825 = vld [vmem:[%s237 + $0x1098] sm:$0xff]
        %v826 = vld [vmem:[%s237 + $0x10a0] sm:$0xff]
        %v827 = vld [vmem:[%s237 + $0x10a8] sm:$0xff]
        %v828 = vld [vmem:[%s237 + $0x10b0] sm:$0xff]
        %v829 = vld [vmem:[%s237 + $0x10b8] sm:$0xff]
        %v830 = vld [vmem:[%s237 + $0x10c0] sm:$0xff]
        %v831 = vld [vmem:[%s237 + $0x10c8] sm:$0xff]
        %v832 = vld [vmem:[%s237 + $0x10d0] sm:$0xff]
        %v833 = vld [vmem:[%s237 + $0x10d8] sm:$0xff]
        %v834 = vld [vmem:[%s237 + $0x10e0] sm:$0xff]
        %v835 = vld [vmem:[%s237 + $0x10e8] sm:$0xff]
        %v836 = vld [vmem:[%s237 + $0x10f0] sm:$0xff]
        %v837 = vld [vmem:[%s237 + $0x10f8] sm:$0xff]
        %v838 = vld [vmem:[%s237 + $0x1100] sm:$0xff]
        %v839 = vld [vmem:[%s237 + $0x1108] sm:$0xff]
        %v840 = vld [vmem:[%s237 + $0x1110] sm:$0xff]
        %v841 = vld [vmem:[%s237 + $0x1118] sm:$0xff]
        %v842 = vld [vmem:[%s237 + $0x1120] sm:$0xff]
        %v843 = vld [vmem:[%s237 + $0x1128] sm:$0xff]
        %v844 = vld [vmem:[%s237 + $0x1130] sm:$0xff]
        %v845 = vld [vmem:[%s237 + $0x1138] sm:$0xff]
        %v846 = vld [vmem:[%s237 + $0x1140] sm:$0xff]
        %v847 = vld [vmem:[%s237 + $0x1148] sm:$0xff]
        %v848 = vld [vmem:[%s237 + $0x1150] sm:$0xff]
        %v849 = vld [vmem:[%s237 + $0x1158] sm:$0xff]
        %v850 = vld [vmem:[%s237 + $0x1160] sm:$0xff]
        %v851 = vld [vmem:[%s237 + $0x1168] sm:$0xff]
        %v852 = vld [vmem:[%s237 + $0x1170] sm:$0xff]
        %v853 = vld [vmem:[%s237 + $0x1178] sm:$0xff]
        %v854 = vld [vmem:[%s237 + $0x1180] sm:$0xff]
        %v855 = vld [vmem:[%s237 + $0x1188] sm:$0xff]
        %v856 = vld [vmem:[%s237 + $0x1190] sm:$0xff]
        %v857 = vld [vmem:[%s237 + $0x1198] sm:$0xff]
        %v858 = vld [vmem:[%s237 + $0x11a0] sm:$0xff]
        %v859 = vld [vmem:[%s237 + $0x11a8] sm:$0xff]
        %v860 = vld [vmem:[%s237 + $0x11b0] sm:$0xff]
        %v861 = vld [vmem:[%s237 + $0x11b8] sm:$0xff]
        %v862 = vld [vmem:[%s237 + $0x11c0] sm:$0xff]
        %v863 = vld [vmem:[%s237 + $0x11c8] sm:$0xff]
        %v864 = vld [vmem:[%s237 + $0x11d0] sm:$0xff]
        %v865 = vld [vmem:[%s237 + $0x11d8] sm:$0xff]
        %v866 = vld [vmem:[%s237 + $0x11e0] sm:$0xff]
        %v867 = vld [vmem:[%s237 + $0x11e8] sm:$0xff]
        %v868 = vld [vmem:[%s237 + $0x11f0] sm:$0xff]
        %v869 = vld [vmem:[%s237 + $0x11f8] sm:$0xff]
        %v870 = vld [vmem:[%s237 + $0x1200] sm:$0xff]
        %v871 = vld [vmem:[%s237 + $0x1208] sm:$0xff]
        %v872 = vld [vmem:[%s237 + $0x1210] sm:$0xff]
        %v873 = vld [vmem:[%s237 + $0x1218] sm:$0xff]
        %v874 = vld [vmem:[%s237 + $0x1220] sm:$0xff]
        %v875 = vld [vmem:[%s237 + $0x1228] sm:$0xff]
        %v876 = vld [vmem:[%s237 + $0x1230] sm:$0xff]
        %v877 = vld [vmem:[%s237 + $0x1238] sm:$0xff]
        %v878 = vld [vmem:[%s237 + $0x1240] sm:$0xff]
        %v879 = vld [vmem:[%s237 + $0x1248] sm:$0xff]
        %v880 = vld [vmem:[%s237 + $0x1250] sm:$0xff]
        %v881 = vld [vmem:[%s237 + $0x1258] sm:$0xff]
        %v882 = vld [vmem:[%s237 + $0x1260] sm:$0xff]
        %v883 = vld [vmem:[%s237 + $0x1268] sm:$0xff]
        %v884 = vld [vmem:[%s237 + $0x1270] sm:$0xff]
        %v885 = vld [vmem:[%s237 + $0x1278] sm:$0xff]
        %v886 = vld [vmem:[%s237 + $0x1280] sm:$0xff]
        %v887 = vld [vmem:[%s237 + $0x1288] sm:$0xff]
        %v888 = vld [vmem:[%s237 + $0x1290] sm:$0xff]
        %v889 = vld [vmem:[%s237 + $0x1298] sm:$0xff]
        %v890 = vld [vmem:[%s237 + $0x12a0] sm:$0xff]
        %v891 = vld [vmem:[%s237 + $0x12a8] sm:$0xff]
        %v892 = vld [vmem:[%s237 + $0x12b0] sm:$0xff]
        %v893 = vld [vmem:[%s237 + $0x12b8] sm:$0xff]
        %v894 = vld [vmem:[%s237 + $0x12c0] sm:$0xff]
        %v895 = vld [vmem:[%s237 + $0x12c8] sm:$0xff]
        %v896 = vld [vmem:[%s237 + $0x12d0] sm:$0xff]
        %v897 = vld [vmem:[%s237 + $0x12d8] sm:$0xff]
        %v898 = vld [vmem:[%s237 + $0x12e0] sm:$0xff]
        %v899 = vld [vmem:[%s237 + $0x12e8] sm:$0xff]
        %v900 = vld [vmem:[%s237 + $0x12f0] sm:$0xff]
        %v901 = vld [vmem:[%s237 + $0x12f8] sm:$0xff]
        %v902 = vld [vmem:[%s237 + $0x1300] sm:$0xff]
        %v903 = vld [vmem:[%s237 + $0x1308] sm:$0xff]
        %v904 = vld [vmem:[%s237 + $0x1310] sm:$0xff]
        %v905 = vld [vmem:[%s237 + $0x1318] sm:$0xff]
        %v906 = vld [vmem:[%s237 + $0x1320] sm:$0xff]
        %v907 = vld [vmem:[%s237 + $0x1328] sm:$0xff]
        %v908 = vld [vmem:[%s237 + $0x1330] sm:$0xff]
        %v909 = vld [vmem:[%s237 + $0x1338] sm:$0xff]
        %v910 = vld [vmem:[%s237 + $0x1340] sm:$0xff]
        %v911 = vld [vmem:[%s237 + $0x1348] sm:$0xff]
        %v912 = vld [vmem:[%s237 + $0x1350] sm:$0xff]
        %v913 = vld [vmem:[%s237 + $0x1358] sm:$0xff]
        %v914 = vld [vmem:[%s237 + $0x1360] sm:$0xff]
        %v915 = vld [vmem:[%s237 + $0x1368] sm:$0xff]
        %v916 = vld [vmem:[%s237 + $0x1370] sm:$0xff]
        %v917 = vld [vmem:[%s237 + $0x1378] sm:$0xff]
        %v918 = vld [vmem:[%s237 + $0x1380] sm:$0xff]
        %v919 = vld [vmem:[%s237 + $0x1388] sm:$0xff]
        %v920 = vld [vmem:[%s237 + $0x1390] sm:$0xff]
        %v921 = vld [vmem:[%s237 + $0x1398] sm:$0xff]
        %v922 = vld [vmem:[%s237 + $0x13a0] sm:$0xff]
        %v923 = vld [vmem:[%s237 + $0x13a8] sm:$0xff]
        %v924 = vld [vmem:[%s237 + $0x13b0] sm:$0xff]
        %v925 = vld [vmem:[%s237 + $0x13b8] sm:$0xff]
        %v926 = vld [vmem:[%s237 + $0x13c0] sm:$0xff]
        %v927 = vld [vmem:[%s237 + $0x13c8] sm:$0xff]
        %v928 = vld [vmem:[%s237 + $0x13d0] sm:$0xff]
        %v929 = vld [vmem:[%s237 + $0x13d8] sm:$0xff]
        %v930 = vld [vmem:[%s237 + $0x13e0] sm:$0xff]
        %v931 = vld [vmem:[%s237 + $0x13e8] sm:$0xff]
        %v932 = vld [vmem:[%s237 + $0x13f0] sm:$0xff]
        %v933 = vld [vmem:[%s237 + $0x13f8] sm:$0xff]
        %v934 = vld [vmem:[%s237 + $0x1400] sm:$0xff]
        %v935 = vld [vmem:[%s237 + $0x1408] sm:$0xff]
        %v936 = vld [vmem:[%s237 + $0x1410] sm:$0xff]
        %v937 = vld [vmem:[%s237 + $0x1418] sm:$0xff]
        %v938 = vld [vmem:[%s237 + $0x1420] sm:$0xff]
        %v939 = vld [vmem:[%s237 + $0x1428] sm:$0xff]
        %v940 = vld [vmem:[%s237 + $0x1430] sm:$0xff]
        %v941 = vld [vmem:[%s237 + $0x1438] sm:$0xff]
        %v942 = vld [vmem:[%s237 + $0x1440] sm:$0xff]
        %v943 = vld [vmem:[%s237 + $0x1448] sm:$0xff]
        %v944 = vld [vmem:[%s237 + $0x1450] sm:$0xff]
        %v945 = vld [vmem:[%s237 + $0x1458] sm:$0xff]
        %v946 = vld [vmem:[%s237 + $0x1460] sm:$0xff]
        %v947 = vld [vmem:[%s237 + $0x1468] sm:$0xff]
        %v948 = vld [vmem:[%s237 + $0x1470] sm:$0xff]
        %v949 = vld [vmem:[%s237 + $0x1478] sm:$0xff]
        %v950 = vld [vmem:[%s237 + $0x1480] sm:$0xff]
        %v951 = vld [vmem:[%s237 + $0x1488] sm:$0xff]
        %v952 = vld [vmem:[%s237 + $0x1490] sm:$0xff]
        %v953 = vld [vmem:[%s237 + $0x1498] sm:$0xff]
        %v954 = vld [vmem:[%s237 + $0x14a0] sm:$0xff]
        %v955 = vld [vmem:[%s237 + $0x14a8] sm:$0xff]
        %v956 = vld [vmem:[%s237 + $0x14b0] sm:$0xff]
        %v957 = vld [vmem:[%s237 + $0x14b8] sm:$0xff]
        %v958 = vld [vmem:[%s237 + $0x14c0] sm:$0xff]
        %v959 = vld [vmem:[%s237 + $0x14c8] sm:$0xff]
        %v960 = vld [vmem:[%s237 + $0x14d0] sm:$0xff]
        %v961 = vld [vmem:[%s237 + $0x14d8] sm:$0xff]
        %v962 = vld [vmem:[%s237 + $0x14e0] sm:$0xff]
        %v963 = vld [vmem:[%s237 + $0x14e8] sm:$0xff]
        %v964 = vld [vmem:[%s237 + $0x14f0] sm:$0xff]
        %v965 = vld [vmem:[%s237 + $0x14f8] sm:$0xff]
        %v966 = vld [vmem:[%s237 + $0x1500] sm:$0xff]
        %v967 = vld [vmem:[%s237 + $0x1508] sm:$0xff]
        %v968 = vld [vmem:[%s237 + $0x1510] sm:$0xff]
        %v969 = vld [vmem:[%s237 + $0x1518] sm:$0xff]
        %v970 = vld [vmem:[%s237 + $0x1520] sm:$0xff]
        %v971 = vld [vmem:[%s237 + $0x1528] sm:$0xff]
        %v972 = vld [vmem:[%s237 + $0x1530] sm:$0xff]
        %v973 = vld [vmem:[%s237 + $0x1538] sm:$0xff]
        %v974 = vld [vmem:[%s237 + $0x1540] sm:$0xff]
        %v975 = vld [vmem:[%s237 + $0x1548] sm:$0xff]
        %v976 = vld [vmem:[%s237 + $0x1550] sm:$0xff]
        %v977 = vld [vmem:[%s237 + $0x1558] sm:$0xff]
        %v978 = vld [vmem:[%s237 + $0x1560] sm:$0xff]
        %v979 = vld [vmem:[%s237 + $0x1568] sm:$0xff]
        %v980 = vld [vmem:[%s237 + $0x1570] sm:$0xff]
        %v981 = vld [vmem:[%s237 + $0x1578] sm:$0xff]
        %v982 = vld [vmem:[%s237 + $0x1580] sm:$0xff]
        %v983 = vld [vmem:[%s237 + $0x1588] sm:$0xff]
        %v984 = vld [vmem:[%s237 + $0x1590] sm:$0xff]
        %v985 = vld [vmem:[%s237 + $0x1598] sm:$0xff]
        %v986 = vld [vmem:[%s237 + $0x15a0] sm:$0xff]
        %v987 = vld [vmem:[%s237 + $0x15a8] sm:$0xff]
        %v988 = vld [vmem:[%s237 + $0x15b0] sm:$0xff]
        %v989 = vld [vmem:[%s237 + $0x15b8] sm:$0xff]
        %v990 = vld [vmem:[%s237 + $0x15c0] sm:$0xff]
        %v991 = vld [vmem:[%s237 + $0x15c8] sm:$0xff]
        %v992 = vld [vmem:[%s237 + $0x15d0] sm:$0xff]
        %v993 = vld [vmem:[%s237 + $0x15d8] sm:$0xff]
        %v994 = vld [vmem:[%s237 + $0x15e0] sm:$0xff]
        %v995 = vld [vmem:[%s237 + $0x15e8] sm:$0xff]
        %v996 = vld [vmem:[%s237 + $0x15f0] sm:$0xff]
        %v997 = vld [vmem:[%s237 + $0x15f8] sm:$0xff]
        %v998 = vld [vmem:[%s237 + $0x1600] sm:$0xff]
        %v999 = vld [vmem:[%s237 + $0x1608] sm:$0xff]
        %v1000 = vld [vmem:[%s237 + $0x1610] sm:$0xff]
        %v1001 = vld [vmem:[%s237 + $0x1618] sm:$0xff]
        %v1002 = vld [vmem:[%s237 + $0x1620] sm:$0xff]
        %v1003 = vld [vmem:[%s237 + $0x1628] sm:$0xff]
        %v1004 = vld [vmem:[%s237 + $0x1630] sm:$0xff]
        %v1005 = vld [vmem:[%s237 + $0x1638] sm:$0xff]
        %v1006 = vld [vmem:[%s237 + $0x1640] sm:$0xff]
        %v1007 = vld [vmem:[%s237 + $0x1648] sm:$0xff]
        %v1008 = vld [vmem:[%s237 + $0x1650] sm:$0xff]
        %v1009 = vld [vmem:[%s237 + $0x1658] sm:$0xff]
        %v1010 = vld [vmem:[%s237 + $0x1660] sm:$0xff]
        %v1011 = vld [vmem:[%s237 + $0x1668] sm:$0xff]
        %v1012 = vld [vmem:[%s237 + $0x1670] sm:$0xff]
        %v1013 = vld [vmem:[%s237 + $0x1678] sm:$0xff]
        %v1014 = vld [vmem:[%s237 + $0x1680] sm:$0xff]
        %v1015 = vld [vmem:[%s237 + $0x1688] sm:$0xff]
        %v1016 = vld [vmem:[%s237 + $0x1690] sm:$0xff]
        %v1017 = vld [vmem:[%s237 + $0x1698] sm:$0xff]
        %v1018 = vld [vmem:[%s237 + $0x16a0] sm:$0xff]
        %v1019 = vld [vmem:[%s237 + $0x16a8] sm:$0xff]
        %v1020 = vld [vmem:[%s237 + $0x16b0] sm:$0xff]
        %v1021 = vld [vmem:[%s237 + $0x16b8] sm:$0xff]
        %v1022 = vld [vmem:[%s237 + $0x16c0] sm:$0xff]
        %v1023 = vld [vmem:[%s237 + $0x16c8] sm:$0xff]
        %v1024 = vld [vmem:[%s237 + $0x16d0] sm:$0xff]
        %v1025 = vld [vmem:[%s237 + $0x16d8] sm:$0xff]
        %v1026 = vld [vmem:[%s237 + $0x16e0] sm:$0xff]
        %v1027 = vld [vmem:[%s237 + $0x16e8] sm:$0xff]
        %v1028 = vld [vmem:[%s237 + $0x16f0] sm:$0xff]
        %v1029 = vld [vmem:[%s237 + $0x16f8] sm:$0xff]
        %v1030 = vld [vmem:[%s237 + $0x1700] sm:$0xff]
        %v1031 = vld [vmem:[%s237 + $0x1708] sm:$0xff]
        %v1032 = vld [vmem:[%s237 + $0x1710] sm:$0xff]
        %v1033 = vld [vmem:[%s237 + $0x1718] sm:$0xff]
        %v1034 = vld [vmem:[%s237 + $0x1720] sm:$0xff]
        %v1035 = vld [vmem:[%s237 + $0x1728] sm:$0xff]
        %v1036 = vld [vmem:[%s237 + $0x1730] sm:$0xff]
        %v1037 = vld [vmem:[%s237 + $0x1738] sm:$0xff]
        %v1038 = vld [vmem:[%s237 + $0x1740] sm:$0xff]
        %v1039 = vld [vmem:[%s237 + $0x1748] sm:$0xff]
        %v1040 = vld [vmem:[%s237 + $0x1750] sm:$0xff]
        %v1041 = vld [vmem:[%s237 + $0x1758] sm:$0xff]
        %v1042 = vld [vmem:[%s237 + $0x1760] sm:$0xff]
        %v1043 = vld [vmem:[%s237 + $0x1768] sm:$0xff]
        %v1044 = vld [vmem:[%s237 + $0x1770] sm:$0xff]
        %v1045 = vld [vmem:[%s237 + $0x1778] sm:$0xff]
        %v1046 = vld [vmem:[%s237 + $0x1780] sm:$0xff]
        %v1047 = vld [vmem:[%s237 + $0x1788] sm:$0xff]
        %v1048 = vld [vmem:[%s237 + $0x1790] sm:$0xff]
        %v1049 = vld [vmem:[%s237 + $0x1798] sm:$0xff]
        %v1050 = vld [vmem:[%s237 + $0x17a0] sm:$0xff]
        %v1051 = vld [vmem:[%s237 + $0x17a8] sm:$0xff]
        %v1052 = vld [vmem:[%s237 + $0x17b0] sm:$0xff]
        %v1053 = vld [vmem:[%s237 + $0x17b8] sm:$0xff]
        %v1054 = vld [vmem:[%s237 + $0x17c0] sm:$0xff]
        %v1055 = vld [vmem:[%s237 + $0x17c8] sm:$0xff]
        %v1056 = vld [vmem:[%s237 + $0x17d0] sm:$0xff]
        %v1057 = vld [vmem:[%s237 + $0x17d8] sm:$0xff]
        %v1058 = vld [vmem:[%s237 + $0x17e0] sm:$0xff]
        %v1059 = vld [vmem:[%s237 + $0x17e8] sm:$0xff]
        %v1060 = vld [vmem:[%s237 + $0x17f0] sm:$0xff]
        %v1061 = vld [vmem:[%s237 + $0x17f8] sm:$0xff]
        %v1062 = vld [vmem:[%s237 + $0x1800] sm:$0xff]
        %v1063 = vld [vmem:[%s237 + $0x1808] sm:$0xff]
        %v1064 = vld [vmem:[%s237 + $0x1810] sm:$0xff]
        %v1065 = vld [vmem:[%s237 + $0x1818] sm:$0xff]
        %v1066 = vld [vmem:[%s237 + $0x1820] sm:$0xff]
        %v1067 = vld [vmem:[%s237 + $0x1828] sm:$0xff]
        %v1068 = vld [vmem:[%s237 + $0x1830] sm:$0xff]
        %v1069 = vld [vmem:[%s237 + $0x1838] sm:$0xff]
        %v1070 = vld [vmem:[%s237 + $0x1840] sm:$0xff]
        %v1071 = vld [vmem:[%s237 + $0x1848] sm:$0xff]
        %v1072 = vld [vmem:[%s237 + $0x1850] sm:$0xff]
        %v1073 = vld [vmem:[%s237 + $0x1858] sm:$0xff]
        %v1074 = vld [vmem:[%s237 + $0x1860] sm:$0xff]
        %v1075 = vld [vmem:[%s237 + $0x1868] sm:$0xff]
        %v1076 = vld [vmem:[%s237 + $0x1870] sm:$0xff]
        %v1077 = vld [vmem:[%s237 + $0x1878] sm:$0xff]
        %v1078 = vld [vmem:[%s237 + $0x1880] sm:$0xff]
        %v1079 = vld [vmem:[%s237 + $0x1888] sm:$0xff]
        %v1080 = vld [vmem:[%s237 + $0x1890] sm:$0xff]
        %v1081 = vld [vmem:[%s237 + $0x1898] sm:$0xff]
        %v1082 = vld [vmem:[%s237 + $0x18a0] sm:$0xff]
        %v1083 = vld [vmem:[%s237 + $0x18a8] sm:$0xff]
        %v1084 = vld [vmem:[%s237 + $0x18b0] sm:$0xff]
        %v1085 = vld [vmem:[%s237 + $0x18b8] sm:$0xff]
        %v1086 = vld [vmem:[%s237 + $0x18c0] sm:$0xff]
        %v1087 = vld [vmem:[%s237 + $0x18c8] sm:$0xff]
        %v1088 = vld [vmem:[%s237 + $0x18d0] sm:$0xff]
        %v1089 = vld [vmem:[%s237 + $0x18d8] sm:$0xff]
        %v1090 = vld [vmem:[%s237 + $0x18e0] sm:$0xff]
        %v1091 = vld [vmem:[%s237 + $0x18e8] sm:$0xff]
        %v1092 = vld [vmem:[%s237 + $0x18f0] sm:$0xff]
        %v1093 = vld [vmem:[%s237 + $0x18f8] sm:$0xff]
        %v1094 = vld [vmem:[%s237 + $0x1900] sm:$0xff]
        %v1095 = vld [vmem:[%s237 + $0x1908] sm:$0xff]
        %v1096 = vld [vmem:[%s237 + $0x1910] sm:$0xff]
        %v1097 = vld [vmem:[%s237 + $0x1918] sm:$0xff]
        %v1098 = vld [vmem:[%s237 + $0x1920] sm:$0xff]
        %v1099 = vld [vmem:[%s237 + $0x1928] sm:$0xff]
        %v1100 = vld [vmem:[%s237 + $0x1930] sm:$0xff]
        %v1101 = vld [vmem:[%s237 + $0x1938] sm:$0xff]
        %v1102 = vld [vmem:[%s237 + $0x1940] sm:$0xff]
        %v1103 = vld [vmem:[%s237 + $0x1948] sm:$0xff]
        %v1104 = vld [vmem:[%s237 + $0x1950] sm:$0xff]
        %v1105 = vld [vmem:[%s237 + $0x1958] sm:$0xff]
        %v1106 = vld [vmem:[%s237 + $0x1960] sm:$0xff]
        %v1107 = vld [vmem:[%s237 + $0x1968] sm:$0xff]
        %v1108 = vld [vmem:[%s237 + $0x1970] sm:$0xff]
        %v1109 = vld [vmem:[%s237 + $0x1978] sm:$0xff]
        %v1110 = vld [vmem:[%s237 + $0x1980] sm:$0xff]
        %v1111 = vld [vmem:[%s237 + $0x1988] sm:$0xff]
        %v1112 = vld [vmem:[%s237 + $0x1990] sm:$0xff]
        %v1113 = vld [vmem:[%s237 + $0x1998] sm:$0xff]
        %v1114 = vld [vmem:[%s237 + $0x19a0] sm:$0xff]
        %v1115 = vld [vmem:[%s237 + $0x19a8] sm:$0xff]
        %v1116 = vld [vmem:[%s237 + $0x19b0] sm:$0xff]
        %v1117 = vld [vmem:[%s237 + $0x19b8] sm:$0xff]
        %v1118 = vld [vmem:[%s237 + $0x19c0] sm:$0xff]
        %v1119 = vld [vmem:[%s237 + $0x19c8] sm:$0xff]
        %v1120 = vld [vmem:[%s237 + $0x19d0] sm:$0xff]
        %v1121 = vld [vmem:[%s237 + $0x19d8] sm:$0xff]
        %v1122 = vld [vmem:[%s237 + $0x19e0] sm:$0xff]
        %v1123 = vld [vmem:[%s237 + $0x19e8] sm:$0xff]
        %v1124 = vld [vmem:[%s237 + $0x19f0] sm:$0xff]
        %v1125 = vld [vmem:[%s237 + $0x19f8] sm:$0xff]
        %v1126 = vld [vmem:[%s237 + $0x1a00] sm:$0xff]
        %v1127 = vld [vmem:[%s237 + $0x1a08] sm:$0xff]
        %v1128 = vld [vmem:[%s237 + $0x1a10] sm:$0xff]
        %v1129 = vld [vmem:[%s237 + $0x1a18] sm:$0xff]
        %v1130 = vld [vmem:[%s237 + $0x1a20] sm:$0xff]
        %v1131 = vld [vmem:[%s237 + $0x1a28] sm:$0xff]
        %v1132 = vld [vmem:[%s237 + $0x1a30] sm:$0xff]
        %v1133 = vld [vmem:[%s237 + $0x1a38] sm:$0xff]
        %v1134 = vld [vmem:[%s237 + $0x1a40] sm:$0xff]
        %v1135 = vld [vmem:[%s237 + $0x1a48] sm:$0xff]
        %v1136 = vld [vmem:[%s237 + $0x1a50] sm:$0xff]
        %v1137 = vld [vmem:[%s237 + $0x1a58] sm:$0xff]
        %v1138 = vld [vmem:[%s237 + $0x1a60] sm:$0xff]
        %v1139 = vld [vmem:[%s237 + $0x1a68] sm:$0xff]
        %v1140 = vld [vmem:[%s237 + $0x1a70] sm:$0xff]
        %v1141 = vld [vmem:[%s237 + $0x1a78] sm:$0xff]
        %v1142 = vld [vmem:[%s237 + $0x1a80] sm:$0xff]
        %v1143 = vld [vmem:[%s237 + $0x1a88] sm:$0xff]
        %v1144 = vld [vmem:[%s237 + $0x1a90] sm:$0xff]
        %v1145 = vld [vmem:[%s237 + $0x1a98] sm:$0xff]
        %v1146 = vld [vmem:[%s237 + $0x1aa0] sm:$0xff]
        %v1147 = vld [vmem:[%s237 + $0x1aa8] sm:$0xff]
        %v1148 = vld [vmem:[%s237 + $0x1ab0] sm:$0xff]
        %v1149 = vld [vmem:[%s237 + $0x1ab8] sm:$0xff]
        %v1150 = vld [vmem:[%s237 + $0x1ac0] sm:$0xff]
        %v1151 = vld [vmem:[%s237 + $0x1ac8] sm:$0xff]
        %v1152 = vld [vmem:[%s237 + $0x1ad0] sm:$0xff]
        %v1153 = vld [vmem:[%s237 + $0x1ad8] sm:$0xff]
        %v1154 = vld [vmem:[%s237 + $0x1ae0] sm:$0xff]
        %v1155 = vld [vmem:[%s237 + $0x1ae8] sm:$0xff]
        %v1156 = vld [vmem:[%s237 + $0x1af0] sm:$0xff]
        %v1157 = vld [vmem:[%s237 + $0x1af8] sm:$0xff]
        %v1158 = vld [vmem:[%s237 + $0x1b00] sm:$0xff]
        %v1159 = vld [vmem:[%s237 + $0x1b08] sm:$0xff]
        %v1160 = vld [vmem:[%s237 + $0x1b10] sm:$0xff]
        %v1161 = vld [vmem:[%s237 + $0x1b18] sm:$0xff]
        %v1162 = vld [vmem:[%s237 + $0x1b20] sm:$0xff]
        %v1163 = vld [vmem:[%s237 + $0x1b28] sm:$0xff]
        %v1164 = vld [vmem:[%s237 + $0x1b30] sm:$0xff]
        %v1165 = vld [vmem:[%s237 + $0x1b38] sm:$0xff]
        %v1166 = vld [vmem:[%s237 + $0x1b40] sm:$0xff]
        %v1167 = vld [vmem:[%s237 + $0x1b48] sm:$0xff]
        %v1168 = vld [vmem:[%s237 + $0x1b50] sm:$0xff]
        %v1169 = vld [vmem:[%s237 + $0x1b58] sm:$0xff]
        %v1170 = vld [vmem:[%s237 + $0x1b60] sm:$0xff]
        %v1171 = vld [vmem:[%s237 + $0x1b68] sm:$0xff]
        %v1172 = vld [vmem:[%s237 + $0x1b70] sm:$0xff]
        %v1173 = vld [vmem:[%s237 + $0x1b78] sm:$0xff]
        %v1174 = vld [vmem:[%s237 + $0x1b80] sm:$0xff]
        %v1175 = vld [vmem:[%s237 + $0x1b88] sm:$0xff]
        %v1176 = vld [vmem:[%s237 + $0x1b90] sm:$0xff]
        %v1177 = vld [vmem:[%s237 + $0x1b98] sm:$0xff]
        %v1178 = vld [vmem:[%s237 + $0x1ba0] sm:$0xff]
        %v1179 = vld [vmem:[%s237 + $0x1ba8] sm:$0xff]
        %v1180 = vld [vmem:[%s237 + $0x1bb0] sm:$0xff]
        %v1181 = vld [vmem:[%s237 + $0x1bb8] sm:$0xff]
        %v1182 = vld [vmem:[%s237 + $0x1bc0] sm:$0xff]
        %v1183 = vld [vmem:[%s237 + $0x1bc8] sm:$0xff]
        %v1184 = vld [vmem:[%s237 + $0x1bd0] sm:$0xff]
        %v1185 = vld [vmem:[%s237 + $0x1bd8] sm:$0xff]
        %v1186 = vld [vmem:[%s237 + $0x1be0] sm:$0xff]
        %v1187 = vld [vmem:[%s237 + $0x1be8] sm:$0xff]
        %v1188 = vld [vmem:[%s237 + $0x1bf0] sm:$0xff]
        %v1189 = vld [vmem:[%s237 + $0x1bf8] sm:$0xff]
        %v1194 = vcombine.high %v290, %v290
        %v1196 = vunpack.c.l.s4 1966171168
        %v1197 = vunpack.c.0.s8 %v1196
        %v1198 = vlaneseq
        %v1199 = vshrl.u32 %v1198, 7
        %v1200 = vsub.s32 %v1197, %v1199
        %v1201 = vrot.slane %v290, %v1200
        %v1203 = vunpack.c.l.s4 1966171168
        %v1204 = vunpack.c.0.s8 %v1203
        %v1205 = vlaneseq
        %v1206 = vshrl.u32 %v1205, 7
        %v1207 = vsub.s32 %v1204, %v1206
        %v1208 = vrot.slane %v1194, %v1207
        %v1209 = vcombine.high %v1201, %v1201
        %v1210 = vcombine.high %v1208, %v1208
        %v1212 = vunpack.c.l.s4 1966171168
        %v1213 = vunpack.c.0.s8 %v1212
        %v1214 = vlaneseq
        %v1215 = vshrl.u32 %v1214, 7
        %v1216 = vsub.s32 %v1213, %v1215
        %v1217 = vrot.slane %v1201, %v1216
        %v1219 = vunpack.c.l.s4 1966171168
        %v1220 = vunpack.c.0.s8 %v1219
        %v1221 = vlaneseq
        %v1222 = vshrl.u32 %v1221, 7
        %v1223 = vsub.s32 %v1220, %v1222
        %v1224 = vrot.slane %v1208, %v1223
        %v1226 = vunpack.c.l.s4 1966171168
        %v1227 = vunpack.c.0.s8 %v1226
        %v1228 = vlaneseq
        %v1229 = vshrl.u32 %v1228, 7
        %v1230 = vsub.s32 %v1227, %v1229
        %v1231 = vrot.slane %v1209, %v1230
        %v1233 = vunpack.c.l.s4 1966171168
        %v1234 = vunpack.c.0.s8 %v1233
        %v1235 = vlaneseq
        %v1236 = vshrl.u32 %v1235, 7
        %v1237 = vsub.s32 %v1234, %v1236
        %v1238 = vrot.slane %v1210, %v1237
        %v1239 = vcombine.high %v1217, %v1217
        %v1240 = vcombine.high %v1224, %v1224
        %v1241 = vcombine.high %v1231, %v1231
        %v1242 = vcombine.high %v1238, %v1238
        %v1243 = vcombine.high %v291, %v291
        %v1245 = vunpack.c.l.s4 1966171168
        %v1246 = vunpack.c.0.s8 %v1245
        %v1247 = vlaneseq
        %v1248 = vshrl.u32 %v1247, 7
        %v1249 = vsub.s32 %v1246, %v1248
        %v1250 = vrot.slane %v291, %v1249
        %v1252 = vunpack.c.l.s4 1966171168
        %v1253 = vunpack.c.0.s8 %v1252
        %v1254 = vlaneseq
        %v1255 = vshrl.u32 %v1254, 7
        %v1256 = vsub.s32 %v1253, %v1255
        %v1257 = vrot.slane %v1243, %v1256
        %v1258 = vcombine.high %v1250, %v1250
        %v1259 = vcombine.high %v1257, %v1257
        %v1261 = vunpack.c.l.s4 1966171168
        %v1262 = vunpack.c.0.s8 %v1261
        %v1263 = vlaneseq
        %v1264 = vshrl.u32 %v1263, 7
        %v1265 = vsub.s32 %v1262, %v1264
        %v1266 = vrot.slane %v1250, %v1265
        %v1268 = vunpack.c.l.s4 1966171168
        %v1269 = vunpack.c.0.s8 %v1268
        %v1270 = vlaneseq
        %v1271 = vshrl.u32 %v1270, 7
        %v1272 = vsub.s32 %v1269, %v1271
        %v1273 = vrot.slane %v1257, %v1272
        %v1275 = vunpack.c.l.s4 1966171168
        %v1276 = vunpack.c.0.s8 %v1275
        %v1277 = vlaneseq
        %v1278 = vshrl.u32 %v1277, 7
        %v1279 = vsub.s32 %v1276, %v1278
        %v1280 = vrot.slane %v1258, %v1279
        %v1282 = vunpack.c.l.s4 1966171168
        %v1283 = vunpack.c.0.s8 %v1282
        %v1284 = vlaneseq
        %v1285 = vshrl.u32 %v1284, 7
        %v1286 = vsub.s32 %v1283, %v1285
        %v1287 = vrot.slane %v1259, %v1286
        %v1288 = vcombine.high %v1266, %v1266
        %v1289 = vcombine.high %v1273, %v1273
        %v1290 = vcombine.high %v1280, %v1280
        %v1291 = vcombine.high %v1287, %v1287
        %v1292 = vcombine.high %v292, %v292
        %v1294 = vunpack.c.l.s4 1966171168
        %v1295 = vunpack.c.0.s8 %v1294
        %v1296 = vlaneseq
        %v1297 = vshrl.u32 %v1296, 7
        %v1298 = vsub.s32 %v1295, %v1297
        %v1299 = vrot.slane %v292, %v1298
        %v1301 = vunpack.c.l.s4 1966171168
        %v1302 = vunpack.c.0.s8 %v1301
        %v1303 = vlaneseq
        %v1304 = vshrl.u32 %v1303, 7
        %v1305 = vsub.s32 %v1302, %v1304
        %v1306 = vrot.slane %v1292, %v1305
        %v1307 = vcombine.high %v1299, %v1299
        %v1308 = vcombine.high %v1306, %v1306
        %v1310 = vunpack.c.l.s4 1966171168
        %v1311 = vunpack.c.0.s8 %v1310
        %v1312 = vlaneseq
        %v1313 = vshrl.u32 %v1312, 7
        %v1314 = vsub.s32 %v1311, %v1313
        %v1315 = vrot.slane %v1299, %v1314
        %v1317 = vunpack.c.l.s4 1966171168
        %v1318 = vunpack.c.0.s8 %v1317
        %v1319 = vlaneseq
        %v1320 = vshrl.u32 %v1319, 7
        %v1321 = vsub.s32 %v1318, %v1320
        %v1322 = vrot.slane %v1306, %v1321
        %v1324 = vunpack.c.l.s4 1966171168
        %v1325 = vunpack.c.0.s8 %v1324
        %v1326 = vlaneseq
        %v1327 = vshrl.u32 %v1326, 7
        %v1328 = vsub.s32 %v1325, %v1327
        %v1329 = vrot.slane %v1307, %v1328
        %v1331 = vunpack.c.l.s4 1966171168
        %v1332 = vunpack.c.0.s8 %v1331
        %v1333 = vlaneseq
        %v1334 = vshrl.u32 %v1333, 7
        %v1335 = vsub.s32 %v1332, %v1334
        %v1336 = vrot.slane %v1308, %v1335
        %v1337 = vcombine.high %v1315, %v1315
        %v1338 = vcombine.high %v1322, %v1322
        %v1339 = vcombine.high %v1329, %v1329
        %v1340 = vcombine.high %v1336, %v1336
        %v1342 = vunpack.c.l.s4 1966171168
        %v1343 = vunpack.c.0.s8 %v1342
        %v1344 = vlaneseq
        %v1345 = vshrl.u32 %v1344, 7
        %v1346 = vsub.s32 %v1343, %v1345
        %v1347 = vrot.slane %v293, %v1346
        %v1348 = vcombine.high %v1347, %v1347
        %v1350 = vunpack.c.l.s4 1966171168
        %v1351 = vunpack.c.0.s8 %v1350
        %v1352 = vlaneseq
        %v1353 = vshrl.u32 %v1352, 7
        %v1354 = vsub.s32 %v1351, %v1353
        %v1355 = vrot.slane %v1347, %v1354
        %v1357 = vunpack.c.l.s4 1966171168
        %v1358 = vunpack.c.0.s8 %v1357
        %v1359 = vlaneseq
        %v1360 = vshrl.u32 %v1359, 7
        %v1361 = vsub.s32 %v1358, %v1360
        %v1362 = vrot.slane %v1348, %v1361
        %v1363 = vcombine.high %v1355, %v1355
        %v1364 = vcombine.high %v1362, %v1362
        %v2289 = vunpack.c.l.b16 %v294
        %v2290 = vunpack.c.h.b16 %v294
        %v2291 = vunpack.c.l.b16 %v295
        %v2292 = vunpack.c.h.b16 %v295
        %v2293 = vunpack.c.l.b16 %v296
        %v2294 = vunpack.c.h.b16 %v296
        %v2295 = vunpack.c.l.b16 %v297
        %v2296 = vunpack.c.h.b16 %v297
        %v2297 = vunpack.c.l.b16 %v298
        %v2298 = vunpack.c.h.b16 %v298
        %v2299 = vunpack.c.l.b16 %v299
        %v2300 = vunpack.c.h.b16 %v299
        %v2301 = vunpack.c.l.b16 %v300
        %v2302 = vunpack.c.h.b16 %v300
        %v2303 = vunpack.c.l.b16 %v301
        %v2304 = vunpack.c.h.b16 %v301
        %v2305 = vunpack.c.l.b16 %v302
        %v2306 = vunpack.c.h.b16 %v302
        %v2307 = vunpack.c.l.b16 %v303
        %v2308 = vunpack.c.h.b16 %v303
        %v2309 = vunpack.c.l.b16 %v304
        %v2310 = vunpack.c.h.b16 %v304
        %v2311 = vunpack.c.l.b16 %v305
        %v2312 = vunpack.c.h.b16 %v305
        %v2313 = vunpack.c.l.b16 %v306
        %v2314 = vunpack.c.h.b16 %v306
        %v2315 = vunpack.c.l.b16 %v307
        %v2316 = vunpack.c.h.b16 %v307
        %v2317 = vunpack.c.l.b16 %v308
        %v2318 = vunpack.c.h.b16 %v308
        %v2319 = vunpack.c.l.b16 %v309
        %v2320 = vunpack.c.h.b16 %v309
        %v2321 = vunpack.c.l.b16 %v310
        %v2322 = vunpack.c.h.b16 %v310
        %v2323 = vunpack.c.l.b16 %v311
        %v2324 = vunpack.c.h.b16 %v311
        %v2325 = vunpack.c.l.b16 %v312
        %v2326 = vunpack.c.h.b16 %v312
        %v2327 = vunpack.c.l.b16 %v313
        %v2328 = vunpack.c.h.b16 %v313
        %v2329 = vunpack.c.l.b16 %v314
        %v2330 = vunpack.c.h.b16 %v314
        %v2331 = vunpack.c.l.b16 %v315
        %v2332 = vunpack.c.h.b16 %v315
        %v2333 = vunpack.c.l.b16 %v316
        %v2334 = vunpack.c.h.b16 %v316
        %v2335 = vunpack.c.l.b16 %v317
        %v2336 = vunpack.c.h.b16 %v317
        %v2337 = vunpack.c.l.b16 %v318
        %v2338 = vunpack.c.h.b16 %v318
        %v2339 = vunpack.c.l.b16 %v319
        %v2340 = vunpack.c.h.b16 %v319
        %v2341 = vunpack.c.l.b16 %v320
        %v2342 = vunpack.c.h.b16 %v320
        %v2343 = vunpack.c.l.b16 %v321
        %v2344 = vunpack.c.h.b16 %v321
        %v2345 = vunpack.c.l.b16 %v322
        %v2346 = vunpack.c.h.b16 %v322
        %v2347 = vunpack.c.l.b16 %v323
        %v2348 = vunpack.c.h.b16 %v323
        %v2349 = vunpack.c.l.b16 %v324
        %v2350 = vunpack.c.h.b16 %v324
        %v2351 = vunpack.c.l.b16 %v325
        %v2352 = vunpack.c.h.b16 %v325
        %v2353 = vunpack.c.l.b16 %v326
        %v2354 = vunpack.c.h.b16 %v326
        %v2355 = vunpack.c.l.b16 %v327
        %v2356 = vunpack.c.h.b16 %v327
        %v2357 = vunpack.c.l.b16 %v328
        %v2358 = vunpack.c.h.b16 %v328
        %v2359 = vunpack.c.l.b16 %v329
        %v2360 = vunpack.c.h.b16 %v329
        %v2361 = vunpack.c.l.b16 %v330
        %v2362 = vunpack.c.h.b16 %v330
        %v2363 = vunpack.c.l.b16 %v331
        %v2364 = vunpack.c.h.b16 %v331
        %v2365 = vunpack.c.l.b16 %v332
        %v2366 = vunpack.c.h.b16 %v332
        %v2367 = vunpack.c.l.b16 %v333
        %v2368 = vunpack.c.h.b16 %v333
        %v2369 = vunpack.c.l.b16 %v334
        %v2370 = vunpack.c.h.b16 %v334
        %v2371 = vunpack.c.l.b16 %v335
        %v2372 = vunpack.c.h.b16 %v335
        %v2373 = vunpack.c.l.b16 %v336
        %v2374 = vunpack.c.h.b16 %v336
        %v2375 = vunpack.c.l.b16 %v337
        %v2376 = vunpack.c.h.b16 %v337
        %v2377 = vunpack.c.l.b16 %v338
        %v2378 = vunpack.c.h.b16 %v338
        %v2379 = vunpack.c.l.b16 %v339
        %v2380 = vunpack.c.h.b16 %v339
        %v2381 = vunpack.c.l.b16 %v340
        %v2382 = vunpack.c.h.b16 %v340
        %v2383 = vunpack.c.l.b16 %v341
        %v2384 = vunpack.c.h.b16 %v341
        %v2385 = vunpack.c.l.b16 %v342
        %v2386 = vunpack.c.h.b16 %v342
        %v2387 = vunpack.c.l.b16 %v343
        %v2388 = vunpack.c.h.b16 %v343
        %v2389 = vunpack.c.l.b16 %v344
        %v2390 = vunpack.c.h.b16 %v344
        %v2391 = vunpack.c.l.b16 %v345
        %v2392 = vunpack.c.h.b16 %v345
        %v2393 = vunpack.c.l.b16 %v346
        %v2394 = vunpack.c.h.b16 %v346
        %v2395 = vunpack.c.l.b16 %v347
        %v2396 = vunpack.c.h.b16 %v347
        %v2397 = vunpack.c.l.b16 %v348
        %v2398 = vunpack.c.h.b16 %v348
        %v2399 = vunpack.c.l.b16 %v349
        %v2400 = vunpack.c.h.b16 %v349
        %v2401 = vunpack.c.l.b16 %v350
        %v2402 = vunpack.c.h.b16 %v350
        %v2403 = vunpack.c.l.b16 %v351
        %v2404 = vunpack.c.h.b16 %v351
        %v2405 = vunpack.c.l.b16 %v352
        %v2406 = vunpack.c.h.b16 %v352
        %v2407 = vunpack.c.l.b16 %v353
        %v2408 = vunpack.c.h.b16 %v353
        %v2409 = vunpack.c.l.b16 %v354
        %v2410 = vunpack.c.h.b16 %v354
        %v2411 = vunpack.c.l.b16 %v355
        %v2412 = vunpack.c.h.b16 %v355
        %v2413 = vunpack.c.l.b16 %v356
        %v2414 = vunpack.c.h.b16 %v356
        %v2415 = vunpack.c.l.b16 %v357
        %v2416 = vunpack.c.h.b16 %v357
        %v2417 = vunpack.c.l.b16 %v358
        %v2418 = vunpack.c.h.b16 %v358
        %v2419 = vunpack.c.l.b16 %v359
        %v2420 = vunpack.c.h.b16 %v359
        %v2421 = vunpack.c.l.b16 %v360
        %v2422 = vunpack.c.h.b16 %v360
        %v2423 = vunpack.c.l.b16 %v361
        %v2424 = vunpack.c.h.b16 %v361
        %v2425 = vunpack.c.l.b16 %v362
        %v2426 = vunpack.c.h.b16 %v362
        %v2427 = vunpack.c.l.b16 %v363
        %v2428 = vunpack.c.h.b16 %v363
        %v2429 = vunpack.c.l.b16 %v364
        %v2430 = vunpack.c.h.b16 %v364
        %v2431 = vunpack.c.l.b16 %v365
        %v2432 = vunpack.c.h.b16 %v365
        %v2433 = vunpack.c.l.b16 %v366
        %v2434 = vunpack.c.h.b16 %v366
        %v2435 = vunpack.c.l.b16 %v367
        %v2436 = vunpack.c.h.b16 %v367
        %v2437 = vunpack.c.l.b16 %v368
        %v2438 = vunpack.c.h.b16 %v368
        %v2439 = vunpack.c.l.b16 %v369
        %v2440 = vunpack.c.h.b16 %v369
        %v2441 = vunpack.c.l.b16 %v370
        %v2442 = vunpack.c.h.b16 %v370
        %v2443 = vunpack.c.l.b16 %v371
        %v2444 = vunpack.c.h.b16 %v371
        %v2445 = vunpack.c.l.b16 %v372
        %v2446 = vunpack.c.h.b16 %v372
        %v2447 = vunpack.c.l.b16 %v373
        %v2448 = vunpack.c.h.b16 %v373
        %v2449 = vunpack.c.l.b16 %v374
        %v2450 = vunpack.c.h.b16 %v374
        %v2451 = vunpack.c.l.b16 %v375
        %v2452 = vunpack.c.h.b16 %v375
        %v2453 = vunpack.c.l.b16 %v376
        %v2454 = vunpack.c.h.b16 %v376
        %v2455 = vunpack.c.l.b16 %v377
        %v2456 = vunpack.c.h.b16 %v377
        %v2457 = vunpack.c.l.b16 %v378
        %v2458 = vunpack.c.h.b16 %v378
        %v2459 = vunpack.c.l.b16 %v379
        %v2460 = vunpack.c.h.b16 %v379
        %v2461 = vunpack.c.l.b16 %v380
        %v2462 = vunpack.c.h.b16 %v380
        %v2463 = vunpack.c.l.b16 %v381
        %v2464 = vunpack.c.h.b16 %v381
        %v2465 = vunpack.c.l.b16 %v382
        %v2466 = vunpack.c.h.b16 %v382
        %v2467 = vunpack.c.l.b16 %v383
        %v2468 = vunpack.c.h.b16 %v383
        %v2469 = vunpack.c.l.b16 %v384
        %v2470 = vunpack.c.h.b16 %v384
        %v2471 = vunpack.c.l.b16 %v385
        %v2472 = vunpack.c.h.b16 %v385
        %v2473 = vunpack.c.l.b16 %v386
        %v2474 = vunpack.c.h.b16 %v386
        %v2475 = vunpack.c.l.b16 %v387
        %v2476 = vunpack.c.h.b16 %v387
        %v2477 = vunpack.c.l.b16 %v388
        %v2478 = vunpack.c.h.b16 %v388
        %v2479 = vunpack.c.l.b16 %v389
        %v2480 = vunpack.c.h.b16 %v389
        %v2481 = vunpack.c.l.b16 %v390
        %v2482 = vunpack.c.h.b16 %v390
        %v2483 = vunpack.c.l.b16 %v391
        %v2484 = vunpack.c.h.b16 %v391
        %v2485 = vunpack.c.l.b16 %v392
        %v2486 = vunpack.c.h.b16 %v392
        %v2487 = vunpack.c.l.b16 %v393
        %v2488 = vunpack.c.h.b16 %v393
        %v2489 = vunpack.c.l.b16 %v394
        %v2490 = vunpack.c.h.b16 %v394
        %v2491 = vunpack.c.l.b16 %v395
        %v2492 = vunpack.c.h.b16 %v395
        %v2493 = vunpack.c.l.b16 %v396
        %v2494 = vunpack.c.h.b16 %v396
        %v2495 = vunpack.c.l.b16 %v397
        %v2496 = vunpack.c.h.b16 %v397
        %v2497 = vunpack.c.l.b16 %v398
        %v2498 = vunpack.c.h.b16 %v398
        %v2499 = vunpack.c.l.b16 %v399
        %v2500 = vunpack.c.h.b16 %v399
        %v2501 = vunpack.c.l.b16 %v400
        %v2502 = vunpack.c.h.b16 %v400
        %v2503 = vunpack.c.l.b16 %v401
        %v2504 = vunpack.c.h.b16 %v401
        %v2505 = vunpack.c.l.b16 %v402
        %v2506 = vunpack.c.h.b16 %v402
        %v2507 = vunpack.c.l.b16 %v403
        %v2508 = vunpack.c.h.b16 %v403
        %v2509 = vunpack.c.l.b16 %v404
        %v2510 = vunpack.c.h.b16 %v404
        %v2511 = vunpack.c.l.b16 %v405
        %v2512 = vunpack.c.h.b16 %v405
        %v2513 = vunpack.c.l.b16 %v406
        %v2514 = vunpack.c.h.b16 %v406
        %v2515 = vunpack.c.l.b16 %v407
        %v2516 = vunpack.c.h.b16 %v407
        %v2517 = vunpack.c.l.b16 %v408
        %v2518 = vunpack.c.h.b16 %v408
        %v2519 = vunpack.c.l.b16 %v409
        %v2520 = vunpack.c.h.b16 %v409
        %v2521 = vunpack.c.l.b16 %v410
        %v2522 = vunpack.c.h.b16 %v410
        %v2523 = vunpack.c.l.b16 %v411
        %v2524 = vunpack.c.h.b16 %v411
        %v2525 = vunpack.c.l.b16 %v412
        %v2526 = vunpack.c.h.b16 %v412
        %v2527 = vunpack.c.l.b16 %v413
        %v2528 = vunpack.c.h.b16 %v413
        %v2529 = vunpack.c.l.b16 %v414
        %v2530 = vunpack.c.h.b16 %v414
        %v2531 = vunpack.c.l.b16 %v415
        %v2532 = vunpack.c.h.b16 %v415
        %v2533 = vunpack.c.l.b16 %v416
        %v2534 = vunpack.c.h.b16 %v416
        %v2535 = vunpack.c.l.b16 %v417
        %v2536 = vunpack.c.h.b16 %v417
        %v2537 = vunpack.c.l.b16 %v418
        %v2538 = vunpack.c.h.b16 %v418
        %v2539 = vunpack.c.l.b16 %v419
        %v2540 = vunpack.c.h.b16 %v419
        %v2541 = vunpack.c.l.b16 %v420
        %v2542 = vunpack.c.h.b16 %v420
        %v2543 = vunpack.c.l.b16 %v421
        %v2544 = vunpack.c.h.b16 %v421
        %v2545 = vunpack.c.l.b16 %v422
        %v2546 = vunpack.c.h.b16 %v422
        %v2547 = vunpack.c.l.b16 %v423
        %v2548 = vunpack.c.h.b16 %v423
        %v2549 = vunpack.c.l.b16 %v424
        %v2550 = vunpack.c.h.b16 %v424
        %v2551 = vunpack.c.l.b16 %v425
        %v2552 = vunpack.c.h.b16 %v425
        %v2553 = vunpack.c.l.b16 %v426
        %v2554 = vunpack.c.h.b16 %v426
        %v2555 = vunpack.c.l.b16 %v427
        %v2556 = vunpack.c.h.b16 %v427
        %v2557 = vunpack.c.l.b16 %v428
        %v2558 = vunpack.c.h.b16 %v428
        %v2559 = vunpack.c.l.b16 %v429
        %v2560 = vunpack.c.h.b16 %v429
        %v2561 = vunpack.c.l.b16 %v430
        %v2562 = vunpack.c.h.b16 %v430
        %v2563 = vunpack.c.l.b16 %v431
        %v2564 = vunpack.c.h.b16 %v431
        %v2565 = vunpack.c.l.b16 %v432
        %v2566 = vunpack.c.h.b16 %v432
        %v2567 = vunpack.c.l.b16 %v433
        %v2568 = vunpack.c.h.b16 %v433
        %v2569 = vunpack.c.l.b16 %v434
        %v2570 = vunpack.c.h.b16 %v434
        %v2571 = vunpack.c.l.b16 %v435
        %v2572 = vunpack.c.h.b16 %v435
        %v2573 = vunpack.c.l.b16 %v436
        %v2574 = vunpack.c.h.b16 %v436
        %v2575 = vunpack.c.l.b16 %v437
        %v2576 = vunpack.c.h.b16 %v437
        %v2577 = vunpack.c.l.b16 %v438
        %v2578 = vunpack.c.h.b16 %v438
        %v2579 = vunpack.c.l.b16 %v439
        %v2580 = vunpack.c.h.b16 %v439
        %v2581 = vunpack.c.l.b16 %v440
        %v2582 = vunpack.c.h.b16 %v440
        %v2583 = vunpack.c.l.b16 %v441
        %v2584 = vunpack.c.h.b16 %v441
        %v2585 = vunpack.c.l.b16 %v442
        %v2586 = vunpack.c.h.b16 %v442
        %v2587 = vunpack.c.l.b16 %v443
        %v2588 = vunpack.c.h.b16 %v443
        %v2589 = vunpack.c.l.b16 %v444
        %v2590 = vunpack.c.h.b16 %v444
        %v2591 = vunpack.c.l.b16 %v445
        %v2592 = vunpack.c.h.b16 %v445
        %v2593 = vunpack.c.l.b16 %v446
        %v2594 = vunpack.c.h.b16 %v446
        %v2595 = vunpack.c.l.b16 %v447
        %v2596 = vunpack.c.h.b16 %v447
        %v2597 = vunpack.c.l.b16 %v448
        %v2598 = vunpack.c.h.b16 %v448
        %v2599 = vunpack.c.l.b16 %v449
        %v2600 = vunpack.c.h.b16 %v449
        %v2601 = vunpack.c.l.b16 %v450
        %v2602 = vunpack.c.h.b16 %v450
        %v2603 = vunpack.c.l.b16 %v451
        %v2604 = vunpack.c.h.b16 %v451
        %v2605 = vunpack.c.l.b16 %v452
        %v2606 = vunpack.c.h.b16 %v452
        %v2607 = vunpack.c.l.b16 %v453
        %v2608 = vunpack.c.h.b16 %v453
        %v2609 = vunpack.c.l.b16 %v454
        %v2610 = vunpack.c.h.b16 %v454
        %v2611 = vunpack.c.l.b16 %v455
        %v2612 = vunpack.c.h.b16 %v455
        %v2613 = vunpack.c.l.b16 %v456
        %v2614 = vunpack.c.h.b16 %v456
        %v2615 = vunpack.c.l.b16 %v457
        %v2616 = vunpack.c.h.b16 %v457
        %v2617 = vunpack.c.l.b16 %v458
        %v2618 = vunpack.c.h.b16 %v458
        %v2619 = vunpack.c.l.b16 %v459
        %v2620 = vunpack.c.h.b16 %v459
        %v2621 = vunpack.c.l.b16 %v460
        %v2622 = vunpack.c.h.b16 %v460
        %v2623 = vunpack.c.l.b16 %v461
        %v2624 = vunpack.c.h.b16 %v461
        %v2625 = vunpack.c.l.b16 %v462
        %v2626 = vunpack.c.h.b16 %v462
        %v2627 = vunpack.c.l.b16 %v463
        %v2628 = vunpack.c.h.b16 %v463
        %v2629 = vunpack.c.l.b16 %v464
        %v2630 = vunpack.c.h.b16 %v464
        %v2631 = vunpack.c.l.b16 %v465
        %v2632 = vunpack.c.h.b16 %v465
        %v2633 = vunpack.c.l.b16 %v466
        %v2634 = vunpack.c.h.b16 %v466
        %v2635 = vunpack.c.l.b16 %v467
        %v2636 = vunpack.c.h.b16 %v467
        %v2637 = vunpack.c.l.b16 %v468
        %v2638 = vunpack.c.h.b16 %v468
        %v2639 = vunpack.c.l.b16 %v469
        %v2640 = vunpack.c.h.b16 %v469
        %v2641 = vunpack.c.l.b16 %v470
        %v2642 = vunpack.c.h.b16 %v470
        %v2643 = vunpack.c.l.b16 %v471
        %v2644 = vunpack.c.h.b16 %v471
        %v2645 = vunpack.c.l.b16 %v472
        %v2646 = vunpack.c.h.b16 %v472
        %v2647 = vunpack.c.l.b16 %v473
        %v2648 = vunpack.c.h.b16 %v473
        %v2649 = vunpack.c.l.b16 %v474
        %v2650 = vunpack.c.h.b16 %v474
        %v2651 = vunpack.c.l.b16 %v475
        %v2652 = vunpack.c.h.b16 %v475
        %v2653 = vunpack.c.l.b16 %v476
        %v2654 = vunpack.c.h.b16 %v476
        %v2655 = vunpack.c.l.b16 %v477
        %v2656 = vunpack.c.h.b16 %v477
        %v2657 = vunpack.c.l.b16 %v478
        %v2658 = vunpack.c.h.b16 %v478
        %v2659 = vunpack.c.l.b16 %v479
        %v2660 = vunpack.c.h.b16 %v479
        %v2661 = vunpack.c.l.b16 %v480
        %v2662 = vunpack.c.h.b16 %v480
        %v2663 = vunpack.c.l.b16 %v481
        %v2664 = vunpack.c.h.b16 %v481
        %v2665 = vunpack.c.l.b16 %v482
        %v2666 = vunpack.c.h.b16 %v482
        %v2667 = vunpack.c.l.b16 %v483
        %v2668 = vunpack.c.h.b16 %v483
        %v2669 = vunpack.c.l.b16 %v484
        %v2670 = vunpack.c.h.b16 %v484
        %v2671 = vunpack.c.l.b16 %v485
        %v2672 = vunpack.c.h.b16 %v485
        %v2673 = vunpack.c.l.b16 %v486
        %v2674 = vunpack.c.h.b16 %v486
        %v2675 = vunpack.c.l.b16 %v487
        %v2676 = vunpack.c.h.b16 %v487
        %v2677 = vunpack.c.l.b16 %v488
        %v2678 = vunpack.c.h.b16 %v488
        %v2679 = vunpack.c.l.b16 %v489
        %v2680 = vunpack.c.h.b16 %v489
        %v2681 = vunpack.c.l.b16 %v490
        %v2682 = vunpack.c.h.b16 %v490
        %v2683 = vunpack.c.l.b16 %v491
        %v2684 = vunpack.c.h.b16 %v491
        %v2685 = vunpack.c.l.b16 %v492
        %v2686 = vunpack.c.h.b16 %v492
        %v2687 = vunpack.c.l.b16 %v493
        %v2688 = vunpack.c.h.b16 %v493
        %v2689 = vunpack.c.l.b16 %v494
        %v2690 = vunpack.c.h.b16 %v494
        %v2691 = vunpack.c.l.b16 %v495
        %v2692 = vunpack.c.h.b16 %v495
        %v2693 = vunpack.c.l.b16 %v496
        %v2694 = vunpack.c.h.b16 %v496
        %v2695 = vunpack.c.l.b16 %v497
        %v2696 = vunpack.c.h.b16 %v497
        %v2697 = vunpack.c.l.b16 %v498
        %v2698 = vunpack.c.h.b16 %v498
        %v2699 = vunpack.c.l.b16 %v499
        %v2700 = vunpack.c.h.b16 %v499
        %v2701 = vunpack.c.l.b16 %v500
        %v2702 = vunpack.c.h.b16 %v500
        %v2703 = vunpack.c.l.b16 %v501
        %v2704 = vunpack.c.h.b16 %v501
        %v2705 = vunpack.c.l.b16 %v502
        %v2706 = vunpack.c.h.b16 %v502
        %v2707 = vunpack.c.l.b16 %v503
        %v2708 = vunpack.c.h.b16 %v503
        %v2709 = vunpack.c.l.b16 %v504
        %v2710 = vunpack.c.h.b16 %v504
        %v2711 = vunpack.c.l.b16 %v505
        %v2712 = vunpack.c.h.b16 %v505
        %v2713 = vunpack.c.l.b16 %v506
        %v2714 = vunpack.c.h.b16 %v506
        %v2715 = vunpack.c.l.b16 %v507
        %v2716 = vunpack.c.h.b16 %v507
        %v2717 = vunpack.c.l.b16 %v508
        %v2718 = vunpack.c.h.b16 %v508
        %v2719 = vunpack.c.l.b16 %v509
        %v2720 = vunpack.c.h.b16 %v509
        %v2721 = vunpack.c.l.b16 %v510
        %v2722 = vunpack.c.h.b16 %v510
        %v2723 = vunpack.c.l.b16 %v511
        %v2724 = vunpack.c.h.b16 %v511
        %v2725 = vunpack.c.l.b16 %v512
        %v2726 = vunpack.c.h.b16 %v512
        %v2727 = vunpack.c.l.b16 %v513
        %v2728 = vunpack.c.h.b16 %v513
        %v2729 = vunpack.c.l.b16 %v514
        %v2730 = vunpack.c.h.b16 %v514
        %v2731 = vunpack.c.l.b16 %v515
        %v2732 = vunpack.c.h.b16 %v515
        %v2733 = vunpack.c.l.b16 %v516
        %v2734 = vunpack.c.h.b16 %v516
        %v2735 = vunpack.c.l.b16 %v517
        %v2736 = vunpack.c.h.b16 %v517
        %v2737 = vunpack.c.l.b16 %v518
        %v2738 = vunpack.c.h.b16 %v518
        %v2739 = vunpack.c.l.b16 %v519
        %v2740 = vunpack.c.h.b16 %v519
        %v2741 = vunpack.c.l.b16 %v520
        %v2742 = vunpack.c.h.b16 %v520
        %v2743 = vunpack.c.l.b16 %v521
        %v2744 = vunpack.c.h.b16 %v521
        %v2745 = vunpack.c.l.b16 %v522
        %v2746 = vunpack.c.h.b16 %v522
        %v2747 = vunpack.c.l.b16 %v523
        %v2748 = vunpack.c.h.b16 %v523
        %v2749 = vunpack.c.l.b16 %v524
        %v2750 = vunpack.c.h.b16 %v524
        %v2751 = vunpack.c.l.b16 %v525
        %v2752 = vunpack.c.h.b16 %v525
        %v2753 = vunpack.c.l.b16 %v526
        %v2754 = vunpack.c.h.b16 %v526
        %v2755 = vunpack.c.l.b16 %v527
        %v2756 = vunpack.c.h.b16 %v527
        %v2757 = vunpack.c.l.b16 %v528
        %v2758 = vunpack.c.h.b16 %v528
        %v2759 = vunpack.c.l.b16 %v529
        %v2760 = vunpack.c.h.b16 %v529
        %v2761 = vunpack.c.l.b16 %v530
        %v2762 = vunpack.c.h.b16 %v530
        %v2763 = vunpack.c.l.b16 %v531
        %v2764 = vunpack.c.h.b16 %v531
        %v2765 = vunpack.c.l.b16 %v532
        %v2766 = vunpack.c.h.b16 %v532
        %v2767 = vunpack.c.l.b16 %v533
        %v2768 = vunpack.c.h.b16 %v533
        %v2769 = vunpack.c.l.b16 %v534
        %v2770 = vunpack.c.h.b16 %v534
        %v2771 = vunpack.c.l.b16 %v535
        %v2772 = vunpack.c.h.b16 %v535
        %v2773 = vunpack.c.l.b16 %v536
        %v2774 = vunpack.c.h.b16 %v536
        %v2775 = vunpack.c.l.b16 %v537
        %v2776 = vunpack.c.h.b16 %v537
        %v2777 = vunpack.c.l.b16 %v538
        %v2778 = vunpack.c.h.b16 %v538
        %v2779 = vunpack.c.l.b16 %v539
        %v2780 = vunpack.c.h.b16 %v539
        %v2781 = vunpack.c.l.b16 %v540
        %v2782 = vunpack.c.h.b16 %v540
        %v2783 = vunpack.c.l.b16 %v541
        %v2784 = vunpack.c.h.b16 %v541
        %v2785 = vunpack.c.l.b16 %v542
        %v2786 = vunpack.c.h.b16 %v542
        %v2787 = vunpack.c.l.b16 %v543
        %v2788 = vunpack.c.h.b16 %v543
        %v2789 = vunpack.c.l.b16 %v544
        %v2790 = vunpack.c.h.b16 %v544
        %v2791 = vunpack.c.l.b16 %v545
        %v2792 = vunpack.c.h.b16 %v545
        %v2793 = vunpack.c.l.b16 %v546
        %v2794 = vunpack.c.h.b16 %v546
        %v2795 = vunpack.c.l.b16 %v547
        %v2796 = vunpack.c.h.b16 %v547
        %v2797 = vunpack.c.l.b16 %v548
        %v2798 = vunpack.c.h.b16 %v548
        %v2799 = vunpack.c.l.b16 %v549
        %v2800 = vunpack.c.h.b16 %v549
        %v2801 = vunpack.c.l.b16 %v550
        %v2802 = vunpack.c.h.b16 %v550
        %v2803 = vunpack.c.l.b16 %v551
        %v2804 = vunpack.c.h.b16 %v551
        %v2805 = vunpack.c.l.b16 %v552
        %v2806 = vunpack.c.h.b16 %v552
        %v2807 = vunpack.c.l.b16 %v553
        %v2808 = vunpack.c.h.b16 %v553
        %v2809 = vunpack.c.l.b16 %v554
        %v2810 = vunpack.c.h.b16 %v554
        %v2811 = vunpack.c.l.b16 %v555
        %v2812 = vunpack.c.h.b16 %v555
        %v2813 = vunpack.c.l.b16 %v556
        %v2814 = vunpack.c.h.b16 %v556
        %v2815 = vunpack.c.l.b16 %v557
        %v2816 = vunpack.c.h.b16 %v557
        %v2817 = vunpack.c.l.b16 %v558
        %v2818 = vunpack.c.h.b16 %v558
        %v2819 = vunpack.c.l.b16 %v559
        %v2820 = vunpack.c.h.b16 %v559
        %v2821 = vunpack.c.l.b16 %v560
        %v2822 = vunpack.c.h.b16 %v560
        %v2823 = vunpack.c.l.b16 %v561
        %v2824 = vunpack.c.h.b16 %v561
        %v2825 = vunpack.c.l.b16 %v562
        %v2826 = vunpack.c.h.b16 %v562
        %v2827 = vunpack.c.l.b16 %v563
        %v2828 = vunpack.c.h.b16 %v563
        %v2829 = vunpack.c.l.b16 %v564
        %v2830 = vunpack.c.h.b16 %v564
        %v2831 = vunpack.c.l.b16 %v565
        %v2832 = vunpack.c.h.b16 %v565
        %v2833 = vunpack.c.l.b16 %v566
        %v2834 = vunpack.c.h.b16 %v566
        %v2835 = vunpack.c.l.b16 %v567
        %v2836 = vunpack.c.h.b16 %v567
        %v2837 = vunpack.c.l.b16 %v568
        %v2838 = vunpack.c.h.b16 %v568
        %v2839 = vunpack.c.l.b16 %v569
        %v2840 = vunpack.c.h.b16 %v569
        %v2841 = vunpack.c.l.b16 %v570
        %v2842 = vunpack.c.h.b16 %v570
        %v2843 = vunpack.c.l.b16 %v571
        %v2844 = vunpack.c.h.b16 %v571
        %v2845 = vunpack.c.l.b16 %v572
        %v2846 = vunpack.c.h.b16 %v572
        %v2847 = vunpack.c.l.b16 %v573
        %v2848 = vunpack.c.h.b16 %v573
        %v2849 = vunpack.c.l.b16 %v574
        %v2850 = vunpack.c.h.b16 %v574
        %v2851 = vunpack.c.l.b16 %v575
        %v2852 = vunpack.c.h.b16 %v575
        %v2853 = vunpack.c.l.b16 %v576
        %v2854 = vunpack.c.h.b16 %v576
        %v2855 = vunpack.c.l.b16 %v577
        %v2856 = vunpack.c.h.b16 %v577
        %v2857 = vunpack.c.l.b16 %v578
        %v2858 = vunpack.c.h.b16 %v578
        %v2859 = vunpack.c.l.b16 %v579
        %v2860 = vunpack.c.h.b16 %v579
        %v2861 = vunpack.c.l.b16 %v580
        %v2862 = vunpack.c.h.b16 %v580
        %v2863 = vunpack.c.l.b16 %v581
        %v2864 = vunpack.c.h.b16 %v581
        %v2865 = vunpack.c.l.b16 %v582
        %v2866 = vunpack.c.h.b16 %v582
        %v2867 = vunpack.c.l.b16 %v583
        %v2868 = vunpack.c.h.b16 %v583
        %v2869 = vunpack.c.l.b16 %v584
        %v2870 = vunpack.c.h.b16 %v584
        %v2871 = vunpack.c.l.b16 %v585
        %v2872 = vunpack.c.h.b16 %v585
        %v2873 = vunpack.c.l.b16 %v586
        %v2874 = vunpack.c.h.b16 %v586
        %v2875 = vunpack.c.l.b16 %v587
        %v2876 = vunpack.c.h.b16 %v587
        %v2877 = vunpack.c.l.b16 %v588
        %v2878 = vunpack.c.h.b16 %v588
        %v2879 = vunpack.c.l.b16 %v589
        %v2880 = vunpack.c.h.b16 %v589
        %v2881 = vunpack.c.l.b16 %v590
        %v2882 = vunpack.c.h.b16 %v590
        %v2883 = vunpack.c.l.b16 %v591
        %v2884 = vunpack.c.h.b16 %v591
        %v2885 = vunpack.c.l.b16 %v592
        %v2886 = vunpack.c.h.b16 %v592
        %v2887 = vunpack.c.l.b16 %v593
        %v2888 = vunpack.c.h.b16 %v593
        %v2889 = vunpack.c.l.b16 %v594
        %v2890 = vunpack.c.h.b16 %v594
        %v2891 = vunpack.c.l.b16 %v595
        %v2892 = vunpack.c.h.b16 %v595
        %v2893 = vunpack.c.l.b16 %v596
        %v2894 = vunpack.c.h.b16 %v596
        %v2895 = vunpack.c.l.b16 %v597
        %v2896 = vunpack.c.h.b16 %v597
        %v2897 = vunpack.c.l.b16 %v598
        %v2898 = vunpack.c.h.b16 %v598
        %v2899 = vunpack.c.l.b16 %v599
        %v2900 = vunpack.c.h.b16 %v599
        %v2901 = vunpack.c.l.b16 %v600
        %v2902 = vunpack.c.h.b16 %v600
        %v2903 = vunpack.c.l.b16 %v601
        %v2904 = vunpack.c.h.b16 %v601
        %v2905 = vunpack.c.l.b16 %v602
        %v2906 = vunpack.c.h.b16 %v602
        %v2907 = vunpack.c.l.b16 %v603
        %v2908 = vunpack.c.h.b16 %v603
        %v2909 = vunpack.c.l.b16 %v604
        %v2910 = vunpack.c.h.b16 %v604
        %v2911 = vunpack.c.l.b16 %v605
        %v2912 = vunpack.c.h.b16 %v605
        %v2913 = vunpack.c.l.b16 %v606
        %v2914 = vunpack.c.h.b16 %v606
        %v2915 = vunpack.c.l.b16 %v607
        %v2916 = vunpack.c.h.b16 %v607
        %v2917 = vunpack.c.l.b16 %v608
        %v2918 = vunpack.c.h.b16 %v608
        %v2919 = vunpack.c.l.b16 %v609
        %v2920 = vunpack.c.h.b16 %v609
        %v2921 = vunpack.c.l.b16 %v610
        %v2922 = vunpack.c.h.b16 %v610
        %v2923 = vunpack.c.l.b16 %v611
        %v2924 = vunpack.c.h.b16 %v611
        %v2925 = vunpack.c.l.b16 %v612
        %v2926 = vunpack.c.h.b16 %v612
        %v2927 = vunpack.c.l.b16 %v613
        %v2928 = vunpack.c.h.b16 %v613
        %v2929 = vunpack.c.l.b16 %v614
        %v2930 = vunpack.c.h.b16 %v614
        %v2931 = vunpack.c.l.b16 %v615
        %v2932 = vunpack.c.h.b16 %v615
        %v2933 = vunpack.c.l.b16 %v616
        %v2934 = vunpack.c.h.b16 %v616
        %v2935 = vunpack.c.l.b16 %v617
        %v2936 = vunpack.c.h.b16 %v617
        %v2937 = vunpack.c.l.b16 %v618
        %v2938 = vunpack.c.h.b16 %v618
        %v2939 = vunpack.c.l.b16 %v619
        %v2940 = vunpack.c.h.b16 %v619
        %v2941 = vunpack.c.l.b16 %v620
        %v2942 = vunpack.c.h.b16 %v620
        %v2943 = vunpack.c.l.b16 %v621
        %v2944 = vunpack.c.h.b16 %v621
        %v2945 = vunpack.c.l.b16 %v622
        %v2946 = vunpack.c.h.b16 %v622
        %v2947 = vunpack.c.l.b16 %v623
        %v2948 = vunpack.c.h.b16 %v623
        %v2949 = vunpack.c.l.b16 %v624
        %v2950 = vunpack.c.h.b16 %v624
        %v2951 = vunpack.c.l.b16 %v625
        %v2952 = vunpack.c.h.b16 %v625
        %v2953 = vunpack.c.l.b16 %v626
        %v2954 = vunpack.c.h.b16 %v626
        %v2955 = vunpack.c.l.b16 %v627
        %v2956 = vunpack.c.h.b16 %v627
        %v2957 = vunpack.c.l.b16 %v628
        %v2958 = vunpack.c.h.b16 %v628
        %v2959 = vunpack.c.l.b16 %v629
        %v2960 = vunpack.c.h.b16 %v629
        %v2961 = vunpack.c.l.b16 %v630
        %v2962 = vunpack.c.h.b16 %v630
        %v2963 = vunpack.c.l.b16 %v631
        %v2964 = vunpack.c.h.b16 %v631
        %v2965 = vunpack.c.l.b16 %v632
        %v2966 = vunpack.c.h.b16 %v632
        %v2967 = vunpack.c.l.b16 %v633
        %v2968 = vunpack.c.h.b16 %v633
        %v2969 = vunpack.c.l.b16 %v634
        %v2970 = vunpack.c.h.b16 %v634
        %v2971 = vunpack.c.l.b16 %v635
        %v2972 = vunpack.c.h.b16 %v635
        %v2973 = vunpack.c.l.b16 %v636
        %v2974 = vunpack.c.h.b16 %v636
        %v2975 = vunpack.c.l.b16 %v637
        %v2976 = vunpack.c.h.b16 %v637
        %v2977 = vunpack.c.l.b16 %v638
        %v2978 = vunpack.c.h.b16 %v638
        %v2979 = vunpack.c.l.b16 %v639
        %v2980 = vunpack.c.h.b16 %v639
        %v2981 = vunpack.c.l.b16 %v640
        %v2982 = vunpack.c.h.b16 %v640
        %v2983 = vunpack.c.l.b16 %v641
        %v2984 = vunpack.c.h.b16 %v641
        %v2985 = vunpack.c.l.b16 %v642
        %v2986 = vunpack.c.h.b16 %v642
        %v2987 = vunpack.c.l.b16 %v643
        %v2988 = vunpack.c.h.b16 %v643
        %v2989 = vunpack.c.l.b16 %v644
        %v2990 = vunpack.c.h.b16 %v644
        %v2991 = vunpack.c.l.b16 %v645
        %v2992 = vunpack.c.h.b16 %v645
        %v2993 = vunpack.c.l.b16 %v646
        %v2994 = vunpack.c.h.b16 %v646
        %v2995 = vunpack.c.l.b16 %v647
        %v2996 = vunpack.c.h.b16 %v647
        %v2997 = vunpack.c.l.b16 %v648
        %v2998 = vunpack.c.h.b16 %v648
        %v2999 = vunpack.c.l.b16 %v649
        %v3000 = vunpack.c.h.b16 %v649
        %v3001 = vunpack.c.l.b16 %v650
        %v3002 = vunpack.c.h.b16 %v650
        %v3003 = vunpack.c.l.b16 %v651
        %v3004 = vunpack.c.h.b16 %v651
        %v3005 = vunpack.c.l.b16 %v652
        %v3006 = vunpack.c.h.b16 %v652
        %v3007 = vunpack.c.l.b16 %v653
        %v3008 = vunpack.c.h.b16 %v653
        %v3009 = vunpack.c.l.b16 %v654
        %v3010 = vunpack.c.h.b16 %v654
        %v3011 = vunpack.c.l.b16 %v655
        %v3012 = vunpack.c.h.b16 %v655
        %v3013 = vunpack.c.l.b16 %v656
        %v3014 = vunpack.c.h.b16 %v656
        %v3015 = vunpack.c.l.b16 %v657
        %v3016 = vunpack.c.h.b16 %v657
        %v3017 = vunpack.c.l.b16 %v658
        %v3018 = vunpack.c.h.b16 %v658
        %v3019 = vunpack.c.l.b16 %v659
        %v3020 = vunpack.c.h.b16 %v659
        %v3021 = vunpack.c.l.b16 %v660
        %v3022 = vunpack.c.h.b16 %v660
        %v3023 = vunpack.c.l.b16 %v661
        %v3024 = vunpack.c.h.b16 %v661
        %v3025 = vunpack.c.l.b16 %v662
        %v3026 = vunpack.c.h.b16 %v662
        %v3027 = vunpack.c.l.b16 %v663
        %v3028 = vunpack.c.h.b16 %v663
        %v3029 = vunpack.c.l.b16 %v664
        %v3030 = vunpack.c.h.b16 %v664
        %v3031 = vunpack.c.l.b16 %v665
        %v3032 = vunpack.c.h.b16 %v665
        %v3033 = vunpack.c.l.b16 %v666
        %v3034 = vunpack.c.h.b16 %v666
        %v3035 = vunpack.c.l.b16 %v667
        %v3036 = vunpack.c.h.b16 %v667
        %v3037 = vunpack.c.l.b16 %v668
        %v3038 = vunpack.c.h.b16 %v668
        %v3039 = vunpack.c.l.b16 %v669
        %v3040 = vunpack.c.h.b16 %v669
        %v3041 = vunpack.c.l.b16 %v670
        %v3042 = vunpack.c.h.b16 %v670
        %v3043 = vunpack.c.l.b16 %v671
        %v3044 = vunpack.c.h.b16 %v671
        %v3045 = vunpack.c.l.b16 %v672
        %v3046 = vunpack.c.h.b16 %v672
        %v3047 = vunpack.c.l.b16 %v673
        %v3048 = vunpack.c.h.b16 %v673
        %v3049 = vunpack.c.l.b16 %v674
        %v3050 = vunpack.c.h.b16 %v674
        %v3051 = vunpack.c.l.b16 %v675
        %v3052 = vunpack.c.h.b16 %v675
        %v3053 = vunpack.c.l.b16 %v676
        %v3054 = vunpack.c.h.b16 %v676
        %v3055 = vunpack.c.l.b16 %v677
        %v3056 = vunpack.c.h.b16 %v677
        %v3057 = vunpack.c.l.b16 %v678
        %v3058 = vunpack.c.h.b16 %v678
        %v3059 = vunpack.c.l.b16 %v679
        %v3060 = vunpack.c.h.b16 %v679
        %v3061 = vunpack.c.l.b16 %v680
        %v3062 = vunpack.c.h.b16 %v680
        %v3063 = vunpack.c.l.b16 %v681
        %v3064 = vunpack.c.h.b16 %v681
        %v3065 = vunpack.c.l.b16 %v682
        %v3066 = vunpack.c.h.b16 %v682
        %v3067 = vunpack.c.l.b16 %v683
        %v3068 = vunpack.c.h.b16 %v683
        %v3069 = vunpack.c.l.b16 %v684
        %v3070 = vunpack.c.h.b16 %v684
        %v3071 = vunpack.c.l.b16 %v685
        %v3072 = vunpack.c.h.b16 %v685
        %v3073 = vunpack.c.l.b16 %v686
        %v3074 = vunpack.c.h.b16 %v686
        %v3075 = vunpack.c.l.b16 %v687
        %v3076 = vunpack.c.h.b16 %v687
        %v3077 = vunpack.c.l.b16 %v688
        %v3078 = vunpack.c.h.b16 %v688
        %v3079 = vunpack.c.l.b16 %v689
        %v3080 = vunpack.c.h.b16 %v689
        %v3081 = vunpack.c.l.b16 %v690
        %v3082 = vunpack.c.h.b16 %v690
        %v3083 = vunpack.c.l.b16 %v691
        %v3084 = vunpack.c.h.b16 %v691
        %v3085 = vunpack.c.l.b16 %v692
        %v3086 = vunpack.c.h.b16 %v692
        %v3087 = vunpack.c.l.b16 %v693
        %v3088 = vunpack.c.h.b16 %v693
        %v3089 = vunpack.c.l.b16 %v694
        %v3090 = vunpack.c.h.b16 %v694
        %v3091 = vunpack.c.l.b16 %v695
        %v3092 = vunpack.c.h.b16 %v695
        %v3093 = vunpack.c.l.b16 %v696
        %v3094 = vunpack.c.h.b16 %v696
        %v3095 = vunpack.c.l.b16 %v697
        %v3096 = vunpack.c.h.b16 %v697
        %v3097 = vunpack.c.l.b16 %v698
        %v3098 = vunpack.c.h.b16 %v698
        %v3099 = vunpack.c.l.b16 %v699
        %v3100 = vunpack.c.h.b16 %v699
        %v3101 = vunpack.c.l.b16 %v700
        %v3102 = vunpack.c.h.b16 %v700
        %v3103 = vunpack.c.l.b16 %v701
        %v3104 = vunpack.c.h.b16 %v701
        %v3105 = vunpack.c.l.b16 %v702
        %v3106 = vunpack.c.h.b16 %v702
        %v3107 = vunpack.c.l.b16 %v703
        %v3108 = vunpack.c.h.b16 %v703
        %v3109 = vunpack.c.l.b16 %v704
        %v3110 = vunpack.c.h.b16 %v704
        %v3111 = vunpack.c.l.b16 %v705
        %v3112 = vunpack.c.h.b16 %v705
        %v3113 = vunpack.c.l.b16 %v706
        %v3114 = vunpack.c.h.b16 %v706
        %v3115 = vunpack.c.l.b16 %v707
        %v3116 = vunpack.c.h.b16 %v707
        %v3117 = vunpack.c.l.b16 %v708
        %v3118 = vunpack.c.h.b16 %v708
        %v3119 = vunpack.c.l.b16 %v709
        %v3120 = vunpack.c.h.b16 %v709
        %v3121 = vunpack.c.l.b16 %v710
        %v3122 = vunpack.c.h.b16 %v710
        %v3123 = vunpack.c.l.b16 %v711
        %v3124 = vunpack.c.h.b16 %v711
        %v3125 = vunpack.c.l.b16 %v712
        %v3126 = vunpack.c.h.b16 %v712
        %v3127 = vunpack.c.l.b16 %v713
        %v3128 = vunpack.c.h.b16 %v713
        %v3129 = vunpack.c.l.b16 %v714
        %v3130 = vunpack.c.h.b16 %v714
        %v3131 = vunpack.c.l.b16 %v715
        %v3132 = vunpack.c.h.b16 %v715
        %v3133 = vunpack.c.l.b16 %v716
        %v3134 = vunpack.c.h.b16 %v716
        %v3135 = vunpack.c.l.b16 %v717
        %v3136 = vunpack.c.h.b16 %v717
        %v3137 = vunpack.c.l.b16 %v718
        %v3138 = vunpack.c.h.b16 %v718
        %v3139 = vunpack.c.l.b16 %v719
        %v3140 = vunpack.c.h.b16 %v719
        %v3141 = vunpack.c.l.b16 %v720
        %v3142 = vunpack.c.h.b16 %v720
        %v3143 = vunpack.c.l.b16 %v721
        %v3144 = vunpack.c.h.b16 %v721
        %v3145 = vunpack.c.l.b16 %v722
        %v3146 = vunpack.c.h.b16 %v722
        %v3147 = vunpack.c.l.b16 %v723
        %v3148 = vunpack.c.h.b16 %v723
        %v3149 = vunpack.c.l.b16 %v724
        %v3150 = vunpack.c.h.b16 %v724
        %v3151 = vunpack.c.l.b16 %v725
        %v3152 = vunpack.c.h.b16 %v725
        %v3153 = vunpack.c.l.b16 %v726
        %v3154 = vunpack.c.h.b16 %v726
        %v3155 = vunpack.c.l.b16 %v727
        %v3156 = vunpack.c.h.b16 %v727
        %v3157 = vunpack.c.l.b16 %v728
        %v3158 = vunpack.c.h.b16 %v728
        %v3159 = vunpack.c.l.b16 %v729
        %v3160 = vunpack.c.h.b16 %v729
        %v3161 = vunpack.c.l.b16 %v730
        %v3162 = vunpack.c.h.b16 %v730
        %v3163 = vunpack.c.l.b16 %v731
        %v3164 = vunpack.c.h.b16 %v731
        %v3165 = vunpack.c.l.b16 %v732
        %v3166 = vunpack.c.h.b16 %v732
        %v3167 = vunpack.c.l.b16 %v733
        %v3168 = vunpack.c.h.b16 %v733
        %v3169 = vunpack.c.l.b16 %v734
        %v3170 = vunpack.c.h.b16 %v734
        %v3171 = vunpack.c.l.b16 %v735
        %v3172 = vunpack.c.h.b16 %v735
        %v3173 = vunpack.c.l.b16 %v736
        %v3174 = vunpack.c.h.b16 %v736
        %v3175 = vunpack.c.l.b16 %v737
        %v3176 = vunpack.c.h.b16 %v737
        %v3177 = vunpack.c.l.b16 %v738
        %v3178 = vunpack.c.h.b16 %v738
        %v3179 = vunpack.c.l.b16 %v739
        %v3180 = vunpack.c.h.b16 %v739
        %v3181 = vunpack.c.l.b16 %v740
        %v3182 = vunpack.c.h.b16 %v740
        %v3183 = vunpack.c.l.b16 %v741
        %v3184 = vunpack.c.h.b16 %v741
        %v3185 = vunpack.c.l.b16 %v742
        %v3186 = vunpack.c.h.b16 %v742
        %v3187 = vunpack.c.l.b16 %v743
        %v3188 = vunpack.c.h.b16 %v743
        %v3189 = vunpack.c.l.b16 %v744
        %v3190 = vunpack.c.h.b16 %v744
        %v3191 = vunpack.c.l.b16 %v745
        %v3192 = vunpack.c.h.b16 %v745
        %v3193 = vunpack.c.l.b16 %v746
        %v3194 = vunpack.c.h.b16 %v746
        %v3195 = vunpack.c.l.b16 %v747
        %v3196 = vunpack.c.h.b16 %v747
        %v3197 = vunpack.c.l.b16 %v748
        %v3198 = vunpack.c.h.b16 %v748
        %v3199 = vunpack.c.l.b16 %v749
        %v3200 = vunpack.c.h.b16 %v749
        %v3201 = vunpack.c.l.b16 %v750
        %v3202 = vunpack.c.h.b16 %v750
        %v3203 = vunpack.c.l.b16 %v751
        %v3204 = vunpack.c.h.b16 %v751
        %v3205 = vunpack.c.l.b16 %v752
        %v3206 = vunpack.c.h.b16 %v752
        %v3207 = vunpack.c.l.b16 %v753
        %v3208 = vunpack.c.h.b16 %v753
        %v3209 = vunpack.c.l.b16 %v754
        %v3210 = vunpack.c.h.b16 %v754
        %v3211 = vunpack.c.l.b16 %v755
        %v3212 = vunpack.c.h.b16 %v755
        %v3213 = vunpack.c.l.b16 %v756
        %v3214 = vunpack.c.h.b16 %v756
        %v3215 = vunpack.c.l.b16 %v757
        %v3216 = vunpack.c.h.b16 %v757
        %v3217 = vunpack.c.l.b16 %v758
        %v3218 = vunpack.c.h.b16 %v758
        %v3219 = vunpack.c.l.b16 %v759
        %v3220 = vunpack.c.h.b16 %v759
        %v3221 = vunpack.c.l.b16 %v760
        %v3222 = vunpack.c.h.b16 %v760
        %v3223 = vunpack.c.l.b16 %v761
        %v3224 = vunpack.c.h.b16 %v761
        %v3225 = vunpack.c.l.b16 %v762
        %v3226 = vunpack.c.h.b16 %v762
        %v3227 = vunpack.c.l.b16 %v763
        %v3228 = vunpack.c.h.b16 %v763
        %v3229 = vunpack.c.l.b16 %v764
        %v3230 = vunpack.c.h.b16 %v764
        %v3231 = vunpack.c.l.b16 %v765
        %v3232 = vunpack.c.h.b16 %v765
        %v3233 = vunpack.c.l.b16 %v766
        %v3234 = vunpack.c.h.b16 %v766
        %v3235 = vunpack.c.l.b16 %v767
        %v3236 = vunpack.c.h.b16 %v767
        %v3237 = vunpack.c.l.b16 %v768
        %v3238 = vunpack.c.h.b16 %v768
        %v3239 = vunpack.c.l.b16 %v769
        %v3240 = vunpack.c.h.b16 %v769
        %v3241 = vunpack.c.l.b16 %v770
        %v3242 = vunpack.c.h.b16 %v770
        %v3243 = vunpack.c.l.b16 %v771
        %v3244 = vunpack.c.h.b16 %v771
        %v3245 = vunpack.c.l.b16 %v772
        %v3246 = vunpack.c.h.b16 %v772
        %v3247 = vunpack.c.l.b16 %v773
        %v3248 = vunpack.c.h.b16 %v773
        %v3249 = vunpack.c.l.b16 %v774
        %v3250 = vunpack.c.h.b16 %v774
        %v3251 = vunpack.c.l.b16 %v775
        %v3252 = vunpack.c.h.b16 %v775
        %v3253 = vunpack.c.l.b16 %v776
        %v3254 = vunpack.c.h.b16 %v776
        %v3255 = vunpack.c.l.b16 %v777
        %v3256 = vunpack.c.h.b16 %v777
        %v3257 = vunpack.c.l.b16 %v778
        %v3258 = vunpack.c.h.b16 %v778
        %v3259 = vunpack.c.l.b16 %v779
        %v3260 = vunpack.c.h.b16 %v779
        %v3261 = vunpack.c.l.b16 %v780
        %v3262 = vunpack.c.h.b16 %v780
        %v3263 = vunpack.c.l.b16 %v781
        %v3264 = vunpack.c.h.b16 %v781
        %v3265 = vunpack.c.l.b16 %v782
        %v3266 = vunpack.c.h.b16 %v782
        %v3267 = vunpack.c.l.b16 %v783
        %v3268 = vunpack.c.h.b16 %v783
        %v3269 = vunpack.c.l.b16 %v784
        %v3270 = vunpack.c.h.b16 %v784
        %v3271 = vunpack.c.l.b16 %v785
        %v3272 = vunpack.c.h.b16 %v785
        %v3273 = vunpack.c.l.b16 %v786
        %v3274 = vunpack.c.h.b16 %v786
        %v3275 = vunpack.c.l.b16 %v787
        %v3276 = vunpack.c.h.b16 %v787
        %v3277 = vunpack.c.l.b16 %v788
        %v3278 = vunpack.c.h.b16 %v788
        %v3279 = vunpack.c.l.b16 %v789
        %v3280 = vunpack.c.h.b16 %v789
        %v3281 = vunpack.c.l.b16 %v790
        %v3282 = vunpack.c.h.b16 %v790
        %v3283 = vunpack.c.l.b16 %v791
        %v3284 = vunpack.c.h.b16 %v791
        %v3285 = vunpack.c.l.b16 %v792
        %v3286 = vunpack.c.h.b16 %v792
        %v3287 = vunpack.c.l.b16 %v793
        %v3288 = vunpack.c.h.b16 %v793
        %v3289 = vunpack.c.l.b16 %v794
        %v3290 = vunpack.c.h.b16 %v794
        %v3291 = vunpack.c.l.b16 %v795
        %v3292 = vunpack.c.h.b16 %v795
        %v3293 = vunpack.c.l.b16 %v796
        %v3294 = vunpack.c.h.b16 %v796
        %v3295 = vunpack.c.l.b16 %v797
        %v3296 = vunpack.c.h.b16 %v797
        %v3297 = vunpack.c.l.b16 %v798
        %v3298 = vunpack.c.h.b16 %v798
        %v3299 = vunpack.c.l.b16 %v799
        %v3300 = vunpack.c.h.b16 %v799
        %v3301 = vunpack.c.l.b16 %v800
        %v3302 = vunpack.c.h.b16 %v800
        %v3303 = vunpack.c.l.b16 %v801
        %v3304 = vunpack.c.h.b16 %v801
        %v3305 = vunpack.c.l.b16 %v802
        %v3306 = vunpack.c.h.b16 %v802
        %v3307 = vunpack.c.l.b16 %v803
        %v3308 = vunpack.c.h.b16 %v803
        %v3309 = vunpack.c.l.b16 %v804
        %v3310 = vunpack.c.h.b16 %v804
        %v3311 = vunpack.c.l.b16 %v805
        %v3312 = vunpack.c.h.b16 %v805
        %v3313 = vunpack.c.l.b16 %v806
        %v3314 = vunpack.c.h.b16 %v806
        %v3315 = vunpack.c.l.b16 %v807
        %v3316 = vunpack.c.h.b16 %v807
        %v3317 = vunpack.c.l.b16 %v808
        %v3318 = vunpack.c.h.b16 %v808
        %v3319 = vunpack.c.l.b16 %v809
        %v3320 = vunpack.c.h.b16 %v809
        %v3321 = vunpack.c.l.b16 %v810
        %v3322 = vunpack.c.h.b16 %v810
        %v3323 = vunpack.c.l.b16 %v811
        %v3324 = vunpack.c.h.b16 %v811
        %v3325 = vunpack.c.l.b16 %v812
        %v3326 = vunpack.c.h.b16 %v812
        %v3327 = vunpack.c.l.b16 %v813
        %v3328 = vunpack.c.h.b16 %v813
        %v3329 = vunpack.c.l.b16 %v814
        %v3330 = vunpack.c.h.b16 %v814
        %v3331 = vunpack.c.l.b16 %v815
        %v3332 = vunpack.c.h.b16 %v815
        %v3333 = vunpack.c.l.b16 %v816
        %v3334 = vunpack.c.h.b16 %v816
        %v3335 = vunpack.c.l.b16 %v817
        %v3336 = vunpack.c.h.b16 %v817
        %v3337 = vunpack.c.l.b16 %v818
        %v3338 = vunpack.c.h.b16 %v818
        %v3339 = vunpack.c.l.b16 %v819
        %v3340 = vunpack.c.h.b16 %v819
        %v3341 = vunpack.c.l.b16 %v820
        %v3342 = vunpack.c.h.b16 %v820
        %v3343 = vunpack.c.l.b16 %v821
        %v3344 = vunpack.c.h.b16 %v821
        %v3345 = vunpack.c.l.b16 %v822
        %v3346 = vunpack.c.h.b16 %v822
        %v3347 = vunpack.c.l.b16 %v823
        %v3348 = vunpack.c.h.b16 %v823
        %v3349 = vunpack.c.l.b16 %v824
        %v3350 = vunpack.c.h.b16 %v824
        %v3351 = vunpack.c.l.b16 %v825
        %v3352 = vunpack.c.h.b16 %v825
        %v3353 = vunpack.c.l.b16 %v826
        %v3354 = vunpack.c.h.b16 %v826
        %v3355 = vunpack.c.l.b16 %v827
        %v3356 = vunpack.c.h.b16 %v827
        %v3357 = vunpack.c.l.b16 %v828
        %v3358 = vunpack.c.h.b16 %v828
        %v3359 = vunpack.c.l.b16 %v829
        %v3360 = vunpack.c.h.b16 %v829
        %v3361 = vunpack.c.l.b16 %v830
        %v3362 = vunpack.c.h.b16 %v830
        %v3363 = vunpack.c.l.b16 %v831
        %v3364 = vunpack.c.h.b16 %v831
        %v3365 = vunpack.c.l.b16 %v832
        %v3366 = vunpack.c.h.b16 %v832
        %v3367 = vunpack.c.l.b16 %v833
        %v3368 = vunpack.c.h.b16 %v833
        %v3369 = vunpack.c.l.b16 %v834
        %v3370 = vunpack.c.h.b16 %v834
        %v3371 = vunpack.c.l.b16 %v835
        %v3372 = vunpack.c.h.b16 %v835
        %v3373 = vunpack.c.l.b16 %v836
        %v3374 = vunpack.c.h.b16 %v836
        %v3375 = vunpack.c.l.b16 %v837
        %v3376 = vunpack.c.h.b16 %v837
        %v3377 = vunpack.c.l.b16 %v838
        %v3378 = vunpack.c.h.b16 %v838
        %v3379 = vunpack.c.l.b16 %v839
        %v3380 = vunpack.c.h.b16 %v839
        %v3381 = vunpack.c.l.b16 %v840
        %v3382 = vunpack.c.h.b16 %v840
        %v3383 = vunpack.c.l.b16 %v841
        %v3384 = vunpack.c.h.b16 %v841
        %v3385 = vunpack.c.l.b16 %v842
        %v3386 = vunpack.c.h.b16 %v842
        %v3387 = vunpack.c.l.b16 %v843
        %v3388 = vunpack.c.h.b16 %v843
        %v3389 = vunpack.c.l.b16 %v844
        %v3390 = vunpack.c.h.b16 %v844
        %v3391 = vunpack.c.l.b16 %v845
        %v3392 = vunpack.c.h.b16 %v845
        %v3393 = vunpack.c.l.b16 %v846
        %v3394 = vunpack.c.h.b16 %v846
        %v3395 = vunpack.c.l.b16 %v847
        %v3396 = vunpack.c.h.b16 %v847
        %v3397 = vunpack.c.l.b16 %v848
        %v3398 = vunpack.c.h.b16 %v848
        %v3399 = vunpack.c.l.b16 %v849
        %v3400 = vunpack.c.h.b16 %v849
        %v3401 = vunpack.c.l.b16 %v850
        %v3402 = vunpack.c.h.b16 %v850
        %v3403 = vunpack.c.l.b16 %v851
        %v3404 = vunpack.c.h.b16 %v851
        %v3405 = vunpack.c.l.b16 %v852
        %v3406 = vunpack.c.h.b16 %v852
        %v3407 = vunpack.c.l.b16 %v853
        %v3408 = vunpack.c.h.b16 %v853
        %v3409 = vunpack.c.l.b16 %v854
        %v3410 = vunpack.c.h.b16 %v854
        %v3411 = vunpack.c.l.b16 %v855
        %v3412 = vunpack.c.h.b16 %v855
        %v3413 = vunpack.c.l.b16 %v856
        %v3414 = vunpack.c.h.b16 %v856
        %v3415 = vunpack.c.l.b16 %v857
        %v3416 = vunpack.c.h.b16 %v857
        %v3417 = vunpack.c.l.b16 %v858
        %v3418 = vunpack.c.h.b16 %v858
        %v3419 = vunpack.c.l.b16 %v859
        %v3420 = vunpack.c.h.b16 %v859
        %v3421 = vunpack.c.l.b16 %v860
        %v3422 = vunpack.c.h.b16 %v860
        %v3423 = vunpack.c.l.b16 %v861
        %v3424 = vunpack.c.h.b16 %v861
        %v3425 = vunpack.c.l.b16 %v862
        %v3426 = vunpack.c.h.b16 %v862
        %v3427 = vunpack.c.l.b16 %v863
        %v3428 = vunpack.c.h.b16 %v863
        %v3429 = vunpack.c.l.b16 %v864
        %v3430 = vunpack.c.h.b16 %v864
        %v3431 = vunpack.c.l.b16 %v865
        %v3432 = vunpack.c.h.b16 %v865
        %v3433 = vunpack.c.l.b16 %v866
        %v3434 = vunpack.c.h.b16 %v866
        %v3435 = vunpack.c.l.b16 %v867
        %v3436 = vunpack.c.h.b16 %v867
        %v3437 = vunpack.c.l.b16 %v868
        %v3438 = vunpack.c.h.b16 %v868
        %v3439 = vunpack.c.l.b16 %v869
        %v3440 = vunpack.c.h.b16 %v869
        %v3441 = vunpack.c.l.b16 %v870
        %v3442 = vunpack.c.h.b16 %v870
        %v3443 = vunpack.c.l.b16 %v871
        %v3444 = vunpack.c.h.b16 %v871
        %v3445 = vunpack.c.l.b16 %v872
        %v3446 = vunpack.c.h.b16 %v872
        %v3447 = vunpack.c.l.b16 %v873
        %v3448 = vunpack.c.h.b16 %v873
        %v3449 = vunpack.c.l.b16 %v874
        %v3450 = vunpack.c.h.b16 %v874
        %v3451 = vunpack.c.l.b16 %v875
        %v3452 = vunpack.c.h.b16 %v875
        %v3453 = vunpack.c.l.b16 %v876
        %v3454 = vunpack.c.h.b16 %v876
        %v3455 = vunpack.c.l.b16 %v877
        %v3456 = vunpack.c.h.b16 %v877
        %v3457 = vunpack.c.l.b16 %v878
        %v3458 = vunpack.c.h.b16 %v878
        %v3459 = vunpack.c.l.b16 %v879
        %v3460 = vunpack.c.h.b16 %v879
        %v3461 = vunpack.c.l.b16 %v880
        %v3462 = vunpack.c.h.b16 %v880
        %v3463 = vunpack.c.l.b16 %v881
        %v3464 = vunpack.c.h.b16 %v881
        %v3465 = vunpack.c.l.b16 %v882
        %v3466 = vunpack.c.h.b16 %v882
        %v3467 = vunpack.c.l.b16 %v883
        %v3468 = vunpack.c.h.b16 %v883
        %v3469 = vunpack.c.l.b16 %v884
        %v3470 = vunpack.c.h.b16 %v884
        %v3471 = vunpack.c.l.b16 %v885
        %v3472 = vunpack.c.h.b16 %v885
        %v3473 = vunpack.c.l.b16 %v886
        %v3474 = vunpack.c.h.b16 %v886
        %v3475 = vunpack.c.l.b16 %v887
        %v3476 = vunpack.c.h.b16 %v887
        %v3477 = vunpack.c.l.b16 %v888
        %v3478 = vunpack.c.h.b16 %v888
        %v3479 = vunpack.c.l.b16 %v889
        %v3480 = vunpack.c.h.b16 %v889
        %v3481 = vunpack.c.l.b16 %v890
        %v3482 = vunpack.c.h.b16 %v890
        %v3483 = vunpack.c.l.b16 %v891
        %v3484 = vunpack.c.h.b16 %v891
        %v3485 = vunpack.c.l.b16 %v892
        %v3486 = vunpack.c.h.b16 %v892
        %v3487 = vunpack.c.l.b16 %v893
        %v3488 = vunpack.c.h.b16 %v893
        %v3489 = vunpack.c.l.b16 %v894
        %v3490 = vunpack.c.h.b16 %v894
        %v3491 = vunpack.c.l.b16 %v895
        %v3492 = vunpack.c.h.b16 %v895
        %v3493 = vunpack.c.l.b16 %v896
        %v3494 = vunpack.c.h.b16 %v896
        %v3495 = vunpack.c.l.b16 %v897
        %v3496 = vunpack.c.h.b16 %v897
        %v3497 = vunpack.c.l.b16 %v898
        %v3498 = vunpack.c.h.b16 %v898
        %v3499 = vunpack.c.l.b16 %v899
        %v3500 = vunpack.c.h.b16 %v899
        %v3501 = vunpack.c.l.b16 %v900
        %v3502 = vunpack.c.h.b16 %v900
        %v3503 = vunpack.c.l.b16 %v901
        %v3504 = vunpack.c.h.b16 %v901
        %v3505 = vunpack.c.l.b16 %v902
        %v3506 = vunpack.c.h.b16 %v902
        %v3507 = vunpack.c.l.b16 %v903
        %v3508 = vunpack.c.h.b16 %v903
        %v3509 = vunpack.c.l.b16 %v904
        %v3510 = vunpack.c.h.b16 %v904
        %v3511 = vunpack.c.l.b16 %v905
        %v3512 = vunpack.c.h.b16 %v905
        %v3513 = vunpack.c.l.b16 %v906
        %v3514 = vunpack.c.h.b16 %v906
        %v3515 = vunpack.c.l.b16 %v907
        %v3516 = vunpack.c.h.b16 %v907
        %v3517 = vunpack.c.l.b16 %v908
        %v3518 = vunpack.c.h.b16 %v908
        %v3519 = vunpack.c.l.b16 %v909
        %v3520 = vunpack.c.h.b16 %v909
        %v3521 = vunpack.c.l.b16 %v910
        %v3522 = vunpack.c.h.b16 %v910
        %v3523 = vunpack.c.l.b16 %v911
        %v3524 = vunpack.c.h.b16 %v911
        %v3525 = vunpack.c.l.b16 %v912
        %v3526 = vunpack.c.h.b16 %v912
        %v3527 = vunpack.c.l.b16 %v913
        %v3528 = vunpack.c.h.b16 %v913
        %v3529 = vunpack.c.l.b16 %v914
        %v3530 = vunpack.c.h.b16 %v914
        %v3531 = vunpack.c.l.b16 %v915
        %v3532 = vunpack.c.h.b16 %v915
        %v3533 = vunpack.c.l.b16 %v916
        %v3534 = vunpack.c.h.b16 %v916
        %v3535 = vunpack.c.l.b16 %v917
        %v3536 = vunpack.c.h.b16 %v917
        %v3537 = vunpack.c.l.b16 %v918
        %v3538 = vunpack.c.h.b16 %v918
        %v3539 = vunpack.c.l.b16 %v919
        %v3540 = vunpack.c.h.b16 %v919
        %v3541 = vunpack.c.l.b16 %v920
        %v3542 = vunpack.c.h.b16 %v920
        %v3543 = vunpack.c.l.b16 %v921
        %v3544 = vunpack.c.h.b16 %v921
        %v3545 = vunpack.c.l.b16 %v922
        %v3546 = vunpack.c.h.b16 %v922
        %v3547 = vunpack.c.l.b16 %v923
        %v3548 = vunpack.c.h.b16 %v923
        %v3549 = vunpack.c.l.b16 %v924
        %v3550 = vunpack.c.h.b16 %v924
        %v3551 = vunpack.c.l.b16 %v925
        %v3552 = vunpack.c.h.b16 %v925
        %v3553 = vunpack.c.l.b16 %v926
        %v3554 = vunpack.c.h.b16 %v926
        %v3555 = vunpack.c.l.b16 %v927
        %v3556 = vunpack.c.h.b16 %v927
        %v3557 = vunpack.c.l.b16 %v928
        %v3558 = vunpack.c.h.b16 %v928
        %v3559 = vunpack.c.l.b16 %v929
        %v3560 = vunpack.c.h.b16 %v929
        %v3561 = vunpack.c.l.b16 %v930
        %v3562 = vunpack.c.h.b16 %v930
        %v3563 = vunpack.c.l.b16 %v931
        %v3564 = vunpack.c.h.b16 %v931
        %v3565 = vunpack.c.l.b16 %v932
        %v3566 = vunpack.c.h.b16 %v932
        %v3567 = vunpack.c.l.b16 %v933
        %v3568 = vunpack.c.h.b16 %v933
        %v3569 = vunpack.c.l.b16 %v934
        %v3570 = vunpack.c.h.b16 %v934
        %v3571 = vunpack.c.l.b16 %v935
        %v3572 = vunpack.c.h.b16 %v935
        %v3573 = vunpack.c.l.b16 %v936
        %v3574 = vunpack.c.h.b16 %v936
        %v3575 = vunpack.c.l.b16 %v937
        %v3576 = vunpack.c.h.b16 %v937
        %v3577 = vunpack.c.l.b16 %v938
        %v3578 = vunpack.c.h.b16 %v938
        %v3579 = vunpack.c.l.b16 %v939
        %v3580 = vunpack.c.h.b16 %v939
        %v3581 = vunpack.c.l.b16 %v940
        %v3582 = vunpack.c.h.b16 %v940
        %v3583 = vunpack.c.l.b16 %v941
        %v3584 = vunpack.c.h.b16 %v941
        %v3585 = vunpack.c.l.b16 %v942
        %v3586 = vunpack.c.h.b16 %v942
        %v3587 = vunpack.c.l.b16 %v943
        %v3588 = vunpack.c.h.b16 %v943
        %v3589 = vunpack.c.l.b16 %v944
        %v3590 = vunpack.c.h.b16 %v944
        %v3591 = vunpack.c.l.b16 %v945
        %v3592 = vunpack.c.h.b16 %v945
        %v3593 = vunpack.c.l.b16 %v946
        %v3594 = vunpack.c.h.b16 %v946
        %v3595 = vunpack.c.l.b16 %v947
        %v3596 = vunpack.c.h.b16 %v947
        %v3597 = vunpack.c.l.b16 %v948
        %v3598 = vunpack.c.h.b16 %v948
        %v3599 = vunpack.c.l.b16 %v949
        %v3600 = vunpack.c.h.b16 %v949
        %v3601 = vunpack.c.l.b16 %v950
        %v3602 = vunpack.c.h.b16 %v950
        %v3603 = vunpack.c.l.b16 %v951
        %v3604 = vunpack.c.h.b16 %v951
        %v3605 = vunpack.c.l.b16 %v952
        %v3606 = vunpack.c.h.b16 %v952
        %v3607 = vunpack.c.l.b16 %v953
        %v3608 = vunpack.c.h.b16 %v953
        %v3609 = vunpack.c.l.b16 %v954
        %v3610 = vunpack.c.h.b16 %v954
        %v3611 = vunpack.c.l.b16 %v955
        %v3612 = vunpack.c.h.b16 %v955
        %v3613 = vunpack.c.l.b16 %v956
        %v3614 = vunpack.c.h.b16 %v956
        %v3615 = vunpack.c.l.b16 %v957
        %v3616 = vunpack.c.h.b16 %v957
        %v3617 = vunpack.c.l.b16 %v958
        %v3618 = vunpack.c.h.b16 %v958
        %v3619 = vunpack.c.l.b16 %v959
        %v3620 = vunpack.c.h.b16 %v959
        %v3621 = vunpack.c.l.b16 %v960
        %v3622 = vunpack.c.h.b16 %v960
        %v3623 = vunpack.c.l.b16 %v961
        %v3624 = vunpack.c.h.b16 %v961
        %v3625 = vunpack.c.l.b16 %v962
        %v3626 = vunpack.c.h.b16 %v962
        %v3627 = vunpack.c.l.b16 %v963
        %v3628 = vunpack.c.h.b16 %v963
        %v3629 = vunpack.c.l.b16 %v964
        %v3630 = vunpack.c.h.b16 %v964
        %v3631 = vunpack.c.l.b16 %v965
        %v3632 = vunpack.c.h.b16 %v965
        %v3633 = vunpack.c.l.b16 %v966
        %v3634 = vunpack.c.h.b16 %v966
        %v3635 = vunpack.c.l.b16 %v967
        %v3636 = vunpack.c.h.b16 %v967
        %v3637 = vunpack.c.l.b16 %v968
        %v3638 = vunpack.c.h.b16 %v968
        %v3639 = vunpack.c.l.b16 %v969
        %v3640 = vunpack.c.h.b16 %v969
        %v3641 = vunpack.c.l.b16 %v970
        %v3642 = vunpack.c.h.b16 %v970
        %v3643 = vunpack.c.l.b16 %v971
        %v3644 = vunpack.c.h.b16 %v971
        %v3645 = vunpack.c.l.b16 %v972
        %v3646 = vunpack.c.h.b16 %v972
        %v3647 = vunpack.c.l.b16 %v973
        %v3648 = vunpack.c.h.b16 %v973
        %v3649 = vunpack.c.l.b16 %v974
        %v3650 = vunpack.c.h.b16 %v974
        %v3651 = vunpack.c.l.b16 %v975
        %v3652 = vunpack.c.h.b16 %v975
        %v3653 = vunpack.c.l.b16 %v976
        %v3654 = vunpack.c.h.b16 %v976
        %v3655 = vunpack.c.l.b16 %v977
        %v3656 = vunpack.c.h.b16 %v977
        %v3657 = vunpack.c.l.b16 %v978
        %v3658 = vunpack.c.h.b16 %v978
        %v3659 = vunpack.c.l.b16 %v979
        %v3660 = vunpack.c.h.b16 %v979
        %v3661 = vunpack.c.l.b16 %v980
        %v3662 = vunpack.c.h.b16 %v980
        %v3663 = vunpack.c.l.b16 %v981
        %v3664 = vunpack.c.h.b16 %v981
        %v3665 = vunpack.c.l.b16 %v982
        %v3666 = vunpack.c.h.b16 %v982
        %v3667 = vunpack.c.l.b16 %v983
        %v3668 = vunpack.c.h.b16 %v983
        %v3669 = vunpack.c.l.b16 %v984
        %v3670 = vunpack.c.h.b16 %v984
        %v3671 = vunpack.c.l.b16 %v985
        %v3672 = vunpack.c.h.b16 %v985
        %v3673 = vunpack.c.l.b16 %v986
        %v3674 = vunpack.c.h.b16 %v986
        %v3675 = vunpack.c.l.b16 %v987
        %v3676 = vunpack.c.h.b16 %v987
        %v3677 = vunpack.c.l.b16 %v988
        %v3678 = vunpack.c.h.b16 %v988
        %v3679 = vunpack.c.l.b16 %v989
        %v3680 = vunpack.c.h.b16 %v989
        %v3681 = vunpack.c.l.b16 %v990
        %v3682 = vunpack.c.h.b16 %v990
        %v3683 = vunpack.c.l.b16 %v991
        %v3684 = vunpack.c.h.b16 %v991
        %v3685 = vunpack.c.l.b16 %v992
        %v3686 = vunpack.c.h.b16 %v992
        %v3687 = vunpack.c.l.b16 %v993
        %v3688 = vunpack.c.h.b16 %v993
        %v3689 = vunpack.c.l.b16 %v994
        %v3690 = vunpack.c.h.b16 %v994
        %v3691 = vunpack.c.l.b16 %v995
        %v3692 = vunpack.c.h.b16 %v995
        %v3693 = vunpack.c.l.b16 %v996
        %v3694 = vunpack.c.h.b16 %v996
        %v3695 = vunpack.c.l.b16 %v997
        %v3696 = vunpack.c.h.b16 %v997
        %v3697 = vunpack.c.l.b16 %v998
        %v3698 = vunpack.c.h.b16 %v998
        %v3699 = vunpack.c.l.b16 %v999
        %v3700 = vunpack.c.h.b16 %v999
        %v3701 = vunpack.c.l.b16 %v1000
        %v3702 = vunpack.c.h.b16 %v1000
        %v3703 = vunpack.c.l.b16 %v1001
        %v3704 = vunpack.c.h.b16 %v1001
        %v3705 = vunpack.c.l.b16 %v1002
        %v3706 = vunpack.c.h.b16 %v1002
        %v3707 = vunpack.c.l.b16 %v1003
        %v3708 = vunpack.c.h.b16 %v1003
        %v3709 = vunpack.c.l.b16 %v1004
        %v3710 = vunpack.c.h.b16 %v1004
        %v3711 = vunpack.c.l.b16 %v1005
        %v3712 = vunpack.c.h.b16 %v1005
        %v3713 = vunpack.c.l.b16 %v1006
        %v3714 = vunpack.c.h.b16 %v1006
        %v3715 = vunpack.c.l.b16 %v1007
        %v3716 = vunpack.c.h.b16 %v1007
        %v3717 = vunpack.c.l.b16 %v1008
        %v3718 = vunpack.c.h.b16 %v1008
        %v3719 = vunpack.c.l.b16 %v1009
        %v3720 = vunpack.c.h.b16 %v1009
        %v3721 = vunpack.c.l.b16 %v1010
        %v3722 = vunpack.c.h.b16 %v1010
        %v3723 = vunpack.c.l.b16 %v1011
        %v3724 = vunpack.c.h.b16 %v1011
        %v3725 = vunpack.c.l.b16 %v1012
        %v3726 = vunpack.c.h.b16 %v1012
        %v3727 = vunpack.c.l.b16 %v1013
        %v3728 = vunpack.c.h.b16 %v1013
        %v3729 = vunpack.c.l.b16 %v1014
        %v3730 = vunpack.c.h.b16 %v1014
        %v3731 = vunpack.c.l.b16 %v1015
        %v3732 = vunpack.c.h.b16 %v1015
        %v3733 = vunpack.c.l.b16 %v1016
        %v3734 = vunpack.c.h.b16 %v1016
        %v3735 = vunpack.c.l.b16 %v1017
        %v3736 = vunpack.c.h.b16 %v1017
        %v3737 = vunpack.c.l.b16 %v1018
        %v3738 = vunpack.c.h.b16 %v1018
        %v3739 = vunpack.c.l.b16 %v1019
        %v3740 = vunpack.c.h.b16 %v1019
        %v3741 = vunpack.c.l.b16 %v1020
        %v3742 = vunpack.c.h.b16 %v1020
        %v3743 = vunpack.c.l.b16 %v1021
        %v3744 = vunpack.c.h.b16 %v1021
        %v3745 = vunpack.c.l.b16 %v1022
        %v3746 = vunpack.c.h.b16 %v1022
        %v3747 = vunpack.c.l.b16 %v1023
        %v3748 = vunpack.c.h.b16 %v1023
        %v3749 = vunpack.c.l.b16 %v1024
        %v3750 = vunpack.c.h.b16 %v1024
        %v3751 = vunpack.c.l.b16 %v1025
        %v3752 = vunpack.c.h.b16 %v1025
        %v3753 = vunpack.c.l.b16 %v1026
        %v3754 = vunpack.c.h.b16 %v1026
        %v3755 = vunpack.c.l.b16 %v1027
        %v3756 = vunpack.c.h.b16 %v1027
        %v3757 = vunpack.c.l.b16 %v1028
        %v3758 = vunpack.c.h.b16 %v1028
        %v3759 = vunpack.c.l.b16 %v1029
        %v3760 = vunpack.c.h.b16 %v1029
        %v3761 = vunpack.c.l.b16 %v1030
        %v3762 = vunpack.c.h.b16 %v1030
        %v3763 = vunpack.c.l.b16 %v1031
        %v3764 = vunpack.c.h.b16 %v1031
        %v3765 = vunpack.c.l.b16 %v1032
        %v3766 = vunpack.c.h.b16 %v1032
        %v3767 = vunpack.c.l.b16 %v1033
        %v3768 = vunpack.c.h.b16 %v1033
        %v3769 = vunpack.c.l.b16 %v1034
        %v3770 = vunpack.c.h.b16 %v1034
        %v3771 = vunpack.c.l.b16 %v1035
        %v3772 = vunpack.c.h.b16 %v1035
        %v3773 = vunpack.c.l.b16 %v1036
        %v3774 = vunpack.c.h.b16 %v1036
        %v3775 = vunpack.c.l.b16 %v1037
        %v3776 = vunpack.c.h.b16 %v1037
        %v3777 = vunpack.c.l.b16 %v1038
        %v3778 = vunpack.c.h.b16 %v1038
        %v3779 = vunpack.c.l.b16 %v1039
        %v3780 = vunpack.c.h.b16 %v1039
        %v3781 = vunpack.c.l.b16 %v1040
        %v3782 = vunpack.c.h.b16 %v1040
        %v3783 = vunpack.c.l.b16 %v1041
        %v3784 = vunpack.c.h.b16 %v1041
        %v3785 = vunpack.c.l.b16 %v1042
        %v3786 = vunpack.c.h.b16 %v1042
        %v3787 = vunpack.c.l.b16 %v1043
        %v3788 = vunpack.c.h.b16 %v1043
        %v3789 = vunpack.c.l.b16 %v1044
        %v3790 = vunpack.c.h.b16 %v1044
        %v3791 = vunpack.c.l.b16 %v1045
        %v3792 = vunpack.c.h.b16 %v1045
        %v3793 = vunpack.c.l.b16 %v1046
        %v3794 = vunpack.c.h.b16 %v1046
        %v3795 = vunpack.c.l.b16 %v1047
        %v3796 = vunpack.c.h.b16 %v1047
        %v3797 = vunpack.c.l.b16 %v1048
        %v3798 = vunpack.c.h.b16 %v1048
        %v3799 = vunpack.c.l.b16 %v1049
        %v3800 = vunpack.c.h.b16 %v1049
        %v3801 = vunpack.c.l.b16 %v1050
        %v3802 = vunpack.c.h.b16 %v1050
        %v3803 = vunpack.c.l.b16 %v1051
        %v3804 = vunpack.c.h.b16 %v1051
        %v3805 = vunpack.c.l.b16 %v1052
        %v3806 = vunpack.c.h.b16 %v1052
        %v3807 = vunpack.c.l.b16 %v1053
        %v3808 = vunpack.c.h.b16 %v1053
        %v3809 = vunpack.c.l.b16 %v1054
        %v3810 = vunpack.c.h.b16 %v1054
        %v3811 = vunpack.c.l.b16 %v1055
        %v3812 = vunpack.c.h.b16 %v1055
        %v3813 = vunpack.c.l.b16 %v1056
        %v3814 = vunpack.c.h.b16 %v1056
        %v3815 = vunpack.c.l.b16 %v1057
        %v3816 = vunpack.c.h.b16 %v1057
        %v3817 = vunpack.c.l.b16 %v1058
        %v3818 = vunpack.c.h.b16 %v1058
        %v3819 = vunpack.c.l.b16 %v1059
        %v3820 = vunpack.c.h.b16 %v1059
        %v3821 = vunpack.c.l.b16 %v1060
        %v3822 = vunpack.c.h.b16 %v1060
        %v3823 = vunpack.c.l.b16 %v1061
        %v3824 = vunpack.c.h.b16 %v1061
        %v3825 = vunpack.c.l.b16 %v1062
        %v3826 = vunpack.c.h.b16 %v1062
        %v3827 = vunpack.c.l.b16 %v1063
        %v3828 = vunpack.c.h.b16 %v1063
        %v3829 = vunpack.c.l.b16 %v1064
        %v3830 = vunpack.c.h.b16 %v1064
        %v3831 = vunpack.c.l.b16 %v1065
        %v3832 = vunpack.c.h.b16 %v1065
        %v3833 = vunpack.c.l.b16 %v1066
        %v3834 = vunpack.c.h.b16 %v1066
        %v3835 = vunpack.c.l.b16 %v1067
        %v3836 = vunpack.c.h.b16 %v1067
        %v3837 = vunpack.c.l.b16 %v1068
        %v3838 = vunpack.c.h.b16 %v1068
        %v3839 = vunpack.c.l.b16 %v1069
        %v3840 = vunpack.c.h.b16 %v1069
        %v3841 = vunpack.c.l.b16 %v1070
        %v3842 = vunpack.c.h.b16 %v1070
        %v3843 = vunpack.c.l.b16 %v1071
        %v3844 = vunpack.c.h.b16 %v1071
        %v3845 = vunpack.c.l.b16 %v1072
        %v3846 = vunpack.c.h.b16 %v1072
        %v3847 = vunpack.c.l.b16 %v1073
        %v3848 = vunpack.c.h.b16 %v1073
        %v3849 = vunpack.c.l.b16 %v1074
        %v3850 = vunpack.c.h.b16 %v1074
        %v3851 = vunpack.c.l.b16 %v1075
        %v3852 = vunpack.c.h.b16 %v1075
        %v3853 = vunpack.c.l.b16 %v1076
        %v3854 = vunpack.c.h.b16 %v1076
        %v3855 = vunpack.c.l.b16 %v1077
        %v3856 = vunpack.c.h.b16 %v1077
        %v3857 = vunpack.c.l.b16 %v1078
        %v3858 = vunpack.c.h.b16 %v1078
        %v3859 = vunpack.c.l.b16 %v1079
        %v3860 = vunpack.c.h.b16 %v1079
        %v3861 = vunpack.c.l.b16 %v1080
        %v3862 = vunpack.c.h.b16 %v1080
        %v3863 = vunpack.c.l.b16 %v1081
        %v3864 = vunpack.c.h.b16 %v1081
        %v3865 = vunpack.c.l.b16 %v1082
        %v3866 = vunpack.c.h.b16 %v1082
        %v3867 = vunpack.c.l.b16 %v1083
        %v3868 = vunpack.c.h.b16 %v1083
        %v3869 = vunpack.c.l.b16 %v1084
        %v3870 = vunpack.c.h.b16 %v1084
        %v3871 = vunpack.c.l.b16 %v1085
        %v3872 = vunpack.c.h.b16 %v1085
        %v3873 = vunpack.c.l.b16 %v1086
        %v3874 = vunpack.c.h.b16 %v1086
        %v3875 = vunpack.c.l.b16 %v1087
        %v3876 = vunpack.c.h.b16 %v1087
        %v3877 = vunpack.c.l.b16 %v1088
        %v3878 = vunpack.c.h.b16 %v1088
        %v3879 = vunpack.c.l.b16 %v1089
        %v3880 = vunpack.c.h.b16 %v1089
        %v3881 = vunpack.c.l.b16 %v1090
        %v3882 = vunpack.c.h.b16 %v1090
        %v3883 = vunpack.c.l.b16 %v1091
        %v3884 = vunpack.c.h.b16 %v1091
        %v3885 = vunpack.c.l.b16 %v1092
        %v3886 = vunpack.c.h.b16 %v1092
        %v3887 = vunpack.c.l.b16 %v1093
        %v3888 = vunpack.c.h.b16 %v1093
        %v3889 = vunpack.c.l.b16 %v1094
        %v3890 = vunpack.c.h.b16 %v1094
        %v3891 = vunpack.c.l.b16 %v1095
        %v3892 = vunpack.c.h.b16 %v1095
        %v3893 = vunpack.c.l.b16 %v1096
        %v3894 = vunpack.c.h.b16 %v1096
        %v3895 = vunpack.c.l.b16 %v1097
        %v3896 = vunpack.c.h.b16 %v1097
        %v3897 = vunpack.c.l.b16 %v1098
        %v3898 = vunpack.c.h.b16 %v1098
        %v3899 = vunpack.c.l.b16 %v1099
        %v3900 = vunpack.c.h.b16 %v1099
        %v3901 = vunpack.c.l.b16 %v1100
        %v3902 = vunpack.c.h.b16 %v1100
        %v3903 = vunpack.c.l.b16 %v1101
        %v3904 = vunpack.c.h.b16 %v1101
        %v3905 = vunpack.c.l.b16 %v1102
        %v3906 = vunpack.c.h.b16 %v1102
        %v3907 = vunpack.c.l.b16 %v1103
        %v3908 = vunpack.c.h.b16 %v1103
        %v3909 = vunpack.c.l.b16 %v1104
        %v3910 = vunpack.c.h.b16 %v1104
        %v3911 = vunpack.c.l.b16 %v1105
        %v3912 = vunpack.c.h.b16 %v1105
        %v3913 = vunpack.c.l.b16 %v1106
        %v3914 = vunpack.c.h.b16 %v1106
        %v3915 = vunpack.c.l.b16 %v1107
        %v3916 = vunpack.c.h.b16 %v1107
        %v3917 = vunpack.c.l.b16 %v1108
        %v3918 = vunpack.c.h.b16 %v1108
        %v3919 = vunpack.c.l.b16 %v1109
        %v3920 = vunpack.c.h.b16 %v1109
        %v3921 = vunpack.c.l.b16 %v1110
        %v3922 = vunpack.c.h.b16 %v1110
        %v3923 = vunpack.c.l.b16 %v1111
        %v3924 = vunpack.c.h.b16 %v1111
        %v3925 = vunpack.c.l.b16 %v1112
        %v3926 = vunpack.c.h.b16 %v1112
        %v3927 = vunpack.c.l.b16 %v1113
        %v3928 = vunpack.c.h.b16 %v1113
        %v3929 = vunpack.c.l.b16 %v1114
        %v3930 = vunpack.c.h.b16 %v1114
        %v3931 = vunpack.c.l.b16 %v1115
        %v3932 = vunpack.c.h.b16 %v1115
        %v3933 = vunpack.c.l.b16 %v1116
        %v3934 = vunpack.c.h.b16 %v1116
        %v3935 = vunpack.c.l.b16 %v1117
        %v3936 = vunpack.c.h.b16 %v1117
        %v3937 = vunpack.c.l.b16 %v1118
        %v3938 = vunpack.c.h.b16 %v1118
        %v3939 = vunpack.c.l.b16 %v1119
        %v3940 = vunpack.c.h.b16 %v1119
        %v3941 = vunpack.c.l.b16 %v1120
        %v3942 = vunpack.c.h.b16 %v1120
        %v3943 = vunpack.c.l.b16 %v1121
        %v3944 = vunpack.c.h.b16 %v1121
        %v3945 = vunpack.c.l.b16 %v1122
        %v3946 = vunpack.c.h.b16 %v1122
        %v3947 = vunpack.c.l.b16 %v1123
        %v3948 = vunpack.c.h.b16 %v1123
        %v3949 = vunpack.c.l.b16 %v1124
        %v3950 = vunpack.c.h.b16 %v1124
        %v3951 = vunpack.c.l.b16 %v1125
        %v3952 = vunpack.c.h.b16 %v1125
        %v3953 = vunpack.c.l.b16 %v1126
        %v3954 = vunpack.c.h.b16 %v1126
        %v3955 = vunpack.c.l.b16 %v1127
        %v3956 = vunpack.c.h.b16 %v1127
        %v3957 = vunpack.c.l.b16 %v1128
        %v3958 = vunpack.c.h.b16 %v1128
        %v3959 = vunpack.c.l.b16 %v1129
        %v3960 = vunpack.c.h.b16 %v1129
        %v3961 = vunpack.c.l.b16 %v1130
        %v3962 = vunpack.c.h.b16 %v1130
        %v3963 = vunpack.c.l.b16 %v1131
        %v3964 = vunpack.c.h.b16 %v1131
        %v3965 = vunpack.c.l.b16 %v1132
        %v3966 = vunpack.c.h.b16 %v1132
        %v3967 = vunpack.c.l.b16 %v1133
        %v3968 = vunpack.c.h.b16 %v1133
        %v3969 = vunpack.c.l.b16 %v1134
        %v3970 = vunpack.c.h.b16 %v1134
        %v3971 = vunpack.c.l.b16 %v1135
        %v3972 = vunpack.c.h.b16 %v1135
        %v3973 = vunpack.c.l.b16 %v1136
        %v3974 = vunpack.c.h.b16 %v1136
        %v3975 = vunpack.c.l.b16 %v1137
        %v3976 = vunpack.c.h.b16 %v1137
        %v3977 = vunpack.c.l.b16 %v1138
        %v3978 = vunpack.c.h.b16 %v1138
        %v3979 = vunpack.c.l.b16 %v1139
        %v3980 = vunpack.c.h.b16 %v1139
        %v3981 = vunpack.c.l.b16 %v1140
        %v3982 = vunpack.c.h.b16 %v1140
        %v3983 = vunpack.c.l.b16 %v1141
        %v3984 = vunpack.c.h.b16 %v1141
        %v3985 = vunpack.c.l.b16 %v1142
        %v3986 = vunpack.c.h.b16 %v1142
        %v3987 = vunpack.c.l.b16 %v1143
        %v3988 = vunpack.c.h.b16 %v1143
        %v3989 = vunpack.c.l.b16 %v1144
        %v3990 = vunpack.c.h.b16 %v1144
        %v3991 = vunpack.c.l.b16 %v1145
        %v3992 = vunpack.c.h.b16 %v1145
        %v3993 = vunpack.c.l.b16 %v1146
        %v3994 = vunpack.c.h.b16 %v1146
        %v3995 = vunpack.c.l.b16 %v1147
        %v3996 = vunpack.c.h.b16 %v1147
        %v3997 = vunpack.c.l.b16 %v1148
        %v3998 = vunpack.c.h.b16 %v1148
        %v3999 = vunpack.c.l.b16 %v1149
        %v4000 = vunpack.c.h.b16 %v1149
        %v4001 = vunpack.c.l.b16 %v1150
        %v4002 = vunpack.c.h.b16 %v1150
        %v4003 = vunpack.c.l.b16 %v1151
        %v4004 = vunpack.c.h.b16 %v1151
        %v4005 = vunpack.c.l.b16 %v1152
        %v4006 = vunpack.c.h.b16 %v1152
        %v4007 = vunpack.c.l.b16 %v1153
        %v4008 = vunpack.c.h.b16 %v1153
        %v4009 = vunpack.c.l.b16 %v1154
        %v4010 = vunpack.c.h.b16 %v1154
        %v4011 = vunpack.c.l.b16 %v1155
        %v4012 = vunpack.c.h.b16 %v1155
        %v4013 = vunpack.c.l.b16 %v1156
        %v4014 = vunpack.c.h.b16 %v1156
        %v4015 = vunpack.c.l.b16 %v1157
        %v4016 = vunpack.c.h.b16 %v1157
        %v4017 = vunpack.c.l.b16 %v1158
        %v4018 = vunpack.c.h.b16 %v1158
        %v4019 = vunpack.c.l.b16 %v1159
        %v4020 = vunpack.c.h.b16 %v1159
        %v4021 = vunpack.c.l.b16 %v1160
        %v4022 = vunpack.c.h.b16 %v1160
        %v4023 = vunpack.c.l.b16 %v1161
        %v4024 = vunpack.c.h.b16 %v1161
        %v4025 = vunpack.c.l.b16 %v1162
        %v4026 = vunpack.c.h.b16 %v1162
        %v4027 = vunpack.c.l.b16 %v1163
        %v4028 = vunpack.c.h.b16 %v1163
        %v4029 = vunpack.c.l.b16 %v1164
        %v4030 = vunpack.c.h.b16 %v1164
        %v4031 = vunpack.c.l.b16 %v1165
        %v4032 = vunpack.c.h.b16 %v1165
        %v4033 = vunpack.c.l.b16 %v1166
        %v4034 = vunpack.c.h.b16 %v1166
        %v4035 = vunpack.c.l.b16 %v1167
        %v4036 = vunpack.c.h.b16 %v1167
        %v4037 = vunpack.c.l.b16 %v1168
        %v4038 = vunpack.c.h.b16 %v1168
        %v4039 = vunpack.c.l.b16 %v1169
        %v4040 = vunpack.c.h.b16 %v1169
        %v4041 = vunpack.c.l.b16 %v1170
        %v4042 = vunpack.c.h.b16 %v1170
        %v4043 = vunpack.c.l.b16 %v1171
        %v4044 = vunpack.c.h.b16 %v1171
        %v4045 = vunpack.c.l.b16 %v1172
        %v4046 = vunpack.c.h.b16 %v1172
        %v4047 = vunpack.c.l.b16 %v1173
        %v4048 = vunpack.c.h.b16 %v1173
        %v4049 = vunpack.c.l.b16 %v1174
        %v4050 = vunpack.c.h.b16 %v1174
        %v4051 = vunpack.c.l.b16 %v1175
        %v4052 = vunpack.c.h.b16 %v1175
        %v4053 = vunpack.c.l.b16 %v1176
        %v4054 = vunpack.c.h.b16 %v1176
        %v4055 = vunpack.c.l.b16 %v1177
        %v4056 = vunpack.c.h.b16 %v1177
        %v4057 = vunpack.c.l.b16 %v1178
        %v4058 = vunpack.c.h.b16 %v1178
        %v4059 = vunpack.c.l.b16 %v1179
        %v4060 = vunpack.c.h.b16 %v1179
        %v4061 = vunpack.c.l.b16 %v1180
        %v4062 = vunpack.c.h.b16 %v1180
        %v4063 = vunpack.c.l.b16 %v1181
        %v4064 = vunpack.c.h.b16 %v1181
        %v4065 = vunpack.c.l.b16 %v1182
        %v4066 = vunpack.c.h.b16 %v1182
        %v4067 = vunpack.c.l.b16 %v1183
        %v4068 = vunpack.c.h.b16 %v1183
        %v4069 = vunpack.c.l.b16 %v1184
        %v4070 = vunpack.c.h.b16 %v1184
        %v4071 = vunpack.c.l.b16 %v1185
        %v4072 = vunpack.c.h.b16 %v1185
        %v4073 = vunpack.c.l.b16 %v1186
        %v4074 = vunpack.c.h.b16 %v1186
        %v4075 = vunpack.c.l.b16 %v1187
        %v4076 = vunpack.c.h.b16 %v1187
        %v4077 = vunpack.c.l.b16 %v1188
        %v4078 = vunpack.c.h.b16 %v1188
        %v4079 = vunpack.c.l.b16 %v1189
        %v4080 = vunpack.c.h.b16 %v1189
        %v4081 = vpack.c.b16 %v2293, %v2289
        %v4082 = vpack.c.b16 %v2294, %v2290
        %v4083 = vpack.c.b16 %v2295, %v2291
        %v4084 = vpack.c.b16 %v2296, %v2292
        %v4085 = vpack.c.b16 %v2301, %v2297
        %v4086 = vpack.c.b16 %v2302, %v2298
        %v4087 = vpack.c.b16 %v2303, %v2299
        %v4088 = vpack.c.b16 %v2304, %v2300
        %v4089 = vpack.c.b16 %v2309, %v2305
        %v4090 = vpack.c.b16 %v2310, %v2306
        %v4091 = vpack.c.b16 %v2311, %v2307
        %v4092 = vpack.c.b16 %v2312, %v2308
        %v4093 = vpack.c.b16 %v2317, %v2313
        %v4094 = vpack.c.b16 %v2318, %v2314
        %v4095 = vpack.c.b16 %v2319, %v2315
        %v4096 = vpack.c.b16 %v2320, %v2316
        %v4097 = vpack.c.b16 %v2325, %v2321
        %v4098 = vpack.c.b16 %v2326, %v2322
        %v4099 = vpack.c.b16 %v2327, %v2323
        %v4100 = vpack.c.b16 %v2328, %v2324
        %v4101 = vpack.c.b16 %v2333, %v2329
        %v4102 = vpack.c.b16 %v2334, %v2330
        %v4103 = vpack.c.b16 %v2335, %v2331
        %v4104 = vpack.c.b16 %v2336, %v2332
        %v4105 = vpack.c.b16 %v2341, %v2337
        %v4106 = vpack.c.b16 %v2342, %v2338
        %v4107 = vpack.c.b16 %v2343, %v2339
        %v4108 = vpack.c.b16 %v2344, %v2340
        %v4109 = vpack.c.b16 %v2349, %v2345
        %v4110 = vpack.c.b16 %v2350, %v2346
        %v4111 = vpack.c.b16 %v2351, %v2347
        %v4112 = vpack.c.b16 %v2352, %v2348
        %v4113 = vpack.c.b16 %v2357, %v2353
        %v4114 = vpack.c.b16 %v2358, %v2354
        %v4115 = vpack.c.b16 %v2359, %v2355
        %v4116 = vpack.c.b16 %v2360, %v2356
        %v4117 = vpack.c.b16 %v2365, %v2361
        %v4118 = vpack.c.b16 %v2366, %v2362
        %v4119 = vpack.c.b16 %v2367, %v2363
        %v4120 = vpack.c.b16 %v2368, %v2364
        %v4121 = vpack.c.b16 %v2373, %v2369
        %v4122 = vpack.c.b16 %v2374, %v2370
        %v4123 = vpack.c.b16 %v2375, %v2371
        %v4124 = vpack.c.b16 %v2376, %v2372
        %v4125 = vpack.c.b16 %v2381, %v2377
        %v4126 = vpack.c.b16 %v2382, %v2378
        %v4127 = vpack.c.b16 %v2383, %v2379
        %v4128 = vpack.c.b16 %v2384, %v2380
        %v4129 = vpack.c.b16 %v2389, %v2385
        %v4130 = vpack.c.b16 %v2390, %v2386
        %v4131 = vpack.c.b16 %v2391, %v2387
        %v4132 = vpack.c.b16 %v2392, %v2388
        %v4133 = vpack.c.b16 %v2397, %v2393
        %v4134 = vpack.c.b16 %v2398, %v2394
        %v4135 = vpack.c.b16 %v2399, %v2395
        %v4136 = vpack.c.b16 %v2400, %v2396
        %v4137 = vpack.c.b16 %v2405, %v2401
        %v4138 = vpack.c.b16 %v2406, %v2402
        %v4139 = vpack.c.b16 %v2407, %v2403
        %v4140 = vpack.c.b16 %v2408, %v2404
        %v4141 = vpack.c.b16 %v2413, %v2409
        %v4142 = vpack.c.b16 %v2414, %v2410
        %v4143 = vpack.c.b16 %v2415, %v2411
        %v4144 = vpack.c.b16 %v2416, %v2412
        %v4145 = vpack.c.b16 %v2421, %v2417
        %v4146 = vpack.c.b16 %v2422, %v2418
        %v4147 = vpack.c.b16 %v2423, %v2419
        %v4148 = vpack.c.b16 %v2424, %v2420
        %v4149 = vpack.c.b16 %v2429, %v2425
        %v4150 = vpack.c.b16 %v2430, %v2426
        %v4151 = vpack.c.b16 %v2431, %v2427
        %v4152 = vpack.c.b16 %v2432, %v2428
        %v4153 = vpack.c.b16 %v2437, %v2433
        %v4154 = vpack.c.b16 %v2438, %v2434
        %v4155 = vpack.c.b16 %v2439, %v2435
        %v4156 = vpack.c.b16 %v2440, %v2436
        %v4157 = vpack.c.b16 %v2445, %v2441
        %v4158 = vpack.c.b16 %v2446, %v2442
        %v4159 = vpack.c.b16 %v2447, %v2443
        %v4160 = vpack.c.b16 %v2448, %v2444
        %v4161 = vpack.c.b16 %v2453, %v2449
        %v4162 = vpack.c.b16 %v2454, %v2450
        %v4163 = vpack.c.b16 %v2455, %v2451
        %v4164 = vpack.c.b16 %v2456, %v2452
        %v4165 = vpack.c.b16 %v2461, %v2457
        %v4166 = vpack.c.b16 %v2462, %v2458
        %v4167 = vpack.c.b16 %v2463, %v2459
        %v4168 = vpack.c.b16 %v2464, %v2460
        %v4169 = vpack.c.b16 %v2469, %v2465
        %v4170 = vpack.c.b16 %v2470, %v2466
        %v4171 = vpack.c.b16 %v2471, %v2467
        %v4172 = vpack.c.b16 %v2472, %v2468
        %v4173 = vpack.c.b16 %v2477, %v2473
        %v4174 = vpack.c.b16 %v2478, %v2474
        %v4175 = vpack.c.b16 %v2479, %v2475
        %v4176 = vpack.c.b16 %v2480, %v2476
        %v4177 = vpack.c.b16 %v2485, %v2481
        %v4178 = vpack.c.b16 %v2486, %v2482
        %v4179 = vpack.c.b16 %v2487, %v2483
        %v4180 = vpack.c.b16 %v2488, %v2484
        %v4181 = vpack.c.b16 %v2493, %v2489
        %v4182 = vpack.c.b16 %v2494, %v2490
        %v4183 = vpack.c.b16 %v2495, %v2491
        %v4184 = vpack.c.b16 %v2496, %v2492
        %v4185 = vpack.c.b16 %v2501, %v2497
        %v4186 = vpack.c.b16 %v2502, %v2498
        %v4187 = vpack.c.b16 %v2503, %v2499
        %v4188 = vpack.c.b16 %v2504, %v2500
        %v4189 = vpack.c.b16 %v2509, %v2505
        %v4190 = vpack.c.b16 %v2510, %v2506
        %v4191 = vpack.c.b16 %v2511, %v2507
        %v4192 = vpack.c.b16 %v2512, %v2508
        %v4193 = vpack.c.b16 %v2517, %v2513
        %v4194 = vpack.c.b16 %v2518, %v2514
        %v4195 = vpack.c.b16 %v2519, %v2515
        %v4196 = vpack.c.b16 %v2520, %v2516
        %v4197 = vpack.c.b16 %v2525, %v2521
        %v4198 = vpack.c.b16 %v2526, %v2522
        %v4199 = vpack.c.b16 %v2527, %v2523
        %v4200 = vpack.c.b16 %v2528, %v2524
        %v4201 = vpack.c.b16 %v2533, %v2529
        %v4202 = vpack.c.b16 %v2534, %v2530
        %v4203 = vpack.c.b16 %v2535, %v2531
        %v4204 = vpack.c.b16 %v2536, %v2532
        %v4205 = vpack.c.b16 %v2541, %v2537
        %v4206 = vpack.c.b16 %v2542, %v2538
        %v4207 = vpack.c.b16 %v2543, %v2539
        %v4208 = vpack.c.b16 %v2544, %v2540
        %v4209 = vpack.c.b16 %v2549, %v2545
        %v4210 = vpack.c.b16 %v2550, %v2546
        %v4211 = vpack.c.b16 %v2551, %v2547
        %v4212 = vpack.c.b16 %v2552, %v2548
        %v4213 = vpack.c.b16 %v2557, %v2553
        %v4214 = vpack.c.b16 %v2558, %v2554
        %v4215 = vpack.c.b16 %v2559, %v2555
        %v4216 = vpack.c.b16 %v2560, %v2556
        %v4217 = vpack.c.b16 %v2565, %v2561
        %v4218 = vpack.c.b16 %v2566, %v2562
        %v4219 = vpack.c.b16 %v2567, %v2563
        %v4220 = vpack.c.b16 %v2568, %v2564
        %v4221 = vpack.c.b16 %v2573, %v2569
        %v4222 = vpack.c.b16 %v2574, %v2570
        %v4223 = vpack.c.b16 %v2575, %v2571
        %v4224 = vpack.c.b16 %v2576, %v2572
        %v4225 = vpack.c.b16 %v2581, %v2577
        %v4226 = vpack.c.b16 %v2582, %v2578
        %v4227 = vpack.c.b16 %v2583, %v2579
        %v4228 = vpack.c.b16 %v2584, %v2580
        %v4229 = vpack.c.b16 %v2589, %v2585
        %v4230 = vpack.c.b16 %v2590, %v2586
        %v4231 = vpack.c.b16 %v2591, %v2587
        %v4232 = vpack.c.b16 %v2592, %v2588
        %v4233 = vpack.c.b16 %v2597, %v2593
        %v4234 = vpack.c.b16 %v2598, %v2594
        %v4235 = vpack.c.b16 %v2599, %v2595
        %v4236 = vpack.c.b16 %v2600, %v2596
        %v4237 = vpack.c.b16 %v2605, %v2601
        %v4238 = vpack.c.b16 %v2606, %v2602
        %v4239 = vpack.c.b16 %v2607, %v2603
        %v4240 = vpack.c.b16 %v2608, %v2604
        %v4241 = vpack.c.b16 %v2613, %v2609
        %v4242 = vpack.c.b16 %v2614, %v2610
        %v4243 = vpack.c.b16 %v2615, %v2611
        %v4244 = vpack.c.b16 %v2616, %v2612
        %v4245 = vpack.c.b16 %v2621, %v2617
        %v4246 = vpack.c.b16 %v2622, %v2618
        %v4247 = vpack.c.b16 %v2623, %v2619
        %v4248 = vpack.c.b16 %v2624, %v2620
        %v4249 = vpack.c.b16 %v2629, %v2625
        %v4250 = vpack.c.b16 %v2630, %v2626
        %v4251 = vpack.c.b16 %v2631, %v2627
        %v4252 = vpack.c.b16 %v2632, %v2628
        %v4253 = vpack.c.b16 %v2637, %v2633
        %v4254 = vpack.c.b16 %v2638, %v2634
        %v4255 = vpack.c.b16 %v2639, %v2635
        %v4256 = vpack.c.b16 %v2640, %v2636
        %v4257 = vpack.c.b16 %v2645, %v2641
        %v4258 = vpack.c.b16 %v2646, %v2642
        %v4259 = vpack.c.b16 %v2647, %v2643
        %v4260 = vpack.c.b16 %v2648, %v2644
        %v4261 = vpack.c.b16 %v2653, %v2649
        %v4262 = vpack.c.b16 %v2654, %v2650
        %v4263 = vpack.c.b16 %v2655, %v2651
        %v4264 = vpack.c.b16 %v2656, %v2652
        %v4265 = vpack.c.b16 %v2661, %v2657
        %v4266 = vpack.c.b16 %v2662, %v2658
        %v4267 = vpack.c.b16 %v2663, %v2659
        %v4268 = vpack.c.b16 %v2664, %v2660
        %v4269 = vpack.c.b16 %v2669, %v2665
        %v4270 = vpack.c.b16 %v2670, %v2666
        %v4271 = vpack.c.b16 %v2671, %v2667
        %v4272 = vpack.c.b16 %v2672, %v2668
        %v4273 = vpack.c.b16 %v2677, %v2673
        %v4274 = vpack.c.b16 %v2678, %v2674
        %v4275 = vpack.c.b16 %v2679, %v2675
        %v4276 = vpack.c.b16 %v2680, %v2676
        %v4277 = vpack.c.b16 %v2685, %v2681
        %v4278 = vpack.c.b16 %v2686, %v2682
        %v4279 = vpack.c.b16 %v2687, %v2683
        %v4280 = vpack.c.b16 %v2688, %v2684
        %v4281 = vpack.c.b16 %v2693, %v2689
        %v4282 = vpack.c.b16 %v2694, %v2690
        %v4283 = vpack.c.b16 %v2695, %v2691
        %v4284 = vpack.c.b16 %v2696, %v2692
        %v4285 = vpack.c.b16 %v2701, %v2697
        %v4286 = vpack.c.b16 %v2702, %v2698
        %v4287 = vpack.c.b16 %v2703, %v2699
        %v4288 = vpack.c.b16 %v2704, %v2700
        %v4289 = vpack.c.b16 %v2709, %v2705
        %v4290 = vpack.c.b16 %v2710, %v2706
        %v4291 = vpack.c.b16 %v2711, %v2707
        %v4292 = vpack.c.b16 %v2712, %v2708
        %v4293 = vpack.c.b16 %v2717, %v2713
        %v4294 = vpack.c.b16 %v2718, %v2714
        %v4295 = vpack.c.b16 %v2719, %v2715
        %v4296 = vpack.c.b16 %v2720, %v2716
        %v4297 = vpack.c.b16 %v2725, %v2721
        %v4298 = vpack.c.b16 %v2726, %v2722
        %v4299 = vpack.c.b16 %v2727, %v2723
        %v4300 = vpack.c.b16 %v2728, %v2724
        %v4301 = vpack.c.b16 %v2733, %v2729
        %v4302 = vpack.c.b16 %v2734, %v2730
        %v4303 = vpack.c.b16 %v2735, %v2731
        %v4304 = vpack.c.b16 %v2736, %v2732
        %v4305 = vpack.c.b16 %v2741, %v2737
        %v4306 = vpack.c.b16 %v2742, %v2738
        %v4307 = vpack.c.b16 %v2743, %v2739
        %v4308 = vpack.c.b16 %v2744, %v2740
        %v4309 = vpack.c.b16 %v2749, %v2745
        %v4310 = vpack.c.b16 %v2750, %v2746
        %v4311 = vpack.c.b16 %v2751, %v2747
        %v4312 = vpack.c.b16 %v2752, %v2748
        %v4313 = vpack.c.b16 %v2757, %v2753
        %v4314 = vpack.c.b16 %v2758, %v2754
        %v4315 = vpack.c.b16 %v2759, %v2755
        %v4316 = vpack.c.b16 %v2760, %v2756
        %v4317 = vpack.c.b16 %v2765, %v2761
        %v4318 = vpack.c.b16 %v2766, %v2762
        %v4319 = vpack.c.b16 %v2767, %v2763
        %v4320 = vpack.c.b16 %v2768, %v2764
        %v4321 = vpack.c.b16 %v2773, %v2769
        %v4322 = vpack.c.b16 %v2774, %v2770
        %v4323 = vpack.c.b16 %v2775, %v2771
        %v4324 = vpack.c.b16 %v2776, %v2772
        %v4325 = vpack.c.b16 %v2781, %v2777
        %v4326 = vpack.c.b16 %v2782, %v2778
        %v4327 = vpack.c.b16 %v2783, %v2779
        %v4328 = vpack.c.b16 %v2784, %v2780
        %v4329 = vpack.c.b16 %v2789, %v2785
        %v4330 = vpack.c.b16 %v2790, %v2786
        %v4331 = vpack.c.b16 %v2791, %v2787
        %v4332 = vpack.c.b16 %v2792, %v2788
        %v4333 = vpack.c.b16 %v2797, %v2793
        %v4334 = vpack.c.b16 %v2798, %v2794
        %v4335 = vpack.c.b16 %v2799, %v2795
        %v4336 = vpack.c.b16 %v2800, %v2796
        %v4337 = vpack.c.b16 %v2805, %v2801
        %v4338 = vpack.c.b16 %v2806, %v2802
        %v4339 = vpack.c.b16 %v2807, %v2803
        %v4340 = vpack.c.b16 %v2808, %v2804
        %v4341 = vpack.c.b16 %v2813, %v2809
        %v4342 = vpack.c.b16 %v2814, %v2810
        %v4343 = vpack.c.b16 %v2815, %v2811
        %v4344 = vpack.c.b16 %v2816, %v2812
        %v4345 = vpack.c.b16 %v2821, %v2817
        %v4346 = vpack.c.b16 %v2822, %v2818
        %v4347 = vpack.c.b16 %v2823, %v2819
        %v4348 = vpack.c.b16 %v2824, %v2820
        %v4349 = vpack.c.b16 %v2829, %v2825
        %v4350 = vpack.c.b16 %v2830, %v2826
        %v4351 = vpack.c.b16 %v2831, %v2827
        %v4352 = vpack.c.b16 %v2832, %v2828
        %v4353 = vpack.c.b16 %v2837, %v2833
        %v4354 = vpack.c.b16 %v2838, %v2834
        %v4355 = vpack.c.b16 %v2839, %v2835
        %v4356 = vpack.c.b16 %v2840, %v2836
        %v4357 = vpack.c.b16 %v2845, %v2841
        %v4358 = vpack.c.b16 %v2846, %v2842
        %v4359 = vpack.c.b16 %v2847, %v2843
        %v4360 = vpack.c.b16 %v2848, %v2844
        %v4361 = vpack.c.b16 %v2853, %v2849
        %v4362 = vpack.c.b16 %v2854, %v2850
        %v4363 = vpack.c.b16 %v2855, %v2851
        %v4364 = vpack.c.b16 %v2856, %v2852
        %v4365 = vpack.c.b16 %v2861, %v2857
        %v4366 = vpack.c.b16 %v2862, %v2858
        %v4367 = vpack.c.b16 %v2863, %v2859
        %v4368 = vpack.c.b16 %v2864, %v2860
        %v4369 = vpack.c.b16 %v2869, %v2865
        %v4370 = vpack.c.b16 %v2870, %v2866
        %v4371 = vpack.c.b16 %v2871, %v2867
        %v4372 = vpack.c.b16 %v2872, %v2868
        %v4373 = vpack.c.b16 %v2877, %v2873
        %v4374 = vpack.c.b16 %v2878, %v2874
        %v4375 = vpack.c.b16 %v2879, %v2875
        %v4376 = vpack.c.b16 %v2880, %v2876
        %v4377 = vpack.c.b16 %v2885, %v2881
        %v4378 = vpack.c.b16 %v2886, %v2882
        %v4379 = vpack.c.b16 %v2887, %v2883
        %v4380 = vpack.c.b16 %v2888, %v2884
        %v4381 = vpack.c.b16 %v2893, %v2889
        %v4382 = vpack.c.b16 %v2894, %v2890
        %v4383 = vpack.c.b16 %v2895, %v2891
        %v4384 = vpack.c.b16 %v2896, %v2892
        %v4385 = vpack.c.b16 %v2901, %v2897
        %v4386 = vpack.c.b16 %v2902, %v2898
        %v4387 = vpack.c.b16 %v2903, %v2899
        %v4388 = vpack.c.b16 %v2904, %v2900
        %v4389 = vpack.c.b16 %v2909, %v2905
        %v4390 = vpack.c.b16 %v2910, %v2906
        %v4391 = vpack.c.b16 %v2911, %v2907
        %v4392 = vpack.c.b16 %v2912, %v2908
        %v4393 = vpack.c.b16 %v2917, %v2913
        %v4394 = vpack.c.b16 %v2918, %v2914
        %v4395 = vpack.c.b16 %v2919, %v2915
        %v4396 = vpack.c.b16 %v2920, %v2916
        %v4397 = vpack.c.b16 %v2925, %v2921
        %v4398 = vpack.c.b16 %v2926, %v2922
        %v4399 = vpack.c.b16 %v2927, %v2923
        %v4400 = vpack.c.b16 %v2928, %v2924
        %v4401 = vpack.c.b16 %v2933, %v2929
        %v4402 = vpack.c.b16 %v2934, %v2930
        %v4403 = vpack.c.b16 %v2935, %v2931
        %v4404 = vpack.c.b16 %v2936, %v2932
        %v4405 = vpack.c.b16 %v2941, %v2937
        %v4406 = vpack.c.b16 %v2942, %v2938
        %v4407 = vpack.c.b16 %v2943, %v2939
        %v4408 = vpack.c.b16 %v2944, %v2940
        %v4409 = vpack.c.b16 %v2949, %v2945
        %v4410 = vpack.c.b16 %v2950, %v2946
        %v4411 = vpack.c.b16 %v2951, %v2947
        %v4412 = vpack.c.b16 %v2952, %v2948
        %v4413 = vpack.c.b16 %v2957, %v2953
        %v4414 = vpack.c.b16 %v2958, %v2954
        %v4415 = vpack.c.b16 %v2959, %v2955
        %v4416 = vpack.c.b16 %v2960, %v2956
        %v4417 = vpack.c.b16 %v2965, %v2961
        %v4418 = vpack.c.b16 %v2966, %v2962
        %v4419 = vpack.c.b16 %v2967, %v2963
        %v4420 = vpack.c.b16 %v2968, %v2964
        %v4421 = vpack.c.b16 %v2973, %v2969
        %v4422 = vpack.c.b16 %v2974, %v2970
        %v4423 = vpack.c.b16 %v2975, %v2971
        %v4424 = vpack.c.b16 %v2976, %v2972
        %v4425 = vpack.c.b16 %v2981, %v2977
        %v4426 = vpack.c.b16 %v2982, %v2978
        %v4427 = vpack.c.b16 %v2983, %v2979
        %v4428 = vpack.c.b16 %v2984, %v2980
        %v4429 = vpack.c.b16 %v2989, %v2985
        %v4430 = vpack.c.b16 %v2990, %v2986
        %v4431 = vpack.c.b16 %v2991, %v2987
        %v4432 = vpack.c.b16 %v2992, %v2988
        %v4433 = vpack.c.b16 %v2997, %v2993
        %v4434 = vpack.c.b16 %v2998, %v2994
        %v4435 = vpack.c.b16 %v2999, %v2995
        %v4436 = vpack.c.b16 %v3000, %v2996
        %v4437 = vpack.c.b16 %v3005, %v3001
        %v4438 = vpack.c.b16 %v3006, %v3002
        %v4439 = vpack.c.b16 %v3007, %v3003
        %v4440 = vpack.c.b16 %v3008, %v3004
        %v4441 = vpack.c.b16 %v3013, %v3009
        %v4442 = vpack.c.b16 %v3014, %v3010
        %v4443 = vpack.c.b16 %v3015, %v3011
        %v4444 = vpack.c.b16 %v3016, %v3012
        %v4445 = vpack.c.b16 %v3021, %v3017
        %v4446 = vpack.c.b16 %v3022, %v3018
        %v4447 = vpack.c.b16 %v3023, %v3019
        %v4448 = vpack.c.b16 %v3024, %v3020
        %v4449 = vpack.c.b16 %v3029, %v3025
        %v4450 = vpack.c.b16 %v3030, %v3026
        %v4451 = vpack.c.b16 %v3031, %v3027
        %v4452 = vpack.c.b16 %v3032, %v3028
        %v4453 = vpack.c.b16 %v3037, %v3033
        %v4454 = vpack.c.b16 %v3038, %v3034
        %v4455 = vpack.c.b16 %v3039, %v3035
        %v4456 = vpack.c.b16 %v3040, %v3036
        %v4457 = vpack.c.b16 %v3045, %v3041
        %v4458 = vpack.c.b16 %v3046, %v3042
        %v4459 = vpack.c.b16 %v3047, %v3043
        %v4460 = vpack.c.b16 %v3048, %v3044
        %v4461 = vpack.c.b16 %v3053, %v3049
        %v4462 = vpack.c.b16 %v3054, %v3050
        %v4463 = vpack.c.b16 %v3055, %v3051
        %v4464 = vpack.c.b16 %v3056, %v3052
        %v4465 = vpack.c.b16 %v3061, %v3057
        %v4466 = vpack.c.b16 %v3062, %v3058
        %v4467 = vpack.c.b16 %v3063, %v3059
        %v4468 = vpack.c.b16 %v3064, %v3060
        %v4469 = vpack.c.b16 %v3069, %v3065
        %v4470 = vpack.c.b16 %v3070, %v3066
        %v4471 = vpack.c.b16 %v3071, %v3067
        %v4472 = vpack.c.b16 %v3072, %v3068
        %v4473 = vpack.c.b16 %v3077, %v3073
        %v4474 = vpack.c.b16 %v3078, %v3074
        %v4475 = vpack.c.b16 %v3079, %v3075
        %v4476 = vpack.c.b16 %v3080, %v3076
        %v4477 = vpack.c.b16 %v3085, %v3081
        %v4478 = vpack.c.b16 %v3086, %v3082
        %v4479 = vpack.c.b16 %v3087, %v3083
        %v4480 = vpack.c.b16 %v3088, %v3084
        %v4481 = vpack.c.b16 %v3093, %v3089
        %v4482 = vpack.c.b16 %v3094, %v3090
        %v4483 = vpack.c.b16 %v3095, %v3091
        %v4484 = vpack.c.b16 %v3096, %v3092
        %v4485 = vpack.c.b16 %v3101, %v3097
        %v4486 = vpack.c.b16 %v3102, %v3098
        %v4487 = vpack.c.b16 %v3103, %v3099
        %v4488 = vpack.c.b16 %v3104, %v3100
        %v4489 = vpack.c.b16 %v3109, %v3105
        %v4490 = vpack.c.b16 %v3110, %v3106
        %v4491 = vpack.c.b16 %v3111, %v3107
        %v4492 = vpack.c.b16 %v3112, %v3108
        %v4493 = vpack.c.b16 %v3117, %v3113
        %v4494 = vpack.c.b16 %v3118, %v3114
        %v4495 = vpack.c.b16 %v3119, %v3115
        %v4496 = vpack.c.b16 %v3120, %v3116
        %v4497 = vpack.c.b16 %v3125, %v3121
        %v4498 = vpack.c.b16 %v3126, %v3122
        %v4499 = vpack.c.b16 %v3127, %v3123
        %v4500 = vpack.c.b16 %v3128, %v3124
        %v4501 = vpack.c.b16 %v3133, %v3129
        %v4502 = vpack.c.b16 %v3134, %v3130
        %v4503 = vpack.c.b16 %v3135, %v3131
        %v4504 = vpack.c.b16 %v3136, %v3132
        %v4505 = vpack.c.b16 %v3141, %v3137
        %v4506 = vpack.c.b16 %v3142, %v3138
        %v4507 = vpack.c.b16 %v3143, %v3139
        %v4508 = vpack.c.b16 %v3144, %v3140
        %v4509 = vpack.c.b16 %v3149, %v3145
        %v4510 = vpack.c.b16 %v3150, %v3146
        %v4511 = vpack.c.b16 %v3151, %v3147
        %v4512 = vpack.c.b16 %v3152, %v3148
        %v4513 = vpack.c.b16 %v3157, %v3153
        %v4514 = vpack.c.b16 %v3158, %v3154
        %v4515 = vpack.c.b16 %v3159, %v3155
        %v4516 = vpack.c.b16 %v3160, %v3156
        %v4517 = vpack.c.b16 %v3165, %v3161
        %v4518 = vpack.c.b16 %v3166, %v3162
        %v4519 = vpack.c.b16 %v3167, %v3163
        %v4520 = vpack.c.b16 %v3168, %v3164
        %v4521 = vpack.c.b16 %v3173, %v3169
        %v4522 = vpack.c.b16 %v3174, %v3170
        %v4523 = vpack.c.b16 %v3175, %v3171
        %v4524 = vpack.c.b16 %v3176, %v3172
        %v4525 = vpack.c.b16 %v3181, %v3177
        %v4526 = vpack.c.b16 %v3182, %v3178
        %v4527 = vpack.c.b16 %v3183, %v3179
        %v4528 = vpack.c.b16 %v3184, %v3180
        %v4529 = vpack.c.b16 %v3189, %v3185
        %v4530 = vpack.c.b16 %v3190, %v3186
        %v4531 = vpack.c.b16 %v3191, %v3187
        %v4532 = vpack.c.b16 %v3192, %v3188
        %v4533 = vpack.c.b16 %v3197, %v3193
        %v4534 = vpack.c.b16 %v3198, %v3194
        %v4535 = vpack.c.b16 %v3199, %v3195
        %v4536 = vpack.c.b16 %v3200, %v3196
        %v4537 = vpack.c.b16 %v3205, %v3201
        %v4538 = vpack.c.b16 %v3206, %v3202
        %v4539 = vpack.c.b16 %v3207, %v3203
        %v4540 = vpack.c.b16 %v3208, %v3204
        %v4541 = vpack.c.b16 %v3213, %v3209
        %v4542 = vpack.c.b16 %v3214, %v3210
        %v4543 = vpack.c.b16 %v3215, %v3211
        %v4544 = vpack.c.b16 %v3216, %v3212
        %v4545 = vpack.c.b16 %v3221, %v3217
        %v4546 = vpack.c.b16 %v3222, %v3218
        %v4547 = vpack.c.b16 %v3223, %v3219
        %v4548 = vpack.c.b16 %v3224, %v3220
        %v4549 = vpack.c.b16 %v3229, %v3225
        %v4550 = vpack.c.b16 %v3230, %v3226
        %v4551 = vpack.c.b16 %v3231, %v3227
        %v4552 = vpack.c.b16 %v3232, %v3228
        %v4553 = vpack.c.b16 %v3237, %v3233
        %v4554 = vpack.c.b16 %v3238, %v3234
        %v4555 = vpack.c.b16 %v3239, %v3235
        %v4556 = vpack.c.b16 %v3240, %v3236
        %v4557 = vpack.c.b16 %v3245, %v3241
        %v4558 = vpack.c.b16 %v3246, %v3242
        %v4559 = vpack.c.b16 %v3247, %v3243
        %v4560 = vpack.c.b16 %v3248, %v3244
        %v4561 = vpack.c.b16 %v3253, %v3249
        %v4562 = vpack.c.b16 %v3254, %v3250
        %v4563 = vpack.c.b16 %v3255, %v3251
        %v4564 = vpack.c.b16 %v3256, %v3252
        %v4565 = vpack.c.b16 %v3261, %v3257
        %v4566 = vpack.c.b16 %v3262, %v3258
        %v4567 = vpack.c.b16 %v3263, %v3259
        %v4568 = vpack.c.b16 %v3264, %v3260
        %v4569 = vpack.c.b16 %v3269, %v3265
        %v4570 = vpack.c.b16 %v3270, %v3266
        %v4571 = vpack.c.b16 %v3271, %v3267
        %v4572 = vpack.c.b16 %v3272, %v3268
        %v4573 = vpack.c.b16 %v3277, %v3273
        %v4574 = vpack.c.b16 %v3278, %v3274
        %v4575 = vpack.c.b16 %v3279, %v3275
        %v4576 = vpack.c.b16 %v3280, %v3276
        %v4577 = vpack.c.b16 %v3285, %v3281
        %v4578 = vpack.c.b16 %v3286, %v3282
        %v4579 = vpack.c.b16 %v3287, %v3283
        %v4580 = vpack.c.b16 %v3288, %v3284
        %v4581 = vpack.c.b16 %v3293, %v3289
        %v4582 = vpack.c.b16 %v3294, %v3290
        %v4583 = vpack.c.b16 %v3295, %v3291
        %v4584 = vpack.c.b16 %v3296, %v3292
        %v4585 = vpack.c.b16 %v3301, %v3297
        %v4586 = vpack.c.b16 %v3302, %v3298
        %v4587 = vpack.c.b16 %v3303, %v3299
        %v4588 = vpack.c.b16 %v3304, %v3300
        %v4589 = vpack.c.b16 %v3309, %v3305
        %v4590 = vpack.c.b16 %v3310, %v3306
        %v4591 = vpack.c.b16 %v3311, %v3307
        %v4592 = vpack.c.b16 %v3312, %v3308
        %v4593 = vpack.c.b16 %v3317, %v3313
        %v4594 = vpack.c.b16 %v3318, %v3314
        %v4595 = vpack.c.b16 %v3319, %v3315
        %v4596 = vpack.c.b16 %v3320, %v3316
        %v4597 = vpack.c.b16 %v3325, %v3321
        %v4598 = vpack.c.b16 %v3326, %v3322
        %v4599 = vpack.c.b16 %v3327, %v3323
        %v4600 = vpack.c.b16 %v3328, %v3324
        %v4601 = vpack.c.b16 %v3333, %v3329
        %v4602 = vpack.c.b16 %v3334, %v3330
        %v4603 = vpack.c.b16 %v3335, %v3331
        %v4604 = vpack.c.b16 %v3336, %v3332
        %v4605 = vpack.c.b16 %v3341, %v3337
        %v4606 = vpack.c.b16 %v3342, %v3338
        %v4607 = vpack.c.b16 %v3343, %v3339
        %v4608 = vpack.c.b16 %v3344, %v3340
        %v4609 = vpack.c.b16 %v3349, %v3345
        %v4610 = vpack.c.b16 %v3350, %v3346
        %v4611 = vpack.c.b16 %v3351, %v3347
        %v4612 = vpack.c.b16 %v3352, %v3348
        %v4613 = vpack.c.b16 %v3357, %v3353
        %v4614 = vpack.c.b16 %v3358, %v3354
        %v4615 = vpack.c.b16 %v3359, %v3355
        %v4616 = vpack.c.b16 %v3360, %v3356
        %v4617 = vpack.c.b16 %v3365, %v3361
        %v4618 = vpack.c.b16 %v3366, %v3362
        %v4619 = vpack.c.b16 %v3367, %v3363
        %v4620 = vpack.c.b16 %v3368, %v3364
        %v4621 = vpack.c.b16 %v3373, %v3369
        %v4622 = vpack.c.b16 %v3374, %v3370
        %v4623 = vpack.c.b16 %v3375, %v3371
        %v4624 = vpack.c.b16 %v3376, %v3372
        %v4625 = vpack.c.b16 %v3381, %v3377
        %v4626 = vpack.c.b16 %v3382, %v3378
        %v4627 = vpack.c.b16 %v3383, %v3379
        %v4628 = vpack.c.b16 %v3384, %v3380
        %v4629 = vpack.c.b16 %v3389, %v3385
        %v4630 = vpack.c.b16 %v3390, %v3386
        %v4631 = vpack.c.b16 %v3391, %v3387
        %v4632 = vpack.c.b16 %v3392, %v3388
        %v4633 = vpack.c.b16 %v3397, %v3393
        %v4634 = vpack.c.b16 %v3398, %v3394
        %v4635 = vpack.c.b16 %v3399, %v3395
        %v4636 = vpack.c.b16 %v3400, %v3396
        %v4637 = vpack.c.b16 %v3405, %v3401
        %v4638 = vpack.c.b16 %v3406, %v3402
        %v4639 = vpack.c.b16 %v3407, %v3403
        %v4640 = vpack.c.b16 %v3408, %v3404
        %v4641 = vpack.c.b16 %v3413, %v3409
        %v4642 = vpack.c.b16 %v3414, %v3410
        %v4643 = vpack.c.b16 %v3415, %v3411
        %v4644 = vpack.c.b16 %v3416, %v3412
        %v4645 = vpack.c.b16 %v3421, %v3417
        %v4646 = vpack.c.b16 %v3422, %v3418
        %v4647 = vpack.c.b16 %v3423, %v3419
        %v4648 = vpack.c.b16 %v3424, %v3420
        %v4649 = vpack.c.b16 %v3429, %v3425
        %v4650 = vpack.c.b16 %v3430, %v3426
        %v4651 = vpack.c.b16 %v3431, %v3427
        %v4652 = vpack.c.b16 %v3432, %v3428
        %v4653 = vpack.c.b16 %v3437, %v3433
        %v4654 = vpack.c.b16 %v3438, %v3434
        %v4655 = vpack.c.b16 %v3439, %v3435
        %v4656 = vpack.c.b16 %v3440, %v3436
        %v4657 = vpack.c.b16 %v3445, %v3441
        %v4658 = vpack.c.b16 %v3446, %v3442
        %v4659 = vpack.c.b16 %v3447, %v3443
        %v4660 = vpack.c.b16 %v3448, %v3444
        %v4661 = vpack.c.b16 %v3453, %v3449
        %v4662 = vpack.c.b16 %v3454, %v3450
        %v4663 = vpack.c.b16 %v3455, %v3451
        %v4664 = vpack.c.b16 %v3456, %v3452
        %v4665 = vpack.c.b16 %v3461, %v3457
        %v4666 = vpack.c.b16 %v3462, %v3458
        %v4667 = vpack.c.b16 %v3463, %v3459
        %v4668 = vpack.c.b16 %v3464, %v3460
        %v4669 = vpack.c.b16 %v3469, %v3465
        %v4670 = vpack.c.b16 %v3470, %v3466
        %v4671 = vpack.c.b16 %v3471, %v3467
        %v4672 = vpack.c.b16 %v3472, %v3468
        %v4673 = vpack.c.b16 %v3477, %v3473
        %v4674 = vpack.c.b16 %v3478, %v3474
        %v4675 = vpack.c.b16 %v3479, %v3475
        %v4676 = vpack.c.b16 %v3480, %v3476
        %v4677 = vpack.c.b16 %v3485, %v3481
        %v4678 = vpack.c.b16 %v3486, %v3482
        %v4679 = vpack.c.b16 %v3487, %v3483
        %v4680 = vpack.c.b16 %v3488, %v3484
        %v4681 = vpack.c.b16 %v3493, %v3489
        %v4682 = vpack.c.b16 %v3494, %v3490
        %v4683 = vpack.c.b16 %v3495, %v3491
        %v4684 = vpack.c.b16 %v3496, %v3492
        %v4685 = vpack.c.b16 %v3501, %v3497
        %v4686 = vpack.c.b16 %v3502, %v3498
        %v4687 = vpack.c.b16 %v3503, %v3499
        %v4688 = vpack.c.b16 %v3504, %v3500
        %v4689 = vpack.c.b16 %v3509, %v3505
        %v4690 = vpack.c.b16 %v3510, %v3506
        %v4691 = vpack.c.b16 %v3511, %v3507
        %v4692 = vpack.c.b16 %v3512, %v3508
        %v4693 = vpack.c.b16 %v3517, %v3513
        %v4694 = vpack.c.b16 %v3518, %v3514
        %v4695 = vpack.c.b16 %v3519, %v3515
        %v4696 = vpack.c.b16 %v3520, %v3516
        %v4697 = vpack.c.b16 %v3525, %v3521
        %v4698 = vpack.c.b16 %v3526, %v3522
        %v4699 = vpack.c.b16 %v3527, %v3523
        %v4700 = vpack.c.b16 %v3528, %v3524
        %v4701 = vpack.c.b16 %v3533, %v3529
        %v4702 = vpack.c.b16 %v3534, %v3530
        %v4703 = vpack.c.b16 %v3535, %v3531
        %v4704 = vpack.c.b16 %v3536, %v3532
        %v4705 = vpack.c.b16 %v3541, %v3537
        %v4706 = vpack.c.b16 %v3542, %v3538
        %v4707 = vpack.c.b16 %v3543, %v3539
        %v4708 = vpack.c.b16 %v3544, %v3540
        %v4709 = vpack.c.b16 %v3549, %v3545
        %v4710 = vpack.c.b16 %v3550, %v3546
        %v4711 = vpack.c.b16 %v3551, %v3547
        %v4712 = vpack.c.b16 %v3552, %v3548
        %v4713 = vpack.c.b16 %v3557, %v3553
        %v4714 = vpack.c.b16 %v3558, %v3554
        %v4715 = vpack.c.b16 %v3559, %v3555
        %v4716 = vpack.c.b16 %v3560, %v3556
        %v4717 = vpack.c.b16 %v3565, %v3561
        %v4718 = vpack.c.b16 %v3566, %v3562
        %v4719 = vpack.c.b16 %v3567, %v3563
        %v4720 = vpack.c.b16 %v3568, %v3564
        %v4721 = vpack.c.b16 %v3573, %v3569
        %v4722 = vpack.c.b16 %v3574, %v3570
        %v4723 = vpack.c.b16 %v3575, %v3571
        %v4724 = vpack.c.b16 %v3576, %v3572
        %v4725 = vpack.c.b16 %v3581, %v3577
        %v4726 = vpack.c.b16 %v3582, %v3578
        %v4727 = vpack.c.b16 %v3583, %v3579
        %v4728 = vpack.c.b16 %v3584, %v3580
        %v4729 = vpack.c.b16 %v3589, %v3585
        %v4730 = vpack.c.b16 %v3590, %v3586
        %v4731 = vpack.c.b16 %v3591, %v3587
        %v4732 = vpack.c.b16 %v3592, %v3588
        %v4733 = vpack.c.b16 %v3597, %v3593
        %v4734 = vpack.c.b16 %v3598, %v3594
        %v4735 = vpack.c.b16 %v3599, %v3595
        %v4736 = vpack.c.b16 %v3600, %v3596
        %v4737 = vpack.c.b16 %v3605, %v3601
        %v4738 = vpack.c.b16 %v3606, %v3602
        %v4739 = vpack.c.b16 %v3607, %v3603
        %v4740 = vpack.c.b16 %v3608, %v3604
        %v4741 = vpack.c.b16 %v3613, %v3609
        %v4742 = vpack.c.b16 %v3614, %v3610
        %v4743 = vpack.c.b16 %v3615, %v3611
        %v4744 = vpack.c.b16 %v3616, %v3612
        %v4745 = vpack.c.b16 %v3621, %v3617
        %v4746 = vpack.c.b16 %v3622, %v3618
        %v4747 = vpack.c.b16 %v3623, %v3619
        %v4748 = vpack.c.b16 %v3624, %v3620
        %v4749 = vpack.c.b16 %v3629, %v3625
        %v4750 = vpack.c.b16 %v3630, %v3626
        %v4751 = vpack.c.b16 %v3631, %v3627
        %v4752 = vpack.c.b16 %v3632, %v3628
        %v4753 = vpack.c.b16 %v3637, %v3633
        %v4754 = vpack.c.b16 %v3638, %v3634
        %v4755 = vpack.c.b16 %v3639, %v3635
        %v4756 = vpack.c.b16 %v3640, %v3636
        %v4757 = vpack.c.b16 %v3645, %v3641
        %v4758 = vpack.c.b16 %v3646, %v3642
        %v4759 = vpack.c.b16 %v3647, %v3643
        %v4760 = vpack.c.b16 %v3648, %v3644
        %v4761 = vpack.c.b16 %v3653, %v3649
        %v4762 = vpack.c.b16 %v3654, %v3650
        %v4763 = vpack.c.b16 %v3655, %v3651
        %v4764 = vpack.c.b16 %v3656, %v3652
        %v4765 = vpack.c.b16 %v3661, %v3657
        %v4766 = vpack.c.b16 %v3662, %v3658
        %v4767 = vpack.c.b16 %v3663, %v3659
        %v4768 = vpack.c.b16 %v3664, %v3660
        %v4769 = vpack.c.b16 %v3669, %v3665
        %v4770 = vpack.c.b16 %v3670, %v3666
        %v4771 = vpack.c.b16 %v3671, %v3667
        %v4772 = vpack.c.b16 %v3672, %v3668
        %v4773 = vpack.c.b16 %v3677, %v3673
        %v4774 = vpack.c.b16 %v3678, %v3674
        %v4775 = vpack.c.b16 %v3679, %v3675
        %v4776 = vpack.c.b16 %v3680, %v3676
        %v4777 = vpack.c.b16 %v3685, %v3681
        %v4778 = vpack.c.b16 %v3686, %v3682
        %v4779 = vpack.c.b16 %v3687, %v3683
        %v4780 = vpack.c.b16 %v3688, %v3684
        %v4781 = vpack.c.b16 %v3693, %v3689
        %v4782 = vpack.c.b16 %v3694, %v3690
        %v4783 = vpack.c.b16 %v3695, %v3691
        %v4784 = vpack.c.b16 %v3696, %v3692
        %v4785 = vpack.c.b16 %v3701, %v3697
        %v4786 = vpack.c.b16 %v3702, %v3698
        %v4787 = vpack.c.b16 %v3703, %v3699
        %v4788 = vpack.c.b16 %v3704, %v3700
        %v4789 = vpack.c.b16 %v3709, %v3705
        %v4790 = vpack.c.b16 %v3710, %v3706
        %v4791 = vpack.c.b16 %v3711, %v3707
        %v4792 = vpack.c.b16 %v3712, %v3708
        %v4793 = vpack.c.b16 %v3717, %v3713
        %v4794 = vpack.c.b16 %v3718, %v3714
        %v4795 = vpack.c.b16 %v3719, %v3715
        %v4796 = vpack.c.b16 %v3720, %v3716
        %v4797 = vpack.c.b16 %v3725, %v3721
        %v4798 = vpack.c.b16 %v3726, %v3722
        %v4799 = vpack.c.b16 %v3727, %v3723
        %v4800 = vpack.c.b16 %v3728, %v3724
        %v4801 = vpack.c.b16 %v3733, %v3729
        %v4802 = vpack.c.b16 %v3734, %v3730
        %v4803 = vpack.c.b16 %v3735, %v3731
        %v4804 = vpack.c.b16 %v3736, %v3732
        %v4805 = vpack.c.b16 %v3741, %v3737
        %v4806 = vpack.c.b16 %v3742, %v3738
        %v4807 = vpack.c.b16 %v3743, %v3739
        %v4808 = vpack.c.b16 %v3744, %v3740
        %v4809 = vpack.c.b16 %v3749, %v3745
        %v4810 = vpack.c.b16 %v3750, %v3746
        %v4811 = vpack.c.b16 %v3751, %v3747
        %v4812 = vpack.c.b16 %v3752, %v3748
        %v4813 = vpack.c.b16 %v3757, %v3753
        %v4814 = vpack.c.b16 %v3758, %v3754
        %v4815 = vpack.c.b16 %v3759, %v3755
        %v4816 = vpack.c.b16 %v3760, %v3756
        %v4817 = vpack.c.b16 %v3765, %v3761
        %v4818 = vpack.c.b16 %v3766, %v3762
        %v4819 = vpack.c.b16 %v3767, %v3763
        %v4820 = vpack.c.b16 %v3768, %v3764
        %v4821 = vpack.c.b16 %v3773, %v3769
        %v4822 = vpack.c.b16 %v3774, %v3770
        %v4823 = vpack.c.b16 %v3775, %v3771
        %v4824 = vpack.c.b16 %v3776, %v3772
        %v4825 = vpack.c.b16 %v3781, %v3777
        %v4826 = vpack.c.b16 %v3782, %v3778
        %v4827 = vpack.c.b16 %v3783, %v3779
        %v4828 = vpack.c.b16 %v3784, %v3780
        %v4829 = vpack.c.b16 %v3789, %v3785
        %v4830 = vpack.c.b16 %v3790, %v3786
        %v4831 = vpack.c.b16 %v3791, %v3787
        %v4832 = vpack.c.b16 %v3792, %v3788
        %v4833 = vpack.c.b16 %v3797, %v3793
        %v4834 = vpack.c.b16 %v3798, %v3794
        %v4835 = vpack.c.b16 %v3799, %v3795
        %v4836 = vpack.c.b16 %v3800, %v3796
        %v4837 = vpack.c.b16 %v3805, %v3801
        %v4838 = vpack.c.b16 %v3806, %v3802
        %v4839 = vpack.c.b16 %v3807, %v3803
        %v4840 = vpack.c.b16 %v3808, %v3804
        %v4841 = vpack.c.b16 %v3813, %v3809
        %v4842 = vpack.c.b16 %v3814, %v3810
        %v4843 = vpack.c.b16 %v3815, %v3811
        %v4844 = vpack.c.b16 %v3816, %v3812
        %v4845 = vpack.c.b16 %v3821, %v3817
        %v4846 = vpack.c.b16 %v3822, %v3818
        %v4847 = vpack.c.b16 %v3823, %v3819
        %v4848 = vpack.c.b16 %v3824, %v3820
        %v4849 = vpack.c.b16 %v3829, %v3825
        %v4850 = vpack.c.b16 %v3830, %v3826
        %v4851 = vpack.c.b16 %v3831, %v3827
        %v4852 = vpack.c.b16 %v3832, %v3828
        %v4853 = vpack.c.b16 %v3837, %v3833
        %v4854 = vpack.c.b16 %v3838, %v3834
        %v4855 = vpack.c.b16 %v3839, %v3835
        %v4856 = vpack.c.b16 %v3840, %v3836
        %v4857 = vpack.c.b16 %v3845, %v3841
        %v4858 = vpack.c.b16 %v3846, %v3842
        %v4859 = vpack.c.b16 %v3847, %v3843
        %v4860 = vpack.c.b16 %v3848, %v3844
        %v4861 = vpack.c.b16 %v3853, %v3849
        %v4862 = vpack.c.b16 %v3854, %v3850
        %v4863 = vpack.c.b16 %v3855, %v3851
        %v4864 = vpack.c.b16 %v3856, %v3852
        %v4865 = vpack.c.b16 %v3861, %v3857
        %v4866 = vpack.c.b16 %v3862, %v3858
        %v4867 = vpack.c.b16 %v3863, %v3859
        %v4868 = vpack.c.b16 %v3864, %v3860
        %v4869 = vpack.c.b16 %v3869, %v3865
        %v4870 = vpack.c.b16 %v3870, %v3866
        %v4871 = vpack.c.b16 %v3871, %v3867
        %v4872 = vpack.c.b16 %v3872, %v3868
        %v4873 = vpack.c.b16 %v3877, %v3873
        %v4874 = vpack.c.b16 %v3878, %v3874
        %v4875 = vpack.c.b16 %v3879, %v3875
        %v4876 = vpack.c.b16 %v3880, %v3876
        %v4877 = vpack.c.b16 %v3885, %v3881
        %v4878 = vpack.c.b16 %v3886, %v3882
        %v4879 = vpack.c.b16 %v3887, %v3883
        %v4880 = vpack.c.b16 %v3888, %v3884
        %v4881 = vpack.c.b16 %v3893, %v3889
        %v4882 = vpack.c.b16 %v3894, %v3890
        %v4883 = vpack.c.b16 %v3895, %v3891
        %v4884 = vpack.c.b16 %v3896, %v3892
        %v4885 = vpack.c.b16 %v3901, %v3897
        %v4886 = vpack.c.b16 %v3902, %v3898
        %v4887 = vpack.c.b16 %v3903, %v3899
        %v4888 = vpack.c.b16 %v3904, %v3900
        %v4889 = vpack.c.b16 %v3909, %v3905
        %v4890 = vpack.c.b16 %v3910, %v3906
        %v4891 = vpack.c.b16 %v3911, %v3907
        %v4892 = vpack.c.b16 %v3912, %v3908
        %v4893 = vpack.c.b16 %v3917, %v3913
        %v4894 = vpack.c.b16 %v3918, %v3914
        %v4895 = vpack.c.b16 %v3919, %v3915
        %v4896 = vpack.c.b16 %v3920, %v3916
        %v4897 = vpack.c.b16 %v3925, %v3921
        %v4898 = vpack.c.b16 %v3926, %v3922
        %v4899 = vpack.c.b16 %v3927, %v3923
        %v4900 = vpack.c.b16 %v3928, %v3924
        %v4901 = vpack.c.b16 %v3933, %v3929
        %v4902 = vpack.c.b16 %v3934, %v3930
        %v4903 = vpack.c.b16 %v3935, %v3931
        %v4904 = vpack.c.b16 %v3936, %v3932
        %v4905 = vpack.c.b16 %v3941, %v3937
        %v4906 = vpack.c.b16 %v3942, %v3938
        %v4907 = vpack.c.b16 %v3943, %v3939
        %v4908 = vpack.c.b16 %v3944, %v3940
        %v4909 = vpack.c.b16 %v3949, %v3945
        %v4910 = vpack.c.b16 %v3950, %v3946
        %v4911 = vpack.c.b16 %v3951, %v3947
        %v4912 = vpack.c.b16 %v3952, %v3948
        %v4913 = vpack.c.b16 %v3957, %v3953
        %v4914 = vpack.c.b16 %v3958, %v3954
        %v4915 = vpack.c.b16 %v3959, %v3955
        %v4916 = vpack.c.b16 %v3960, %v3956
        %v4917 = vpack.c.b16 %v3965, %v3961
        %v4918 = vpack.c.b16 %v3966, %v3962
        %v4919 = vpack.c.b16 %v3967, %v3963
        %v4920 = vpack.c.b16 %v3968, %v3964
        %v4921 = vpack.c.b16 %v3973, %v3969
        %v4922 = vpack.c.b16 %v3974, %v3970
        %v4923 = vpack.c.b16 %v3975, %v3971
        %v4924 = vpack.c.b16 %v3976, %v3972
        %v4925 = vpack.c.b16 %v3981, %v3977
        %v4926 = vpack.c.b16 %v3982, %v3978
        %v4927 = vpack.c.b16 %v3983, %v3979
        %v4928 = vpack.c.b16 %v3984, %v3980
        %v4929 = vpack.c.b16 %v3989, %v3985
        %v4930 = vpack.c.b16 %v3990, %v3986
        %v4931 = vpack.c.b16 %v3991, %v3987
        %v4932 = vpack.c.b16 %v3992, %v3988
        %v4933 = vpack.c.b16 %v3997, %v3993
        %v4934 = vpack.c.b16 %v3998, %v3994
        %v4935 = vpack.c.b16 %v3999, %v3995
        %v4936 = vpack.c.b16 %v4000, %v3996
        %v4937 = vpack.c.b16 %v4005, %v4001
        %v4938 = vpack.c.b16 %v4006, %v4002
        %v4939 = vpack.c.b16 %v4007, %v4003
        %v4940 = vpack.c.b16 %v4008, %v4004
        %v4941 = vpack.c.b16 %v4013, %v4009
        %v4942 = vpack.c.b16 %v4014, %v4010
        %v4943 = vpack.c.b16 %v4015, %v4011
        %v4944 = vpack.c.b16 %v4016, %v4012
        %v4945 = vpack.c.b16 %v4021, %v4017
        %v4946 = vpack.c.b16 %v4022, %v4018
        %v4947 = vpack.c.b16 %v4023, %v4019
        %v4948 = vpack.c.b16 %v4024, %v4020
        %v4949 = vpack.c.b16 %v4029, %v4025
        %v4950 = vpack.c.b16 %v4030, %v4026
        %v4951 = vpack.c.b16 %v4031, %v4027
        %v4952 = vpack.c.b16 %v4032, %v4028
        %v4953 = vpack.c.b16 %v4037, %v4033
        %v4954 = vpack.c.b16 %v4038, %v4034
        %v4955 = vpack.c.b16 %v4039, %v4035
        %v4956 = vpack.c.b16 %v4040, %v4036
        %v4957 = vpack.c.b16 %v4045, %v4041
        %v4958 = vpack.c.b16 %v4046, %v4042
        %v4959 = vpack.c.b16 %v4047, %v4043
        %v4960 = vpack.c.b16 %v4048, %v4044
        %v4961 = vpack.c.b16 %v4053, %v4049
        %v4962 = vpack.c.b16 %v4054, %v4050
        %v4963 = vpack.c.b16 %v4055, %v4051
        %v4964 = vpack.c.b16 %v4056, %v4052
        %v4965 = vpack.c.b16 %v4061, %v4057
        %v4966 = vpack.c.b16 %v4062, %v4058
        %v4967 = vpack.c.b16 %v4063, %v4059
        %v4968 = vpack.c.b16 %v4064, %v4060
        %v4969 = vpack.c.b16 %v4069, %v4065
        %v4970 = vpack.c.b16 %v4070, %v4066
        %v4971 = vpack.c.b16 %v4071, %v4067
        %v4972 = vpack.c.b16 %v4072, %v4068
        %v4973 = vpack.c.b16 %v4077, %v4073
        %v4974 = vpack.c.b16 %v4078, %v4074
        %v4975 = vpack.c.b16 %v4079, %v4075
        %v4976 = vpack.c.b16 %v4080, %v4076
        %5873 = vmatprep.subr.bf16.mxu0 %v4110
        %5874 = vmatpush1.bf16.msra.mxu0 %v4109
        %5875 = vmatprep.subr.bf16.mxu0 %v4106
        %5876 = vmatpush1.bf16.msra.mxu0 %v4105
        %5877 = vmatprep.subr.bf16.mxu0 %v4102
        %5878 = vmatpush1.bf16.msra.mxu0 %v4101
        %5879 = vmatprep.subr.bf16.mxu0 %v4098
        %5880 = vmatpush1.bf16.msra.mxu0 %v4097
        %5881 = vmatprep.subr.bf16.mxu0 %v4094
        %5882 = vmatpush1.bf16.msra.mxu0 %v4093
        %5883 = vmatprep.subr.bf16.mxu0 %v4090
        %5884 = vmatpush1.bf16.msra.mxu0 %v4089
        %5885 = vmatprep.subr.bf16.mxu0 %v4086
        %5886 = vmatpush1.bf16.msra.mxu0 %v4085
        %5887 = vmatprep.subr.bf16.mxu0 %v4082
        %5888 = vmatpush1.bf16.msra.mxu0 %v4081
        %5889 = vmatprep.subr.bf16.mxu0 %v4142
        %5890 = vmatpush2.bf16.msra.mxu0 %v4141
        %5891 = vmatprep.subr.bf16.mxu0 %v4138
        %5892 = vmatpush2.bf16.msra.mxu0 %v4137
        %5893 = vmatprep.subr.bf16.mxu0 %v4134
        %5894 = vmatpush2.bf16.msra.mxu0 %v4133
        %5895 = vmatprep.subr.bf16.mxu0 %v4130
        %5896 = vmatpush2.bf16.msra.mxu0 %v4129
        %5897 = vmatprep.subr.bf16.mxu0 %v4126
        %5898 = vmatpush2.bf16.msra.mxu0 %v4125
        %5899 = vmatprep.subr.bf16.mxu0 %v4122
        %5900 = vmatpush2.bf16.msra.mxu0 %v4121
        %5901 = vmatprep.subr.bf16.mxu0 %v4118
        %5902 = vmatpush2.bf16.msra.mxu0 %v4117
        %5903 = vmatprep.subr.bf16.mxu0 %v4114
        %5904 = vmatpush2.bf16.msra.mxu0 %v4113
        %5905 = vmatprep.mubr.bf16.mxu0 %v1231
        %5906 = vmatmul.mubr.bf16.gmra.mxu0 %v1217
        %v5907 = vpop.f32.mrf.mxu0
        %v5908 = vadd.f32 0.0, %v5907
        %v5909 = vpop.f32.mrf.mxu0
        %v5910 = vadd.f32 0.0, %v5909
        %v5911 = vpop.f32.mrf.mxu0
        %v5912 = vpop.f32.mrf.mxu0
        %5913 = vdwg.mxu0
        %5914 = vmatprep.subr.bf16.mxu0 %v4174
        %5915 = vmatpush1.bf16.msra.mxu0 %v4173
        %5916 = vmatprep.subr.bf16.mxu0 %v4170
        %5917 = vmatpush1.bf16.msra.mxu0 %v4169
        %5918 = vmatprep.subr.bf16.mxu0 %v4166
        %5919 = vmatpush1.bf16.msra.mxu0 %v4165
        %5920 = vmatprep.subr.bf16.mxu0 %v4162
        %5921 = vmatpush1.bf16.msra.mxu0 %v4161
        %5922 = vmatprep.subr.bf16.mxu0 %v4158
        %5923 = vmatpush1.bf16.msra.mxu0 %v4157
        %5924 = vmatprep.subr.bf16.mxu0 %v4154
        %5925 = vmatpush1.bf16.msra.mxu0 %v4153
        %5926 = vmatprep.subr.bf16.mxu0 %v4150
        %5927 = vmatpush1.bf16.msra.mxu0 %v4149
        %5928 = vmatprep.subr.bf16.mxu0 %v4146
        %5929 = vmatpush1.bf16.msra.mxu0 %v4145
        %5930 = vmatprep.subr.bf16.mxu0 %v4206
        %5931 = vmatpush2.bf16.msra.mxu0 %v4205
        %5932 = vmatprep.subr.bf16.mxu0 %v4202
        %5933 = vmatpush2.bf16.msra.mxu0 %v4201
        %5934 = vmatprep.subr.bf16.mxu0 %v4198
        %5935 = vmatpush2.bf16.msra.mxu0 %v4197
        %5936 = vmatprep.subr.bf16.mxu0 %v4194
        %5937 = vmatpush2.bf16.msra.mxu0 %v4193
        %5938 = vmatprep.subr.bf16.mxu0 %v4190
        %5939 = vmatpush2.bf16.msra.mxu0 %v4189
        %5940 = vmatprep.subr.bf16.mxu0 %v4186
        %5941 = vmatpush2.bf16.msra.mxu0 %v4185
        %5942 = vmatprep.subr.bf16.mxu0 %v4182
        %5943 = vmatpush2.bf16.msra.mxu0 %v4181
        %5944 = vmatprep.subr.bf16.mxu0 %v4178
        %5945 = vmatpush2.bf16.msra.mxu0 %v4177
        %5946 = vmatprep.mubr.bf16.mxu0 %v1241
        %5947 = vmatmul.mubr.bf16.gmra.mxu0 %v1239
        %v5948 = vpop.f32.mrf.mxu0
        %v5949 = vadd.f32 %v5908, %v5948
        %v5950 = vpop.f32.mrf.mxu0
        %v5951 = vadd.f32 %v5910, %v5950
        %v5952 = vpop.f32.mrf.mxu0
        %v5953 = vpop.f32.mrf.mxu0
        %5954 = vdwg.mxu0
        %5955 = vmatprep.subr.bf16.mxu0 %v4238
        %5956 = vmatpush1.bf16.msra.mxu0 %v4237
        %5957 = vmatprep.subr.bf16.mxu0 %v4234
        %5958 = vmatpush1.bf16.msra.mxu0 %v4233
        %5959 = vmatprep.subr.bf16.mxu0 %v4230
        %5960 = vmatpush1.bf16.msra.mxu0 %v4229
        %5961 = vmatprep.subr.bf16.mxu0 %v4226
        %5962 = vmatpush1.bf16.msra.mxu0 %v4225
        %5963 = vmatprep.subr.bf16.mxu0 %v4222
        %5964 = vmatpush1.bf16.msra.mxu0 %v4221
        %5965 = vmatprep.subr.bf16.mxu0 %v4218
        %5966 = vmatpush1.bf16.msra.mxu0 %v4217
        %5967 = vmatprep.subr.bf16.mxu0 %v4214
        %5968 = vmatpush1.bf16.msra.mxu0 %v4213
        %5969 = vmatprep.subr.bf16.mxu0 %v4210
        %5970 = vmatpush1.bf16.msra.mxu0 %v4209
        %5971 = vmatprep.subr.bf16.mxu0 %v4270
        %5972 = vmatpush2.bf16.msra.mxu0 %v4269
        %5973 = vmatprep.subr.bf16.mxu0 %v4266
        %5974 = vmatpush2.bf16.msra.mxu0 %v4265
        %5975 = vmatprep.subr.bf16.mxu0 %v4262
        %5976 = vmatpush2.bf16.msra.mxu0 %v4261
        %5977 = vmatprep.subr.bf16.mxu0 %v4258
        %5978 = vmatpush2.bf16.msra.mxu0 %v4257
        %5979 = vmatprep.subr.bf16.mxu0 %v4254
        %5980 = vmatpush2.bf16.msra.mxu0 %v4253
        %5981 = vmatprep.subr.bf16.mxu0 %v4250
        %5982 = vmatpush2.bf16.msra.mxu0 %v4249
        %5983 = vmatprep.subr.bf16.mxu0 %v4246
        %5984 = vmatpush2.bf16.msra.mxu0 %v4245
        %5985 = vmatprep.subr.bf16.mxu0 %v4242
        %5986 = vmatpush2.bf16.msra.mxu0 %v4241
        %5987 = vmatprep.mubr.bf16.mxu0 %v1238
        %5988 = vmatmul.mubr.bf16.gmra.mxu0 %v1224
        %v5989 = vpop.f32.mrf.mxu0
        %v5990 = vadd.f32 %v5949, %v5989
        %v5991 = vpop.f32.mrf.mxu0
        %v5992 = vadd.f32 %v5951, %v5991
        %v5993 = vpop.f32.mrf.mxu0
        %v5994 = vpop.f32.mrf.mxu0
        %5995 = vdwg.mxu0
        %5996 = vmatprep.subr.bf16.mxu0 %v4302
        %5997 = vmatpush1.bf16.msra.mxu0 %v4301
        %5998 = vmatprep.subr.bf16.mxu0 %v4298
        %5999 = vmatpush1.bf16.msra.mxu0 %v4297
        %6000 = vmatprep.subr.bf16.mxu0 %v4294
        %6001 = vmatpush1.bf16.msra.mxu0 %v4293
        %6002 = vmatprep.subr.bf16.mxu0 %v4290
        %6003 = vmatpush1.bf16.msra.mxu0 %v4289
        %6004 = vmatprep.subr.bf16.mxu0 %v4286
        %6005 = vmatpush1.bf16.msra.mxu0 %v4285
        %6006 = vmatprep.subr.bf16.mxu0 %v4282
        %6007 = vmatpush1.bf16.msra.mxu0 %v4281
        %6008 = vmatprep.subr.bf16.mxu0 %v4278
        %6009 = vmatpush1.bf16.msra.mxu0 %v4277
        %6010 = vmatprep.subr.bf16.mxu0 %v4274
        %6011 = vmatpush1.bf16.msra.mxu0 %v4273
        %6012 = vmatprep.subr.bf16.mxu0 %v4334
        %6013 = vmatpush2.bf16.msra.mxu0 %v4333
        %6014 = vmatprep.subr.bf16.mxu0 %v4330
        %6015 = vmatpush2.bf16.msra.mxu0 %v4329
        %6016 = vmatprep.subr.bf16.mxu0 %v4326
        %6017 = vmatpush2.bf16.msra.mxu0 %v4325
        %6018 = vmatprep.subr.bf16.mxu0 %v4322
        %6019 = vmatpush2.bf16.msra.mxu0 %v4321
        %6020 = vmatprep.subr.bf16.mxu0 %v4318
        %6021 = vmatpush2.bf16.msra.mxu0 %v4317
        %6022 = vmatprep.subr.bf16.mxu0 %v4314
        %6023 = vmatpush2.bf16.msra.mxu0 %v4313
        %6024 = vmatprep.subr.bf16.mxu0 %v4310
        %6025 = vmatpush2.bf16.msra.mxu0 %v4309
        %6026 = vmatprep.subr.bf16.mxu0 %v4306
        %6027 = vmatpush2.bf16.msra.mxu0 %v4305
        %6028 = vmatprep.mubr.bf16.mxu0 %v1242
        %6029 = vmatmul.mubr.bf16.gmra.mxu0 %v1240
        %v6030 = vpop.f32.mrf.mxu0
        %v6031 = vadd.f32 %v5990, %v6030
        %v6032 = vpop.f32.mrf.mxu0
        %v6033 = vadd.f32 %v5992, %v6032
        %v6034 = vpop.f32.mrf.mxu0
        %v6035 = vpop.f32.mrf.mxu0
        %6036 = vdwg.mxu0
        %6037 = vmatprep.subr.bf16.mxu0 %v4366
        %6038 = vmatpush1.bf16.msra.mxu0 %v4365
        %6039 = vmatprep.subr.bf16.mxu0 %v4362
        %6040 = vmatpush1.bf16.msra.mxu0 %v4361
        %6041 = vmatprep.subr.bf16.mxu0 %v4358
        %6042 = vmatpush1.bf16.msra.mxu0 %v4357
        %6043 = vmatprep.subr.bf16.mxu0 %v4354
        %6044 = vmatpush1.bf16.msra.mxu0 %v4353
        %6045 = vmatprep.subr.bf16.mxu0 %v4350
        %6046 = vmatpush1.bf16.msra.mxu0 %v4349
        %6047 = vmatprep.subr.bf16.mxu0 %v4346
        %6048 = vmatpush1.bf16.msra.mxu0 %v4345
        %6049 = vmatprep.subr.bf16.mxu0 %v4342
        %6050 = vmatpush1.bf16.msra.mxu0 %v4341
        %6051 = vmatprep.subr.bf16.mxu0 %v4338
        %6052 = vmatpush1.bf16.msra.mxu0 %v4337
        %6053 = vmatprep.subr.bf16.mxu0 %v4398
        %6054 = vmatpush2.bf16.msra.mxu0 %v4397
        %6055 = vmatprep.subr.bf16.mxu0 %v4394
        %6056 = vmatpush2.bf16.msra.mxu0 %v4393
        %6057 = vmatprep.subr.bf16.mxu0 %v4390
        %6058 = vmatpush2.bf16.msra.mxu0 %v4389
        %6059 = vmatprep.subr.bf16.mxu0 %v4386
        %6060 = vmatpush2.bf16.msra.mxu0 %v4385
        %6061 = vmatprep.subr.bf16.mxu0 %v4382
        %6062 = vmatpush2.bf16.msra.mxu0 %v4381
        %6063 = vmatprep.subr.bf16.mxu0 %v4378
        %6064 = vmatpush2.bf16.msra.mxu0 %v4377
        %6065 = vmatprep.subr.bf16.mxu0 %v4374
        %6066 = vmatpush2.bf16.msra.mxu0 %v4373
        %6067 = vmatprep.subr.bf16.mxu0 %v4370
        %6068 = vmatpush2.bf16.msra.mxu0 %v4369
        %6069 = vmatprep.mubr.bf16.mxu0 %v1280
        %6070 = vmatmul.mubr.bf16.gmra.mxu0 %v1266
        %v6071 = vpop.f32.mrf.mxu0
        %v6072 = vadd.f32 %v6031, %v6071
        %v6073 = vpop.f32.mrf.mxu0
        %v6074 = vadd.f32 %v6033, %v6073
        %v6075 = vpop.f32.mrf.mxu0
        %v6076 = vpop.f32.mrf.mxu0
        %6077 = vdwg.mxu0
        %6078 = vmatprep.subr.bf16.mxu0 %v4430
        %6079 = vmatpush1.bf16.msra.mxu0 %v4429
        %6080 = vmatprep.subr.bf16.mxu0 %v4426
        %6081 = vmatpush1.bf16.msra.mxu0 %v4425
        %6082 = vmatprep.subr.bf16.mxu0 %v4422
        %6083 = vmatpush1.bf16.msra.mxu0 %v4421
        %6084 = vmatprep.subr.bf16.mxu0 %v4418
        %6085 = vmatpush1.bf16.msra.mxu0 %v4417
        %6086 = vmatprep.subr.bf16.mxu0 %v4414
        %6087 = vmatpush1.bf16.msra.mxu0 %v4413
        %6088 = vmatprep.subr.bf16.mxu0 %v4410
        %6089 = vmatpush1.bf16.msra.mxu0 %v4409
        %6090 = vmatprep.subr.bf16.mxu0 %v4406
        %6091 = vmatpush1.bf16.msra.mxu0 %v4405
        %6092 = vmatprep.subr.bf16.mxu0 %v4402
        %6093 = vmatpush1.bf16.msra.mxu0 %v4401
        %6094 = vmatprep.subr.bf16.mxu0 %v4462
        %6095 = vmatpush2.bf16.msra.mxu0 %v4461
        %6096 = vmatprep.subr.bf16.mxu0 %v4458
        %6097 = vmatpush2.bf16.msra.mxu0 %v4457
        %6098 = vmatprep.subr.bf16.mxu0 %v4454
        %6099 = vmatpush2.bf16.msra.mxu0 %v4453
        %6100 = vmatprep.subr.bf16.mxu0 %v4450
        %6101 = vmatpush2.bf16.msra.mxu0 %v4449
        %6102 = vmatprep.subr.bf16.mxu0 %v4446
        %6103 = vmatpush2.bf16.msra.mxu0 %v4445
        %6104 = vmatprep.subr.bf16.mxu0 %v4442
        %6105 = vmatpush2.bf16.msra.mxu0 %v4441
        %6106 = vmatprep.subr.bf16.mxu0 %v4438
        %6107 = vmatpush2.bf16.msra.mxu0 %v4437
        %6108 = vmatprep.subr.bf16.mxu0 %v4434
        %6109 = vmatpush2.bf16.msra.mxu0 %v4433
        %6110 = vmatprep.mubr.bf16.mxu0 %v1290
        %6111 = vmatmul.mubr.bf16.gmra.mxu0 %v1288
        %v6112 = vpop.f32.mrf.mxu0
        %v6113 = vadd.f32 %v6072, %v6112
        %v6114 = vpop.f32.mrf.mxu0
        %v6115 = vadd.f32 %v6074, %v6114
        %v6116 = vpop.f32.mrf.mxu0
        %v6117 = vpop.f32.mrf.mxu0
        %6118 = vdwg.mxu0
        %6119 = vmatprep.subr.bf16.mxu0 %v4494
        %6120 = vmatpush1.bf16.msra.mxu0 %v4493
        %6121 = vmatprep.subr.bf16.mxu0 %v4490
        %6122 = vmatpush1.bf16.msra.mxu0 %v4489
        %6123 = vmatprep.subr.bf16.mxu0 %v4486
        %6124 = vmatpush1.bf16.msra.mxu0 %v4485
        %6125 = vmatprep.subr.bf16.mxu0 %v4482
        %6126 = vmatpush1.bf16.msra.mxu0 %v4481
        %6127 = vmatprep.subr.bf16.mxu0 %v4478
        %6128 = vmatpush1.bf16.msra.mxu0 %v4477
        %6129 = vmatprep.subr.bf16.mxu0 %v4474
        %6130 = vmatpush1.bf16.msra.mxu0 %v4473
        %6131 = vmatprep.subr.bf16.mxu0 %v4470
        %6132 = vmatpush1.bf16.msra.mxu0 %v4469
        %6133 = vmatprep.subr.bf16.mxu0 %v4466
        %6134 = vmatpush1.bf16.msra.mxu0 %v4465
        %6135 = vmatprep.subr.bf16.mxu0 %v4526
        %6136 = vmatpush2.bf16.msra.mxu0 %v4525
        %6137 = vmatprep.subr.bf16.mxu0 %v4522
        %6138 = vmatpush2.bf16.msra.mxu0 %v4521
        %6139 = vmatprep.subr.bf16.mxu0 %v4518
        %6140 = vmatpush2.bf16.msra.mxu0 %v4517
        %6141 = vmatprep.subr.bf16.mxu0 %v4514
        %6142 = vmatpush2.bf16.msra.mxu0 %v4513
        %6143 = vmatprep.subr.bf16.mxu0 %v4510
        %6144 = vmatpush2.bf16.msra.mxu0 %v4509
        %6145 = vmatprep.subr.bf16.mxu0 %v4506
        %6146 = vmatpush2.bf16.msra.mxu0 %v4505
        %6147 = vmatprep.subr.bf16.mxu0 %v4502
        %6148 = vmatpush2.bf16.msra.mxu0 %v4501
        %6149 = vmatprep.subr.bf16.mxu0 %v4498
        %6150 = vmatpush2.bf16.msra.mxu0 %v4497
        %6151 = vmatprep.mubr.bf16.mxu0 %v1287
        %6152 = vmatmul.mubr.bf16.gmra.mxu0 %v1273
        %v6153 = vpop.f32.mrf.mxu0
        %v6154 = vadd.f32 %v6113, %v6153
        %v6155 = vpop.f32.mrf.mxu0
        %v6156 = vadd.f32 %v6115, %v6155
        %v6157 = vpop.f32.mrf.mxu0
        %v6158 = vpop.f32.mrf.mxu0
        %6159 = vdwg.mxu0
        %6160 = vmatprep.subr.bf16.mxu0 %v4558
        %6161 = vmatpush1.bf16.msra.mxu0 %v4557
        %6162 = vmatprep.subr.bf16.mxu0 %v4554
        %6163 = vmatpush1.bf16.msra.mxu0 %v4553
        %6164 = vmatprep.subr.bf16.mxu0 %v4550
        %6165 = vmatpush1.bf16.msra.mxu0 %v4549
        %6166 = vmatprep.subr.bf16.mxu0 %v4546
        %6167 = vmatpush1.bf16.msra.mxu0 %v4545
        %6168 = vmatprep.subr.bf16.mxu0 %v4542
        %6169 = vmatpush1.bf16.msra.mxu0 %v4541
        %6170 = vmatprep.subr.bf16.mxu0 %v4538
        %6171 = vmatpush1.bf16.msra.mxu0 %v4537
        %6172 = vmatprep.subr.bf16.mxu0 %v4534
        %6173 = vmatpush1.bf16.msra.mxu0 %v4533
        %6174 = vmatprep.subr.bf16.mxu0 %v4530
        %6175 = vmatpush1.bf16.msra.mxu0 %v4529
        %6176 = vmatprep.subr.bf16.mxu0 %v4590
        %6177 = vmatpush2.bf16.msra.mxu0 %v4589
        %6178 = vmatprep.subr.bf16.mxu0 %v4586
        %6179 = vmatpush2.bf16.msra.mxu0 %v4585
        %6180 = vmatprep.subr.bf16.mxu0 %v4582
        %6181 = vmatpush2.bf16.msra.mxu0 %v4581
        %6182 = vmatprep.subr.bf16.mxu0 %v4578
        %6183 = vmatpush2.bf16.msra.mxu0 %v4577
        %6184 = vmatprep.subr.bf16.mxu0 %v4574
        %6185 = vmatpush2.bf16.msra.mxu0 %v4573
        %6186 = vmatprep.subr.bf16.mxu0 %v4570
        %6187 = vmatpush2.bf16.msra.mxu0 %v4569
        %6188 = vmatprep.subr.bf16.mxu0 %v4566
        %6189 = vmatpush2.bf16.msra.mxu0 %v4565
        %6190 = vmatprep.subr.bf16.mxu0 %v4562
        %6191 = vmatpush2.bf16.msra.mxu0 %v4561
        %6192 = vmatprep.mubr.bf16.mxu0 %v1291
        %6193 = vmatmul.mubr.bf16.gmra.mxu0 %v1289
        %v6194 = vpop.f32.mrf.mxu0
        %v6195 = vadd.f32 %v6154, %v6194
        %v6196 = vpop.f32.mrf.mxu0
        %v6197 = vadd.f32 %v6156, %v6196
        %v6198 = vpop.f32.mrf.mxu0
        %v6199 = vpop.f32.mrf.mxu0
        %6200 = vdwg.mxu0
        %6201 = vmatprep.subr.bf16.mxu0 %v4622
        %6202 = vmatpush1.bf16.msra.mxu0 %v4621
        %6203 = vmatprep.subr.bf16.mxu0 %v4618
        %6204 = vmatpush1.bf16.msra.mxu0 %v4617
        %6205 = vmatprep.subr.bf16.mxu0 %v4614
        %6206 = vmatpush1.bf16.msra.mxu0 %v4613
        %6207 = vmatprep.subr.bf16.mxu0 %v4610
        %6208 = vmatpush1.bf16.msra.mxu0 %v4609
        %6209 = vmatprep.subr.bf16.mxu0 %v4606
        %6210 = vmatpush1.bf16.msra.mxu0 %v4605
        %6211 = vmatprep.subr.bf16.mxu0 %v4602
        %6212 = vmatpush1.bf16.msra.mxu0 %v4601
        %6213 = vmatprep.subr.bf16.mxu0 %v4598
        %6214 = vmatpush1.bf16.msra.mxu0 %v4597
        %6215 = vmatprep.subr.bf16.mxu0 %v4594
        %6216 = vmatpush1.bf16.msra.mxu0 %v4593
        %6217 = vmatprep.subr.bf16.mxu0 %v4654
        %6218 = vmatpush2.bf16.msra.mxu0 %v4653
        %6219 = vmatprep.subr.bf16.mxu0 %v4650
        %6220 = vmatpush2.bf16.msra.mxu0 %v4649
        %6221 = vmatprep.subr.bf16.mxu0 %v4646
        %6222 = vmatpush2.bf16.msra.mxu0 %v4645
        %6223 = vmatprep.subr.bf16.mxu0 %v4642
        %6224 = vmatpush2.bf16.msra.mxu0 %v4641
        %6225 = vmatprep.subr.bf16.mxu0 %v4638
        %6226 = vmatpush2.bf16.msra.mxu0 %v4637
        %6227 = vmatprep.subr.bf16.mxu0 %v4634
        %6228 = vmatpush2.bf16.msra.mxu0 %v4633
        %6229 = vmatprep.subr.bf16.mxu0 %v4630
        %6230 = vmatpush2.bf16.msra.mxu0 %v4629
        %6231 = vmatprep.subr.bf16.mxu0 %v4626
        %6232 = vmatpush2.bf16.msra.mxu0 %v4625
        %6233 = vmatprep.mubr.bf16.mxu0 %v1329
        %6234 = vmatmul.mubr.bf16.gmra.mxu0 %v1315
        %v6235 = vpop.f32.mrf.mxu0
        %v6236 = vadd.f32 %v6195, %v6235
        %v6237 = vpop.f32.mrf.mxu0
        %v6238 = vadd.f32 %v6197, %v6237
        %v6239 = vpop.f32.mrf.mxu0
        %v6240 = vpop.f32.mrf.mxu0
        %6241 = vdwg.mxu0
        %6242 = vmatprep.subr.bf16.mxu0 %v4686
        %6243 = vmatpush1.bf16.msra.mxu0 %v4685
        %6244 = vmatprep.subr.bf16.mxu0 %v4682
        %6245 = vmatpush1.bf16.msra.mxu0 %v4681
        %6246 = vmatprep.subr.bf16.mxu0 %v4678
        %6247 = vmatpush1.bf16.msra.mxu0 %v4677
        %6248 = vmatprep.subr.bf16.mxu0 %v4674
        %6249 = vmatpush1.bf16.msra.mxu0 %v4673
        %6250 = vmatprep.subr.bf16.mxu0 %v4670
        %6251 = vmatpush1.bf16.msra.mxu0 %v4669
        %6252 = vmatprep.subr.bf16.mxu0 %v4666
        %6253 = vmatpush1.bf16.msra.mxu0 %v4665
        %6254 = vmatprep.subr.bf16.mxu0 %v4662
        %6255 = vmatpush1.bf16.msra.mxu0 %v4661
        %6256 = vmatprep.subr.bf16.mxu0 %v4658
        %6257 = vmatpush1.bf16.msra.mxu0 %v4657
        %6258 = vmatprep.subr.bf16.mxu0 %v4718
        %6259 = vmatpush2.bf16.msra.mxu0 %v4717
        %6260 = vmatprep.subr.bf16.mxu0 %v4714
        %6261 = vmatpush2.bf16.msra.mxu0 %v4713
        %6262 = vmatprep.subr.bf16.mxu0 %v4710
        %6263 = vmatpush2.bf16.msra.mxu0 %v4709
        %6264 = vmatprep.subr.bf16.mxu0 %v4706
        %6265 = vmatpush2.bf16.msra.mxu0 %v4705
        %6266 = vmatprep.subr.bf16.mxu0 %v4702
        %6267 = vmatpush2.bf16.msra.mxu0 %v4701
        %6268 = vmatprep.subr.bf16.mxu0 %v4698
        %6269 = vmatpush2.bf16.msra.mxu0 %v4697
        %6270 = vmatprep.subr.bf16.mxu0 %v4694
        %6271 = vmatpush2.bf16.msra.mxu0 %v4693
        %6272 = vmatprep.subr.bf16.mxu0 %v4690
        %6273 = vmatpush2.bf16.msra.mxu0 %v4689
        %6274 = vmatprep.mubr.bf16.mxu0 %v1339
        %6275 = vmatmul.mubr.bf16.gmra.mxu0 %v1337
        %v6276 = vpop.f32.mrf.mxu0
        %v6277 = vadd.f32 %v6236, %v6276
        %v6278 = vpop.f32.mrf.mxu0
        %v6279 = vadd.f32 %v6238, %v6278
        %v6280 = vpop.f32.mrf.mxu0
        %v6281 = vpop.f32.mrf.mxu0
        %6282 = vdwg.mxu0
        %6283 = vmatprep.subr.bf16.mxu0 %v4750
        %6284 = vmatpush1.bf16.msra.mxu0 %v4749
        %6285 = vmatprep.subr.bf16.mxu0 %v4746
        %6286 = vmatpush1.bf16.msra.mxu0 %v4745
        %6287 = vmatprep.subr.bf16.mxu0 %v4742
        %6288 = vmatpush1.bf16.msra.mxu0 %v4741
        %6289 = vmatprep.subr.bf16.mxu0 %v4738
        %6290 = vmatpush1.bf16.msra.mxu0 %v4737
        %6291 = vmatprep.subr.bf16.mxu0 %v4734
        %6292 = vmatpush1.bf16.msra.mxu0 %v4733
        %6293 = vmatprep.subr.bf16.mxu0 %v4730
        %6294 = vmatpush1.bf16.msra.mxu0 %v4729
        %6295 = vmatprep.subr.bf16.mxu0 %v4726
        %6296 = vmatpush1.bf16.msra.mxu0 %v4725
        %6297 = vmatprep.subr.bf16.mxu0 %v4722
        %6298 = vmatpush1.bf16.msra.mxu0 %v4721
        %6299 = vmatprep.subr.bf16.mxu0 %v4782
        %6300 = vmatpush2.bf16.msra.mxu0 %v4781
        %6301 = vmatprep.subr.bf16.mxu0 %v4778
        %6302 = vmatpush2.bf16.msra.mxu0 %v4777
        %6303 = vmatprep.subr.bf16.mxu0 %v4774
        %6304 = vmatpush2.bf16.msra.mxu0 %v4773
        %6305 = vmatprep.subr.bf16.mxu0 %v4770
        %6306 = vmatpush2.bf16.msra.mxu0 %v4769
        %6307 = vmatprep.subr.bf16.mxu0 %v4766
        %6308 = vmatpush2.bf16.msra.mxu0 %v4765
        %6309 = vmatprep.subr.bf16.mxu0 %v4762
        %6310 = vmatpush2.bf16.msra.mxu0 %v4761
        %6311 = vmatprep.subr.bf16.mxu0 %v4758
        %6312 = vmatpush2.bf16.msra.mxu0 %v4757
        %6313 = vmatprep.subr.bf16.mxu0 %v4754
        %6314 = vmatpush2.bf16.msra.mxu0 %v4753
        %6315 = vmatprep.mubr.bf16.mxu0 %v1336
        %6316 = vmatmul.mubr.bf16.gmra.mxu0 %v1322
        %v6317 = vpop.f32.mrf.mxu0
        %v6318 = vadd.f32 %v6277, %v6317
        %v6319 = vpop.f32.mrf.mxu0
        %v6320 = vadd.f32 %v6279, %v6319
        %v6321 = vpop.f32.mrf.mxu0
        %v6322 = vpop.f32.mrf.mxu0
        %6323 = vdwg.mxu0
        %6324 = vmatprep.subr.bf16.mxu0 %v4814
        %6325 = vmatpush1.bf16.msra.mxu0 %v4813
        %6326 = vmatprep.subr.bf16.mxu0 %v4810
        %6327 = vmatpush1.bf16.msra.mxu0 %v4809
        %6328 = vmatprep.subr.bf16.mxu0 %v4806
        %6329 = vmatpush1.bf16.msra.mxu0 %v4805
        %6330 = vmatprep.subr.bf16.mxu0 %v4802
        %6331 = vmatpush1.bf16.msra.mxu0 %v4801
        %6332 = vmatprep.subr.bf16.mxu0 %v4798
        %6333 = vmatpush1.bf16.msra.mxu0 %v4797
        %6334 = vmatprep.subr.bf16.mxu0 %v4794
        %6335 = vmatpush1.bf16.msra.mxu0 %v4793
        %6336 = vmatprep.subr.bf16.mxu0 %v4790
        %6337 = vmatpush1.bf16.msra.mxu0 %v4789
        %6338 = vmatprep.subr.bf16.mxu0 %v4786
        %6339 = vmatpush1.bf16.msra.mxu0 %v4785
        %6340 = vmatprep.subr.bf16.mxu0 %v4846
        %6341 = vmatpush2.bf16.msra.mxu0 %v4845
        %6342 = vmatprep.subr.bf16.mxu0 %v4842
        %6343 = vmatpush2.bf16.msra.mxu0 %v4841
        %6344 = vmatprep.subr.bf16.mxu0 %v4838
        %6345 = vmatpush2.bf16.msra.mxu0 %v4837
        %6346 = vmatprep.subr.bf16.mxu0 %v4834
        %6347 = vmatpush2.bf16.msra.mxu0 %v4833
        %6348 = vmatprep.subr.bf16.mxu0 %v4830
        %6349 = vmatpush2.bf16.msra.mxu0 %v4829
        %6350 = vmatprep.subr.bf16.mxu0 %v4826
        %6351 = vmatpush2.bf16.msra.mxu0 %v4825
        %6352 = vmatprep.subr.bf16.mxu0 %v4822
        %6353 = vmatpush2.bf16.msra.mxu0 %v4821
        %6354 = vmatprep.subr.bf16.mxu0 %v4818
        %6355 = vmatpush2.bf16.msra.mxu0 %v4817
        %6356 = vmatprep.mubr.bf16.mxu0 %v1340
        %6357 = vmatmul.mubr.bf16.gmra.mxu0 %v1338
        %v6358 = vpop.f32.mrf.mxu0
        %v6359 = vadd.f32 %v6318, %v6358
        %v6360 = vpop.f32.mrf.mxu0
        %v6361 = vadd.f32 %v6320, %v6360
        %v6362 = vpop.f32.mrf.mxu0
        %v6363 = vpop.f32.mrf.mxu0
        %6364 = vdwg.mxu0
        %6365 = vmatprep.subr.bf16.mxu0 %v4878
        %6366 = vmatpush1.bf16.msra.mxu0 %v4877
        %6367 = vmatprep.subr.bf16.mxu0 %v4874
        %6368 = vmatpush1.bf16.msra.mxu0 %v4873
        %6369 = vmatprep.subr.bf16.mxu0 %v4870
        %6370 = vmatpush1.bf16.msra.mxu0 %v4869
        %6371 = vmatprep.subr.bf16.mxu0 %v4866
        %6372 = vmatpush1.bf16.msra.mxu0 %v4865
        %6373 = vmatprep.subr.bf16.mxu0 %v4862
        %6374 = vmatpush1.bf16.msra.mxu0 %v4861
        %6375 = vmatprep.subr.bf16.mxu0 %v4858
        %6376 = vmatpush1.bf16.msra.mxu0 %v4857
        %6377 = vmatprep.subr.bf16.mxu0 %v4854
        %6378 = vmatpush1.bf16.msra.mxu0 %v4853
        %6379 = vmatprep.subr.bf16.mxu0 %v4850
        %6380 = vmatpush1.bf16.msra.mxu0 %v4849
        %6381 = vmatprep.subr.bf16.mxu0 %v4910
        %6382 = vmatpush2.bf16.msra.mxu0 %v4909
        %6383 = vmatprep.subr.bf16.mxu0 %v4906
        %6384 = vmatpush2.bf16.msra.mxu0 %v4905
        %6385 = vmatprep.subr.bf16.mxu0 %v4902
        %6386 = vmatpush2.bf16.msra.mxu0 %v4901
        %6387 = vmatprep.subr.bf16.mxu0 %v4898
        %6388 = vmatpush2.bf16.msra.mxu0 %v4897
        %6389 = vmatprep.subr.bf16.mxu0 %v4894
        %6390 = vmatpush2.bf16.msra.mxu0 %v4893
        %6391 = vmatprep.subr.bf16.mxu0 %v4890
        %6392 = vmatpush2.bf16.msra.mxu0 %v4889
        %6393 = vmatprep.subr.bf16.mxu0 %v4886
        %6394 = vmatpush2.bf16.msra.mxu0 %v4885
        %6395 = vmatprep.subr.bf16.mxu0 %v4882
        %6396 = vmatpush2.bf16.msra.mxu0 %v4881
        %6397 = vmatprep.mubr.bf16.mxu0 %v1362
        %6398 = vmatmul.mubr.bf16.gmra.mxu0 %v1355
        %v6399 = vpop.f32.mrf.mxu0
        %v6400 = vadd.f32 %v6359, %v6399
        %v6401 = vpop.f32.mrf.mxu0
        %v6402 = vadd.f32 %v6361, %v6401
        %v6403 = vpop.f32.mrf.mxu0
        %v6404 = vpop.f32.mrf.mxu0
        %6405 = vdwg.mxu0
        %6406 = vmatprep.subr.bf16.mxu0 %v4942
        %6407 = vmatpush1.bf16.msra.mxu0 %v4941
        %6408 = vmatprep.subr.bf16.mxu0 %v4938
        %6409 = vmatpush1.bf16.msra.mxu0 %v4937
        %6410 = vmatprep.subr.bf16.mxu0 %v4934
        %6411 = vmatpush1.bf16.msra.mxu0 %v4933
        %6412 = vmatprep.subr.bf16.mxu0 %v4930
        %6413 = vmatpush1.bf16.msra.mxu0 %v4929
        %6414 = vmatprep.subr.bf16.mxu0 %v4926
        %6415 = vmatpush1.bf16.msra.mxu0 %v4925
        %6416 = vmatprep.subr.bf16.mxu0 %v4922
        %6417 = vmatpush1.bf16.msra.mxu0 %v4921
        %6418 = vmatprep.subr.bf16.mxu0 %v4918
        %6419 = vmatpush1.bf16.msra.mxu0 %v4917
        %6420 = vmatprep.subr.bf16.mxu0 %v4914
        %6421 = vmatpush1.bf16.msra.mxu0 %v4913
        %6422 = vmatprep.subr.bf16.mxu0 %v4974
        %6423 = vmatpush2.bf16.msra.mxu0 %v4973
        %6424 = vmatprep.subr.bf16.mxu0 %v4970
        %6425 = vmatpush2.bf16.msra.mxu0 %v4969
        %6426 = vmatprep.subr.bf16.mxu0 %v4966
        %6427 = vmatpush2.bf16.msra.mxu0 %v4965
        %6428 = vmatprep.subr.bf16.mxu0 %v4962
        %6429 = vmatpush2.bf16.msra.mxu0 %v4961
        %6430 = vmatprep.subr.bf16.mxu0 %v4958
        %6431 = vmatpush2.bf16.msra.mxu0 %v4957
        %6432 = vmatprep.subr.bf16.mxu0 %v4954
        %6433 = vmatpush2.bf16.msra.mxu0 %v4953
        %6434 = vmatprep.subr.bf16.mxu0 %v4950
        %6435 = vmatpush2.bf16.msra.mxu0 %v4949
        %6436 = vmatprep.subr.bf16.mxu0 %v4946
        %6437 = vmatpush2.bf16.msra.mxu0 %v4945
        %6438 = vmatprep.mubr.bf16.mxu0 %v1364
        %6439 = vmatmul.mubr.bf16.gmra.mxu0 %v1363
        %v6440 = vpop.f32.mrf.mxu0
        %v6441 = vadd.f32 %v6400, %v6440
        %v6442 = vpop.f32.mrf.mxu0
        %v6443 = vadd.f32 %v6402, %v6442
        %v6444 = vpop.f32.mrf.mxu0
        %v6445 = vpop.f32.mrf.mxu0
        %6446 = vdwg.mxu0
        %6447 = vmatprep.subr.bf16.mxu0 %v4112
        %6448 = vmatpush1.bf16.msra.mxu0 %v4111
        %6449 = vmatprep.subr.bf16.mxu0 %v4108
        %6450 = vmatpush1.bf16.msra.mxu0 %v4107
        %6451 = vmatprep.subr.bf16.mxu0 %v4104
        %6452 = vmatpush1.bf16.msra.mxu0 %v4103
        %6453 = vmatprep.subr.bf16.mxu0 %v4100
        %6454 = vmatpush1.bf16.msra.mxu0 %v4099
        %6455 = vmatprep.subr.bf16.mxu0 %v4096
        %6456 = vmatpush1.bf16.msra.mxu0 %v4095
        %6457 = vmatprep.subr.bf16.mxu0 %v4092
        %6458 = vmatpush1.bf16.msra.mxu0 %v4091
        %6459 = vmatprep.subr.bf16.mxu0 %v4088
        %6460 = vmatpush1.bf16.msra.mxu0 %v4087
        %6461 = vmatprep.subr.bf16.mxu0 %v4084
        %6462 = vmatpush1.bf16.msra.mxu0 %v4083
        %6463 = vmatprep.subr.bf16.mxu0 %v4144
        %6464 = vmatpush2.bf16.msra.mxu0 %v4143
        %6465 = vmatprep.subr.bf16.mxu0 %v4140
        %6466 = vmatpush2.bf16.msra.mxu0 %v4139
        %6467 = vmatprep.subr.bf16.mxu0 %v4136
        %6468 = vmatpush2.bf16.msra.mxu0 %v4135
        %6469 = vmatprep.subr.bf16.mxu0 %v4132
        %6470 = vmatpush2.bf16.msra.mxu0 %v4131
        %6471 = vmatprep.subr.bf16.mxu0 %v4128
        %6472 = vmatpush2.bf16.msra.mxu0 %v4127
        %6473 = vmatprep.subr.bf16.mxu0 %v4124
        %6474 = vmatpush2.bf16.msra.mxu0 %v4123
        %6475 = vmatprep.subr.bf16.mxu0 %v4120
        %6476 = vmatpush2.bf16.msra.mxu0 %v4119
        %6477 = vmatprep.subr.bf16.mxu0 %v4116
        %6478 = vmatpush2.bf16.msra.mxu0 %v4115
        %6479 = vmatprep.mubr.bf16.mxu0 %v1231
        %6480 = vmatmul.mubr.bf16.gmra.mxu0 %v1217
        %v6481 = vpop.f32.mrf.mxu0
        %v6482 = vadd.f32 0.0, %v6481
        %v6483 = vpop.f32.mrf.mxu0
        %v6484 = vadd.f32 0.0, %v6483
        %v6485 = vpop.f32.mrf.mxu0
        %v6486 = vpop.f32.mrf.mxu0
        %6487 = vdwg.mxu0
        %6488 = vmatprep.subr.bf16.mxu0 %v4176
        %6489 = vmatpush1.bf16.msra.mxu0 %v4175
        %6490 = vmatprep.subr.bf16.mxu0 %v4172
        %6491 = vmatpush1.bf16.msra.mxu0 %v4171
        %6492 = vmatprep.subr.bf16.mxu0 %v4168
        %6493 = vmatpush1.bf16.msra.mxu0 %v4167
        %6494 = vmatprep.subr.bf16.mxu0 %v4164
        %6495 = vmatpush1.bf16.msra.mxu0 %v4163
        %6496 = vmatprep.subr.bf16.mxu0 %v4160
        %6497 = vmatpush1.bf16.msra.mxu0 %v4159
        %6498 = vmatprep.subr.bf16.mxu0 %v4156
        %6499 = vmatpush1.bf16.msra.mxu0 %v4155
        %6500 = vmatprep.subr.bf16.mxu0 %v4152
        %6501 = vmatpush1.bf16.msra.mxu0 %v4151
        %6502 = vmatprep.subr.bf16.mxu0 %v4148
        %6503 = vmatpush1.bf16.msra.mxu0 %v4147
        %6504 = vmatprep.subr.bf16.mxu0 %v4208
        %6505 = vmatpush2.bf16.msra.mxu0 %v4207
        %6506 = vmatprep.subr.bf16.mxu0 %v4204
        %6507 = vmatpush2.bf16.msra.mxu0 %v4203
        %6508 = vmatprep.subr.bf16.mxu0 %v4200
        %6509 = vmatpush2.bf16.msra.mxu0 %v4199
        %6510 = vmatprep.subr.bf16.mxu0 %v4196
        %6511 = vmatpush2.bf16.msra.mxu0 %v4195
        %6512 = vmatprep.subr.bf16.mxu0 %v4192
        %6513 = vmatpush2.bf16.msra.mxu0 %v4191
        %6514 = vmatprep.subr.bf16.mxu0 %v4188
        %6515 = vmatpush2.bf16.msra.mxu0 %v4187
        %6516 = vmatprep.subr.bf16.mxu0 %v4184
        %6517 = vmatpush2.bf16.msra.mxu0 %v4183
        %6518 = vmatprep.subr.bf16.mxu0 %v4180
        %6519 = vmatpush2.bf16.msra.mxu0 %v4179
        %6520 = vmatprep.mubr.bf16.mxu0 %v1241
        %6521 = vmatmul.mubr.bf16.gmra.mxu0 %v1239
        %v6522 = vpop.f32.mrf.mxu0
        %v6523 = vadd.f32 %v6482, %v6522
        %v6524 = vpop.f32.mrf.mxu0
        %v6525 = vadd.f32 %v6484, %v6524
        %v6526 = vpop.f32.mrf.mxu0
        %v6527 = vpop.f32.mrf.mxu0
        %6528 = vdwg.mxu0
        %6529 = vmatprep.subr.bf16.mxu0 %v4240
        %6530 = vmatpush1.bf16.msra.mxu0 %v4239
        %6531 = vmatprep.subr.bf16.mxu0 %v4236
        %6532 = vmatpush1.bf16.msra.mxu0 %v4235
        %6533 = vmatprep.subr.bf16.mxu0 %v4232
        %6534 = vmatpush1.bf16.msra.mxu0 %v4231
        %6535 = vmatprep.subr.bf16.mxu0 %v4228
        %6536 = vmatpush1.bf16.msra.mxu0 %v4227
        %6537 = vmatprep.subr.bf16.mxu0 %v4224
        %6538 = vmatpush1.bf16.msra.mxu0 %v4223
        %6539 = vmatprep.subr.bf16.mxu0 %v4220
        %6540 = vmatpush1.bf16.msra.mxu0 %v4219
        %6541 = vmatprep.subr.bf16.mxu0 %v4216
        %6542 = vmatpush1.bf16.msra.mxu0 %v4215
        %6543 = vmatprep.subr.bf16.mxu0 %v4212
        %6544 = vmatpush1.bf16.msra.mxu0 %v4211
        %6545 = vmatprep.subr.bf16.mxu0 %v4272
        %6546 = vmatpush2.bf16.msra.mxu0 %v4271
        %6547 = vmatprep.subr.bf16.mxu0 %v4268
        %6548 = vmatpush2.bf16.msra.mxu0 %v4267
        %6549 = vmatprep.subr.bf16.mxu0 %v4264
        %6550 = vmatpush2.bf16.msra.mxu0 %v4263
        %6551 = vmatprep.subr.bf16.mxu0 %v4260
        %6552 = vmatpush2.bf16.msra.mxu0 %v4259
        %6553 = vmatprep.subr.bf16.mxu0 %v4256
        %6554 = vmatpush2.bf16.msra.mxu0 %v4255
        %6555 = vmatprep.subr.bf16.mxu0 %v4252
        %6556 = vmatpush2.bf16.msra.mxu0 %v4251
        %6557 = vmatprep.subr.bf16.mxu0 %v4248
        %6558 = vmatpush2.bf16.msra.mxu0 %v4247
        %6559 = vmatprep.subr.bf16.mxu0 %v4244
        %6560 = vmatpush2.bf16.msra.mxu0 %v4243
        %6561 = vmatprep.mubr.bf16.mxu0 %v1238
        %6562 = vmatmul.mubr.bf16.gmra.mxu0 %v1224
        %v6563 = vpop.f32.mrf.mxu0
        %v6564 = vadd.f32 %v6523, %v6563
        %v6565 = vpop.f32.mrf.mxu0
        %v6566 = vadd.f32 %v6525, %v6565
        %v6567 = vpop.f32.mrf.mxu0
        %v6568 = vpop.f32.mrf.mxu0
        %6569 = vdwg.mxu0
        %6570 = vmatprep.subr.bf16.mxu0 %v4304
        %6571 = vmatpush1.bf16.msra.mxu0 %v4303
        %6572 = vmatprep.subr.bf16.mxu0 %v4300
        %6573 = vmatpush1.bf16.msra.mxu0 %v4299
        %6574 = vmatprep.subr.bf16.mxu0 %v4296
        %6575 = vmatpush1.bf16.msra.mxu0 %v4295
        %6576 = vmatprep.subr.bf16.mxu0 %v4292
        %6577 = vmatpush1.bf16.msra.mxu0 %v4291
        %6578 = vmatprep.subr.bf16.mxu0 %v4288
        %6579 = vmatpush1.bf16.msra.mxu0 %v4287
        %6580 = vmatprep.subr.bf16.mxu0 %v4284
        %6581 = vmatpush1.bf16.msra.mxu0 %v4283
        %6582 = vmatprep.subr.bf16.mxu0 %v4280
        %6583 = vmatpush1.bf16.msra.mxu0 %v4279
        %6584 = vmatprep.subr.bf16.mxu0 %v4276
        %6585 = vmatpush1.bf16.msra.mxu0 %v4275
        %6586 = vmatprep.subr.bf16.mxu0 %v4336
        %6587 = vmatpush2.bf16.msra.mxu0 %v4335
        %6588 = vmatprep.subr.bf16.mxu0 %v4332
        %6589 = vmatpush2.bf16.msra.mxu0 %v4331
        %6590 = vmatprep.subr.bf16.mxu0 %v4328
        %6591 = vmatpush2.bf16.msra.mxu0 %v4327
        %6592 = vmatprep.subr.bf16.mxu0 %v4324
        %6593 = vmatpush2.bf16.msra.mxu0 %v4323
        %6594 = vmatprep.subr.bf16.mxu0 %v4320
        %6595 = vmatpush2.bf16.msra.mxu0 %v4319
        %6596 = vmatprep.subr.bf16.mxu0 %v4316
        %6597 = vmatpush2.bf16.msra.mxu0 %v4315
        %6598 = vmatprep.subr.bf16.mxu0 %v4312
        %6599 = vmatpush2.bf16.msra.mxu0 %v4311
        %6600 = vmatprep.subr.bf16.mxu0 %v4308
        %6601 = vmatpush2.bf16.msra.mxu0 %v4307
        %6602 = vmatprep.mubr.bf16.mxu0 %v1242
        %6603 = vmatmul.mubr.bf16.gmra.mxu0 %v1240
        %v6604 = vpop.f32.mrf.mxu0
        %v6605 = vadd.f32 %v6564, %v6604
        %v6606 = vpop.f32.mrf.mxu0
        %v6607 = vadd.f32 %v6566, %v6606
        %v6608 = vpop.f32.mrf.mxu0
        %v6609 = vpop.f32.mrf.mxu0
        %6610 = vdwg.mxu0
        %6611 = vmatprep.subr.bf16.mxu0 %v4368
        %6612 = vmatpush1.bf16.msra.mxu0 %v4367
        %6613 = vmatprep.subr.bf16.mxu0 %v4364
        %6614 = vmatpush1.bf16.msra.mxu0 %v4363
        %6615 = vmatprep.subr.bf16.mxu0 %v4360
        %6616 = vmatpush1.bf16.msra.mxu0 %v4359
        %6617 = vmatprep.subr.bf16.mxu0 %v4356
        %6618 = vmatpush1.bf16.msra.mxu0 %v4355
        %6619 = vmatprep.subr.bf16.mxu0 %v4352
        %6620 = vmatpush1.bf16.msra.mxu0 %v4351
        %6621 = vmatprep.subr.bf16.mxu0 %v4348
        %6622 = vmatpush1.bf16.msra.mxu0 %v4347
        %6623 = vmatprep.subr.bf16.mxu0 %v4344
        %6624 = vmatpush1.bf16.msra.mxu0 %v4343
        %6625 = vmatprep.subr.bf16.mxu0 %v4340
        %6626 = vmatpush1.bf16.msra.mxu0 %v4339
        %6627 = vmatprep.subr.bf16.mxu0 %v4400
        %6628 = vmatpush2.bf16.msra.mxu0 %v4399
        %6629 = vmatprep.subr.bf16.mxu0 %v4396
        %6630 = vmatpush2.bf16.msra.mxu0 %v4395
        %6631 = vmatprep.subr.bf16.mxu0 %v4392
        %6632 = vmatpush2.bf16.msra.mxu0 %v4391
        %6633 = vmatprep.subr.bf16.mxu0 %v4388
        %6634 = vmatpush2.bf16.msra.mxu0 %v4387
        %6635 = vmatprep.subr.bf16.mxu0 %v4384
        %6636 = vmatpush2.bf16.msra.mxu0 %v4383
        %6637 = vmatprep.subr.bf16.mxu0 %v4380
        %6638 = vmatpush2.bf16.msra.mxu0 %v4379
        %6639 = vmatprep.subr.bf16.mxu0 %v4376
        %6640 = vmatpush2.bf16.msra.mxu0 %v4375
        %6641 = vmatprep.subr.bf16.mxu0 %v4372
        %6642 = vmatpush2.bf16.msra.mxu0 %v4371
        %6643 = vmatprep.mubr.bf16.mxu0 %v1280
        %6644 = vmatmul.mubr.bf16.gmra.mxu0 %v1266
        %v6645 = vpop.f32.mrf.mxu0
        %v6646 = vadd.f32 %v6605, %v6645
        %v6647 = vpop.f32.mrf.mxu0
        %v6648 = vadd.f32 %v6607, %v6647
        %v6649 = vpop.f32.mrf.mxu0
        %v6650 = vpop.f32.mrf.mxu0
        %6651 = vdwg.mxu0
        %6652 = vmatprep.subr.bf16.mxu0 %v4432
        %6653 = vmatpush1.bf16.msra.mxu0 %v4431
        %6654 = vmatprep.subr.bf16.mxu0 %v4428
        %6655 = vmatpush1.bf16.msra.mxu0 %v4427
        %6656 = vmatprep.subr.bf16.mxu0 %v4424
        %6657 = vmatpush1.bf16.msra.mxu0 %v4423
        %6658 = vmatprep.subr.bf16.mxu0 %v4420
        %6659 = vmatpush1.bf16.msra.mxu0 %v4419
        %6660 = vmatprep.subr.bf16.mxu0 %v4416
        %6661 = vmatpush1.bf16.msra.mxu0 %v4415
        %6662 = vmatprep.subr.bf16.mxu0 %v4412
        %6663 = vmatpush1.bf16.msra.mxu0 %v4411
        %6664 = vmatprep.subr.bf16.mxu0 %v4408
        %6665 = vmatpush1.bf16.msra.mxu0 %v4407
        %6666 = vmatprep.subr.bf16.mxu0 %v4404
        %6667 = vmatpush1.bf16.msra.mxu0 %v4403
        %6668 = vmatprep.subr.bf16.mxu0 %v4464
        %6669 = vmatpush2.bf16.msra.mxu0 %v4463
        %6670 = vmatprep.subr.bf16.mxu0 %v4460
        %6671 = vmatpush2.bf16.msra.mxu0 %v4459
        %6672 = vmatprep.subr.bf16.mxu0 %v4456
        %6673 = vmatpush2.bf16.msra.mxu0 %v4455
        %6674 = vmatprep.subr.bf16.mxu0 %v4452
        %6675 = vmatpush2.bf16.msra.mxu0 %v4451
        %6676 = vmatprep.subr.bf16.mxu0 %v4448
        %6677 = vmatpush2.bf16.msra.mxu0 %v4447
        %6678 = vmatprep.subr.bf16.mxu0 %v4444
        %6679 = vmatpush2.bf16.msra.mxu0 %v4443
        %6680 = vmatprep.subr.bf16.mxu0 %v4440
        %6681 = vmatpush2.bf16.msra.mxu0 %v4439
        %6682 = vmatprep.subr.bf16.mxu0 %v4436
        %6683 = vmatpush2.bf16.msra.mxu0 %v4435
        %6684 = vmatprep.mubr.bf16.mxu0 %v1290
        %6685 = vmatmul.mubr.bf16.gmra.mxu0 %v1288
        %v6686 = vpop.f32.mrf.mxu0
        %v6687 = vadd.f32 %v6646, %v6686
        %v6688 = vpop.f32.mrf.mxu0
        %v6689 = vadd.f32 %v6648, %v6688
        %v6690 = vpop.f32.mrf.mxu0
        %v6691 = vpop.f32.mrf.mxu0
        %6692 = vdwg.mxu0
        %6693 = vmatprep.subr.bf16.mxu0 %v4496
        %6694 = vmatpush1.bf16.msra.mxu0 %v4495
        %6695 = vmatprep.subr.bf16.mxu0 %v4492
        %6696 = vmatpush1.bf16.msra.mxu0 %v4491
        %6697 = vmatprep.subr.bf16.mxu0 %v4488
        %6698 = vmatpush1.bf16.msra.mxu0 %v4487
        %6699 = vmatprep.subr.bf16.mxu0 %v4484
        %6700 = vmatpush1.bf16.msra.mxu0 %v4483
        %6701 = vmatprep.subr.bf16.mxu0 %v4480
        %6702 = vmatpush1.bf16.msra.mxu0 %v4479
        %6703 = vmatprep.subr.bf16.mxu0 %v4476
        %6704 = vmatpush1.bf16.msra.mxu0 %v4475
        %6705 = vmatprep.subr.bf16.mxu0 %v4472
        %6706 = vmatpush1.bf16.msra.mxu0 %v4471
        %6707 = vmatprep.subr.bf16.mxu0 %v4468
        %6708 = vmatpush1.bf16.msra.mxu0 %v4467
        %6709 = vmatprep.subr.bf16.mxu0 %v4528
        %6710 = vmatpush2.bf16.msra.mxu0 %v4527
        %6711 = vmatprep.subr.bf16.mxu0 %v4524
        %6712 = vmatpush2.bf16.msra.mxu0 %v4523
        %6713 = vmatprep.subr.bf16.mxu0 %v4520
        %6714 = vmatpush2.bf16.msra.mxu0 %v4519
        %6715 = vmatprep.subr.bf16.mxu0 %v4516
        %6716 = vmatpush2.bf16.msra.mxu0 %v4515
        %6717 = vmatprep.subr.bf16.mxu0 %v4512
        %6718 = vmatpush2.bf16.msra.mxu0 %v4511
        %6719 = vmatprep.subr.bf16.mxu0 %v4508
        %6720 = vmatpush2.bf16.msra.mxu0 %v4507
        %6721 = vmatprep.subr.bf16.mxu0 %v4504
        %6722 = vmatpush2.bf16.msra.mxu0 %v4503
        %6723 = vmatprep.subr.bf16.mxu0 %v4500
        %6724 = vmatpush2.bf16.msra.mxu0 %v4499
        %6725 = vmatprep.mubr.bf16.mxu0 %v1287
        %6726 = vmatmul.mubr.bf16.gmra.mxu0 %v1273
        %v6727 = vpop.f32.mrf.mxu0
        %v6728 = vadd.f32 %v6687, %v6727
        %v6729 = vpop.f32.mrf.mxu0
        %v6730 = vadd.f32 %v6689, %v6729
        %v6731 = vpop.f32.mrf.mxu0
        %v6732 = vpop.f32.mrf.mxu0
        %6733 = vdwg.mxu0
        %6734 = vmatprep.subr.bf16.mxu0 %v4560
        %6735 = vmatpush1.bf16.msra.mxu0 %v4559
        %6736 = vmatprep.subr.bf16.mxu0 %v4556
        %6737 = vmatpush1.bf16.msra.mxu0 %v4555
        %6738 = vmatprep.subr.bf16.mxu0 %v4552
        %6739 = vmatpush1.bf16.msra.mxu0 %v4551
        %6740 = vmatprep.subr.bf16.mxu0 %v4548
        %6741 = vmatpush1.bf16.msra.mxu0 %v4547
        %6742 = vmatprep.subr.bf16.mxu0 %v4544
        %6743 = vmatpush1.bf16.msra.mxu0 %v4543
        %6744 = vmatprep.subr.bf16.mxu0 %v4540
        %6745 = vmatpush1.bf16.msra.mxu0 %v4539
        %6746 = vmatprep.subr.bf16.mxu0 %v4536
        %6747 = vmatpush1.bf16.msra.mxu0 %v4535
        %6748 = vmatprep.subr.bf16.mxu0 %v4532
        %6749 = vmatpush1.bf16.msra.mxu0 %v4531
        %6750 = vmatprep.subr.bf16.mxu0 %v4592
        %6751 = vmatpush2.bf16.msra.mxu0 %v4591
        %6752 = vmatprep.subr.bf16.mxu0 %v4588
        %6753 = vmatpush2.bf16.msra.mxu0 %v4587
        %6754 = vmatprep.subr.bf16.mxu0 %v4584
        %6755 = vmatpush2.bf16.msra.mxu0 %v4583
        %6756 = vmatprep.subr.bf16.mxu0 %v4580
        %6757 = vmatpush2.bf16.msra.mxu0 %v4579
        %6758 = vmatprep.subr.bf16.mxu0 %v4576
        %6759 = vmatpush2.bf16.msra.mxu0 %v4575
        %6760 = vmatprep.subr.bf16.mxu0 %v4572
        %6761 = vmatpush2.bf16.msra.mxu0 %v4571
        %6762 = vmatprep.subr.bf16.mxu0 %v4568
        %6763 = vmatpush2.bf16.msra.mxu0 %v4567
        %6764 = vmatprep.subr.bf16.mxu0 %v4564
        %6765 = vmatpush2.bf16.msra.mxu0 %v4563
        %6766 = vmatprep.mubr.bf16.mxu0 %v1291
        %6767 = vmatmul.mubr.bf16.gmra.mxu0 %v1289
        %v6768 = vpop.f32.mrf.mxu0
        %v6769 = vadd.f32 %v6728, %v6768
        %v6770 = vpop.f32.mrf.mxu0
        %v6771 = vadd.f32 %v6730, %v6770
        %v6772 = vpop.f32.mrf.mxu0
        %v6773 = vpop.f32.mrf.mxu0
        %6774 = vdwg.mxu0
        %6775 = vmatprep.subr.bf16.mxu0 %v4624
        %6776 = vmatpush1.bf16.msra.mxu0 %v4623
        %6777 = vmatprep.subr.bf16.mxu0 %v4620
        %6778 = vmatpush1.bf16.msra.mxu0 %v4619
        %6779 = vmatprep.subr.bf16.mxu0 %v4616
        %6780 = vmatpush1.bf16.msra.mxu0 %v4615
        %6781 = vmatprep.subr.bf16.mxu0 %v4612
        %6782 = vmatpush1.bf16.msra.mxu0 %v4611
        %6783 = vmatprep.subr.bf16.mxu0 %v4608
        %6784 = vmatpush1.bf16.msra.mxu0 %v4607
        %6785 = vmatprep.subr.bf16.mxu0 %v4604
        %6786 = vmatpush1.bf16.msra.mxu0 %v4603
        %6787 = vmatprep.subr.bf16.mxu0 %v4600
        %6788 = vmatpush1.bf16.msra.mxu0 %v4599
        %6789 = vmatprep.subr.bf16.mxu0 %v4596
        %6790 = vmatpush1.bf16.msra.mxu0 %v4595
        %6791 = vmatprep.subr.bf16.mxu0 %v4656
        %6792 = vmatpush2.bf16.msra.mxu0 %v4655
        %6793 = vmatprep.subr.bf16.mxu0 %v4652
        %6794 = vmatpush2.bf16.msra.mxu0 %v4651
        %6795 = vmatprep.subr.bf16.mxu0 %v4648
        %6796 = vmatpush2.bf16.msra.mxu0 %v4647
        %6797 = vmatprep.subr.bf16.mxu0 %v4644
        %6798 = vmatpush2.bf16.msra.mxu0 %v4643
        %6799 = vmatprep.subr.bf16.mxu0 %v4640
        %6800 = vmatpush2.bf16.msra.mxu0 %v4639
        %6801 = vmatprep.subr.bf16.mxu0 %v4636
        %6802 = vmatpush2.bf16.msra.mxu0 %v4635
        %6803 = vmatprep.subr.bf16.mxu0 %v4632
        %6804 = vmatpush2.bf16.msra.mxu0 %v4631
        %6805 = vmatprep.subr.bf16.mxu0 %v4628
        %6806 = vmatpush2.bf16.msra.mxu0 %v4627
        %6807 = vmatprep.mubr.bf16.mxu0 %v1329
        %6808 = vmatmul.mubr.bf16.gmra.mxu0 %v1315
        %v6809 = vpop.f32.mrf.mxu0
        %v6810 = vadd.f32 %v6769, %v6809
        %v6811 = vpop.f32.mrf.mxu0
        %v6812 = vadd.f32 %v6771, %v6811
        %v6813 = vpop.f32.mrf.mxu0
        %v6814 = vpop.f32.mrf.mxu0
        %6815 = vdwg.mxu0
        %6816 = vmatprep.subr.bf16.mxu0 %v4688
        %6817 = vmatpush1.bf16.msra.mxu0 %v4687
        %6818 = vmatprep.subr.bf16.mxu0 %v4684
        %6819 = vmatpush1.bf16.msra.mxu0 %v4683
        %6820 = vmatprep.subr.bf16.mxu0 %v4680
        %6821 = vmatpush1.bf16.msra.mxu0 %v4679
        %6822 = vmatprep.subr.bf16.mxu0 %v4676
        %6823 = vmatpush1.bf16.msra.mxu0 %v4675
        %6824 = vmatprep.subr.bf16.mxu0 %v4672
        %6825 = vmatpush1.bf16.msra.mxu0 %v4671
        %6826 = vmatprep.subr.bf16.mxu0 %v4668
        %6827 = vmatpush1.bf16.msra.mxu0 %v4667
        %6828 = vmatprep.subr.bf16.mxu0 %v4664
        %6829 = vmatpush1.bf16.msra.mxu0 %v4663
        %6830 = vmatprep.subr.bf16.mxu0 %v4660
        %6831 = vmatpush1.bf16.msra.mxu0 %v4659
        %6832 = vmatprep.subr.bf16.mxu0 %v4720
        %6833 = vmatpush2.bf16.msra.mxu0 %v4719
        %6834 = vmatprep.subr.bf16.mxu0 %v4716
        %6835 = vmatpush2.bf16.msra.mxu0 %v4715
        %6836 = vmatprep.subr.bf16.mxu0 %v4712
        %6837 = vmatpush2.bf16.msra.mxu0 %v4711
        %6838 = vmatprep.subr.bf16.mxu0 %v4708
        %6839 = vmatpush2.bf16.msra.mxu0 %v4707
        %6840 = vmatprep.subr.bf16.mxu0 %v4704
        %6841 = vmatpush2.bf16.msra.mxu0 %v4703
        %6842 = vmatprep.subr.bf16.mxu0 %v4700
        %6843 = vmatpush2.bf16.msra.mxu0 %v4699
        %6844 = vmatprep.subr.bf16.mxu0 %v4696
        %6845 = vmatpush2.bf16.msra.mxu0 %v4695
        %6846 = vmatprep.subr.bf16.mxu0 %v4692
        %6847 = vmatpush2.bf16.msra.mxu0 %v4691
        %6848 = vmatprep.mubr.bf16.mxu0 %v1339
        %6849 = vmatmul.mubr.bf16.gmra.mxu0 %v1337
        %v6850 = vpop.f32.mrf.mxu0
        %v6851 = vadd.f32 %v6810, %v6850
        %v6852 = vpop.f32.mrf.mxu0
        %v6853 = vadd.f32 %v6812, %v6852
        %v6854 = vpop.f32.mrf.mxu0
        %v6855 = vpop.f32.mrf.mxu0
        %6856 = vdwg.mxu0
        %6857 = vmatprep.subr.bf16.mxu0 %v4752
        %6858 = vmatpush1.bf16.msra.mxu0 %v4751
        %6859 = vmatprep.subr.bf16.mxu0 %v4748
        %6860 = vmatpush1.bf16.msra.mxu0 %v4747
        %6861 = vmatprep.subr.bf16.mxu0 %v4744
        %6862 = vmatpush1.bf16.msra.mxu0 %v4743
        %6863 = vmatprep.subr.bf16.mxu0 %v4740
        %6864 = vmatpush1.bf16.msra.mxu0 %v4739
        %6865 = vmatprep.subr.bf16.mxu0 %v4736
        %6866 = vmatpush1.bf16.msra.mxu0 %v4735
        %6867 = vmatprep.subr.bf16.mxu0 %v4732
        %6868 = vmatpush1.bf16.msra.mxu0 %v4731
        %6869 = vmatprep.subr.bf16.mxu0 %v4728
        %6870 = vmatpush1.bf16.msra.mxu0 %v4727
        %6871 = vmatprep.subr.bf16.mxu0 %v4724
        %6872 = vmatpush1.bf16.msra.mxu0 %v4723
        %6873 = vmatprep.subr.bf16.mxu0 %v4784
        %6874 = vmatpush2.bf16.msra.mxu0 %v4783
        %6875 = vmatprep.subr.bf16.mxu0 %v4780
        %6876 = vmatpush2.bf16.msra.mxu0 %v4779
        %6877 = vmatprep.subr.bf16.mxu0 %v4776
        %6878 = vmatpush2.bf16.msra.mxu0 %v4775
        %6879 = vmatprep.subr.bf16.mxu0 %v4772
        %6880 = vmatpush2.bf16.msra.mxu0 %v4771
        %6881 = vmatprep.subr.bf16.mxu0 %v4768
        %6882 = vmatpush2.bf16.msra.mxu0 %v4767
        %6883 = vmatprep.subr.bf16.mxu0 %v4764
        %6884 = vmatpush2.bf16.msra.mxu0 %v4763
        %6885 = vmatprep.subr.bf16.mxu0 %v4760
        %6886 = vmatpush2.bf16.msra.mxu0 %v4759
        %6887 = vmatprep.subr.bf16.mxu0 %v4756
        %6888 = vmatpush2.bf16.msra.mxu0 %v4755
        %6889 = vmatprep.mubr.bf16.mxu0 %v1336
        %6890 = vmatmul.mubr.bf16.gmra.mxu0 %v1322
        %v6891 = vpop.f32.mrf.mxu0
        %v6892 = vadd.f32 %v6851, %v6891
        %v6893 = vpop.f32.mrf.mxu0
        %v6894 = vadd.f32 %v6853, %v6893
        %v6895 = vpop.f32.mrf.mxu0
        %v6896 = vpop.f32.mrf.mxu0
        %6897 = vdwg.mxu0
        %6898 = vmatprep.subr.bf16.mxu0 %v4816
        %6899 = vmatpush1.bf16.msra.mxu0 %v4815
        %6900 = vmatprep.subr.bf16.mxu0 %v4812
        %6901 = vmatpush1.bf16.msra.mxu0 %v4811
        %6902 = vmatprep.subr.bf16.mxu0 %v4808
        %6903 = vmatpush1.bf16.msra.mxu0 %v4807
        %6904 = vmatprep.subr.bf16.mxu0 %v4804
        %6905 = vmatpush1.bf16.msra.mxu0 %v4803
        %6906 = vmatprep.subr.bf16.mxu0 %v4800
        %6907 = vmatpush1.bf16.msra.mxu0 %v4799
        %6908 = vmatprep.subr.bf16.mxu0 %v4796
        %6909 = vmatpush1.bf16.msra.mxu0 %v4795
        %6910 = vmatprep.subr.bf16.mxu0 %v4792
        %6911 = vmatpush1.bf16.msra.mxu0 %v4791
        %6912 = vmatprep.subr.bf16.mxu0 %v4788
        %6913 = vmatpush1.bf16.msra.mxu0 %v4787
        %6914 = vmatprep.subr.bf16.mxu0 %v4848
        %6915 = vmatpush2.bf16.msra.mxu0 %v4847
        %6916 = vmatprep.subr.bf16.mxu0 %v4844
        %6917 = vmatpush2.bf16.msra.mxu0 %v4843
        %6918 = vmatprep.subr.bf16.mxu0 %v4840
        %6919 = vmatpush2.bf16.msra.mxu0 %v4839
        %6920 = vmatprep.subr.bf16.mxu0 %v4836
        %6921 = vmatpush2.bf16.msra.mxu0 %v4835
        %6922 = vmatprep.subr.bf16.mxu0 %v4832
        %6923 = vmatpush2.bf16.msra.mxu0 %v4831
        %6924 = vmatprep.subr.bf16.mxu0 %v4828
        %6925 = vmatpush2.bf16.msra.mxu0 %v4827
        %6926 = vmatprep.subr.bf16.mxu0 %v4824
        %6927 = vmatpush2.bf16.msra.mxu0 %v4823
        %6928 = vmatprep.subr.bf16.mxu0 %v4820
        %6929 = vmatpush2.bf16.msra.mxu0 %v4819
        %6930 = vmatprep.mubr.bf16.mxu0 %v1340
        %6931 = vmatmul.mubr.bf16.gmra.mxu0 %v1338
        %v6932 = vpop.f32.mrf.mxu0
        %v6933 = vadd.f32 %v6892, %v6932
        %v6934 = vpop.f32.mrf.mxu0
        %v6935 = vadd.f32 %v6894, %v6934
        %v6936 = vpop.f32.mrf.mxu0
        %v6937 = vpop.f32.mrf.mxu0
        %6938 = vdwg.mxu0
        %6939 = vmatprep.subr.bf16.mxu0 %v4880
        %6940 = vmatpush1.bf16.msra.mxu0 %v4879
        %6941 = vmatprep.subr.bf16.mxu0 %v4876
        %6942 = vmatpush1.bf16.msra.mxu0 %v4875
        %6943 = vmatprep.subr.bf16.mxu0 %v4872
        %6944 = vmatpush1.bf16.msra.mxu0 %v4871
        %6945 = vmatprep.subr.bf16.mxu0 %v4868
        %6946 = vmatpush1.bf16.msra.mxu0 %v4867
        %6947 = vmatprep.subr.bf16.mxu0 %v4864
        %6948 = vmatpush1.bf16.msra.mxu0 %v4863
        %6949 = vmatprep.subr.bf16.mxu0 %v4860
        %6950 = vmatpush1.bf16.msra.mxu0 %v4859
        %6951 = vmatprep.subr.bf16.mxu0 %v4856
        %6952 = vmatpush1.bf16.msra.mxu0 %v4855
        %6953 = vmatprep.subr.bf16.mxu0 %v4852
        %6954 = vmatpush1.bf16.msra.mxu0 %v4851
        %6955 = vmatprep.subr.bf16.mxu0 %v4912
        %6956 = vmatpush2.bf16.msra.mxu0 %v4911
        %6957 = vmatprep.subr.bf16.mxu0 %v4908
        %6958 = vmatpush2.bf16.msra.mxu0 %v4907
        %6959 = vmatprep.subr.bf16.mxu0 %v4904
        %6960 = vmatpush2.bf16.msra.mxu0 %v4903
        %6961 = vmatprep.subr.bf16.mxu0 %v4900
        %6962 = vmatpush2.bf16.msra.mxu0 %v4899
        %6963 = vmatprep.subr.bf16.mxu0 %v4896
        %6964 = vmatpush2.bf16.msra.mxu0 %v4895
        %6965 = vmatprep.subr.bf16.mxu0 %v4892
        %6966 = vmatpush2.bf16.msra.mxu0 %v4891
        %6967 = vmatprep.subr.bf16.mxu0 %v4888
        %6968 = vmatpush2.bf16.msra.mxu0 %v4887
        %6969 = vmatprep.subr.bf16.mxu0 %v4884
        %6970 = vmatpush2.bf16.msra.mxu0 %v4883
        %6971 = vmatprep.mubr.bf16.mxu0 %v1362
        %6972 = vmatmul.mubr.bf16.gmra.mxu0 %v1355
        %v6973 = vpop.f32.mrf.mxu0
        %v6974 = vadd.f32 %v6933, %v6973
        %v6975 = vpop.f32.mrf.mxu0
        %v6976 = vadd.f32 %v6935, %v6975
        %v6977 = vpop.f32.mrf.mxu0
        %v6978 = vpop.f32.mrf.mxu0
        %6979 = vdwg.mxu0
        %6980 = vmatprep.subr.bf16.mxu0 %v4944
        %6981 = vmatpush1.bf16.msra.mxu0 %v4943
        %6982 = vmatprep.subr.bf16.mxu0 %v4940
        %6983 = vmatpush1.bf16.msra.mxu0 %v4939
        %6984 = vmatprep.subr.bf16.mxu0 %v4936
        %6985 = vmatpush1.bf16.msra.mxu0 %v4935
        %6986 = vmatprep.subr.bf16.mxu0 %v4932
        %6987 = vmatpush1.bf16.msra.mxu0 %v4931
        %6988 = vmatprep.subr.bf16.mxu0 %v4928
        %6989 = vmatpush1.bf16.msra.mxu0 %v4927
        %6990 = vmatprep.subr.bf16.mxu0 %v4924
        %6991 = vmatpush1.bf16.msra.mxu0 %v4923
        %6992 = vmatprep.subr.bf16.mxu0 %v4920
        %6993 = vmatpush1.bf16.msra.mxu0 %v4919
        %6994 = vmatprep.subr.bf16.mxu0 %v4916
        %6995 = vmatpush1.bf16.msra.mxu0 %v4915
        %6996 = vmatprep.subr.bf16.mxu0 %v4976
        %6997 = vmatpush2.bf16.msra.mxu0 %v4975
        %6998 = vmatprep.subr.bf16.mxu0 %v4972
        %6999 = vmatpush2.bf16.msra.mxu0 %v4971
        %7000 = vmatprep.subr.bf16.mxu0 %v4968
        %7001 = vmatpush2.bf16.msra.mxu0 %v4967
        %7002 = vmatprep.subr.bf16.mxu0 %v4964
        %7003 = vmatpush2.bf16.msra.mxu0 %v4963
        %7004 = vmatprep.subr.bf16.mxu0 %v4960
        %7005 = vmatpush2.bf16.msra.mxu0 %v4959
        %7006 = vmatprep.subr.bf16.mxu0 %v4956
        %7007 = vmatpush2.bf16.msra.mxu0 %v4955
        %7008 = vmatprep.subr.bf16.mxu0 %v4952
        %7009 = vmatpush2.bf16.msra.mxu0 %v4951
        %7010 = vmatprep.subr.bf16.mxu0 %v4948
        %7011 = vmatpush2.bf16.msra.mxu0 %v4947
        %7012 = vmatprep.mubr.bf16.mxu0 %v1364
        %7013 = vmatmul.mubr.bf16.gmra.mxu0 %v1363
        %v7014 = vpop.f32.mrf.mxu0
        %v7015 = vadd.f32 %v6974, %v7014
        %v7016 = vpop.f32.mrf.mxu0
        %v7017 = vadd.f32 %v6976, %v7016
        %v7018 = vpop.f32.mrf.mxu0
        %v7019 = vpop.f32.mrf.mxu0
        %7020 = vdwg.mxu0
        %v7025 = vcombine.low %v6441, %v6443
        %v7026 = vcombine.low %v7015, %v7017
        %v7028 = vunpack.c.l.s4 1983009808
        %v7029 = vunpack.c.0.s8 %v7028
        %v7030 = vlaneseq
        %v7031 = vshrl.u32 %v7030, 7
        %v7032 = vsub.s32 %v7029, %v7031
        %v7033 = vrot.slane %v7025, %v7032
        %v7035 = vunpack.c.l.s4 1983009808
        %v7036 = vunpack.c.0.s8 %v7035
        %v7037 = vlaneseq
        %v7038 = vshrl.u32 %v7037, 7
        %v7039 = vsub.s32 %v7036, %v7038
        %v7040 = vrot.slane %v7026, %v7039
        %v7041 = vcombine.low %v7033, %v7040
        %v7043 = vadd.f32 %v289, %v7041
        %7044 = vst [vmem:[#allocation2] sm:$0xff] %v7043
        %p7045 = scmp.eq.s32.totalorder %s28, 6
        // Predicated region
        $region49: #{tpu_custom_call.1} parent=31 // pred_check
          %p7046 = pneg %p7045
        $region50: #{tpu_custom_call.1} parent=31 // pred_check_branch
          %7048 = sbr.rel (%p7046) target = $region52
        $region51: #{tpu_custom_call.1} parent=31 // pred_region
          %v7049 = vld [vmem:[#allocation2] sm:$0xff]
          %v7050 = vld [vmem:[%s246] sm:$0xf]
          %v7052 = vlaneseq
          %v7053 = vshrl.u32 %v7052, 7
          %v7054 = vsub.s32 0, %v7053
          %v7055 = vrot.slane %v7050, %v7054
          %v7056 = vlaneseq
          %v7057 = vshrl.u32 %v7056, 7
          %v7058 = vsub.s32 1, %v7057
          %v7059 = vrot.slane %v7050, %v7058
          %v7060 = vlaneseq
          %v7061 = vshrl.u32 %v7060, 7
          %v7062 = vsub.s32 2, %v7061
          %v7063 = vrot.slane %v7050, %v7062
          %v7064 = vlaneseq
          %v7065 = vshrl.u32 %v7064, 7
          %v7066 = vsub.s32 3, %v7065
          %v7067 = vrot.slane %v7050, %v7066
          %v7068 = vcombine.low %v7055, %v7059
          %v7069 = vcombine.low %v7063, %v7067
          %v7071 = vunpack.c.l.s4 1983009808
          %v7072 = vunpack.c.0.s8 %v7071
          %v7073 = vlaneseq
          %v7074 = vshrl.u32 %v7073, 7
          %v7075 = vsub.s32 %v7072, %v7074
          %v7076 = vrot.slane %v7068, %v7075
          %v7078 = vunpack.c.l.s4 1983009808
          %v7079 = vunpack.c.0.s8 %v7078
          %v7080 = vlaneseq
          %v7081 = vshrl.u32 %v7080, 7
          %v7082 = vsub.s32 %v7079, %v7081
          %v7083 = vrot.slane %v7069, %v7082
          %v7084 = vcombine.low %v7076, %v7083
          %v7086 = vadd.f32 %v7049, %v7084
          %v7087 = vmax.f32 %v7086, 0.0
          %v7089 = vcombine.high %v7087, %v7087
          %v7091 = vunpack.c.l.s4 1983009808
          %v7092 = vunpack.c.0.s8 %v7091
          %v7093 = vlaneseq
          %v7094 = vshrl.u32 %v7093, 7
          %v7095 = vsub.s32 %v7092, %v7094
          %v7096 = vrot.slane %v7087, %v7095
          %v7098 = vunpack.c.l.s4 1983009808
          %v7099 = vunpack.c.0.s8 %v7098
          %v7100 = vlaneseq
          %v7101 = vshrl.u32 %v7100, 7
          %v7102 = vsub.s32 %v7099, %v7101
          %v7103 = vrot.slane %v7089, %v7102
          %v7104 = vcombine.high %v7096, %v7096
          %v7105 = vcombine.high %v7103, %v7103
          %v7110 = vpack.c.bf16 %v7096, %v7096
          %v7111 = vpack.c.bf16 %v7104, %v7104
          %v7112 = vpack.c.bf16 %v7103, %v7103
          %v7113 = vpack.c.bf16 %v7105, %v7105
          %v7118 = vcombine.low %v7110, %v7111
          %v7119 = vcombine.low %v7112, %v7113
          %v7121 = vunpack.c.l.s4 1966171168
          %v7122 = vunpack.c.0.s8 %v7121
          %v7123 = vlaneseq
          %v7124 = vshrl.u32 %v7123, 7
          %v7125 = vsub.s32 %v7122, %v7124
          %v7126 = vrot.slane %v7118, %v7125
          %v7128 = vunpack.c.l.s4 1966171168
          %v7129 = vunpack.c.0.s8 %v7128
          %v7130 = vlaneseq
          %v7131 = vshrl.u32 %v7130, 7
          %v7132 = vsub.s32 %v7129, %v7131
          %v7133 = vrot.slane %v7119, %v7132
          %v7134 = vcombine.low %v7126, %v7133
          %v7136 = vunpack.c.l.s4 1966171168
          %v7137 = vunpack.c.0.s8 %v7136
          %v7138 = vlaneseq
          %v7139 = vshrl.u32 %v7138, 7
          %v7140 = vsub.s32 %v7137, %v7139
          %v7141 = vrot.slane %v7134, %v7140
          %7143 = vst [vmem:[%s278] sm:$0xf] %v7141
        $region52: #{tpu_custom_call.1} parent=31 // pred_fallthru
          _
        %s7144 = sand.u32 %s123, 1
        %s7145 = scalar_lea.sflag [#allocation5], %s7144
        %s7146 = sand.u32 %s123, 1
        %s7147 = smul.addr %s7146, 4
        %s7148 = scalar_lea.vmem [#allocation9], %s7147
        // Predicated region
        $region53: #{tpu_custom_call.1} parent=31 // pred_check
          %p7149 = pneg %p133
        $region54: #{tpu_custom_call.1} parent=31 // pred_check_branch
          %7151 = sbr.rel (%p7149) target = $region56
        $region55: #{tpu_custom_call.1} parent=31 // pred_region
          %s7152 = smul.u32 4, %s27
          %s7154 = ssub.s32 64, 64
          %7155 = vsyncadd %s7145, %s7154
          %s7156 = smul.addr %s7152, 16
          %s7157 = scalar_lea.hbm %s3, %s7156
          %s7159 = sshll.u32 %s7148, 4
          %s7160 = int_to_ptr.vmem [resolvable:$true] %s7159
          %7162 = dma.vmem_to_hbm [thread:$0]  %s7160, 64, %s7157, %s7145
        $region56: #{tpu_custom_call.1} parent=31 // pred_fallthru
          _
      $region32: #{tpu_custom_call.1} parent=5 // pred_fallthru
        _
      %p7163 = scmp.le.s32.totalorder 2, %s18
      // Predicated region
      $region57: #{tpu_custom_call.1} parent=5 // pred_check
        %p7164 = pneg %p7163
      $region58: #{tpu_custom_call.1} parent=5 // pred_check_branch
        %7166 = sbr.rel (%p7164) target = $region60
      $region59: #{tpu_custom_call.1} parent=5 // pred_region
        %s7167 = ssub.s32 %s18, 2
        // Predicated region
        $region61: #{tpu_custom_call.1} parent=59 // pred_check
          %p7168 = pneg %p139
        $region62: #{tpu_custom_call.1} parent=59 // pred_check_branch
          %7170 = sbr.rel (%p7168) target = $region64
        $region63: #{tpu_custom_call.1} parent=59 // pred_region
          %s7171 = sand.u32 %s124, 1
          %s7172 = scalar_lea.sflag [#allocation5], %s7171
          %s7173 = sand.u32 %s124, 1
          %s7174 = smul.addr %s7173, 4
          %s7175 = scalar_lea.vmem [#allocation9], %s7174
          %7176 = dma.done %s7172, 64
        $region64: #{tpu_custom_call.1} parent=59 // pred_fallthru
          _
      $region60: #{tpu_custom_call.1} parent=5 // pred_fallthru
        _
    $region6: #{tpu_custom_call.1} parent=1 // loop_footer
      %s22 = sadd.s32 1, %s18
    $region7: #{tpu_custom_call.1} parent=1 // loop_footer_branch
      %17 = sbr.rel target = $region3
    $region8: #{tpu_custom_call.1} parent=1 // loop_exit
      _
    %7177 = vsyncpa [#allocation4], 1
    %s7178 = scalar_lea.sflag [#allocation4], 1
    %7179 = vsyncpa %s7178, 1
    %7180 = vsyncpa [#allocation7], 1
    %s7181 = scalar_lea.sflag [#allocation7], 1
    %7182 = vsyncpa %s7181, 1
    %7183 = vsyncpa [#allocation5], 1
    %s7184 = scalar_lea.sflag [#allocation5], 1
    %7185 = vsyncpa %s7184, 1

</llo_original>
